<compile_context>
chip_gen: v7x
topology: tpu7x:2x2x1
jax: 0.10.0
libtpu: 0.0.40
codegen_flags: <defaults>
</compile_context>

<pallas_src>
import jax
import jax.numpy as jnp
from jax.experimental import pallas as pl
from jax.experimental.pallas import tpu as pltpu

EPS = 1e-5                              # nn.BatchNorm2d default eps
VMEM_LIMIT_BYTES = 32 * 1024 * 1024     # safe on v5e/v6e/v7x; actual footprint here is < 1 MiB


def _vmem_specs(n):
    return [pl.BlockSpec(memory_space=pltpu.MemorySpace.VMEM) for _ in range(n)]


def _conv_pool_bn_relu(p, w, b, gamma, beta, *, M, Mp):
    """Fused conv(as one matmul) + maxpool(2,2) + BatchNorm(batch stats) + ReLU.

    p:     [4*Mp, KK] bf16  im2col patches; rows grouped by the 4 positions of the 2x2 pool window
    w:     [KK, Cout] bf16  flattened conv weight ((kh, kw, cin) row order)
    b, gamma, beta: [1, Cout] f32
    Returns [Mp, Cout] f32 (only the first M rows are meaningful).
    """
    # Single MXU call over all 4 pool positions (4x taller LHS keeps the systolic array fed).
    y = jnp.dot(p, w, preferred_element_type=jnp.float32)            # [4*Mp, Cout] f32
    # Maxpool = elementwise max of the 4 per-position conv results (8-aligned row slices -> VPU).
    pooled = jnp.maximum(jnp.maximum(y[0 * Mp:1 * Mp], y[1 * Mp:2 * Mp]),
                         jnp.maximum(y[2 * Mp:3 * Mp], y[3 * Mp:4 * Mp]))
    pooled = pooled + b          # per-channel bias commutes with the max
    # BatchNorm2d, training-mode batch statistics over (N, H, W) == the M valid rows,
    # one pass (sum + sum of squares), biased variance as PyTorch uses for normalization.
    if M == Mp:
        s = jnp.sum(pooled, axis=0, keepdims=True)
        ss = jnp.sum(pooled * pooled, axis=0, keepdims=True)
    else:
        rows = jax.lax.broadcasted_iota(jnp.int32, (Mp, 1), 0)
        msk = (rows < M).astype(jnp.float32)
        pm = pooled * msk
        s = jnp.sum(pm, axis=0, keepdims=True)
        ss = jnp.sum(pm * pooled, axis=0, keepdims=True)
    mean = s * (1.0 / M)
    var = ss * (1.0 / M) - mean * mean
    xhat = (pooled - mean) * jax.lax.rsqrt(var + EPS)
    return jnp.maximum(xhat * gamma + beta, 0.0)                     # ReLU


def _make_block_kernel(M, Mp):
    def kernel(p_ref, w_ref, b_ref, g_ref, beta_ref, o_ref):
        feat = _conv_pool_bn_relu(p_ref[...], w_ref[...], b_ref[...],
                                  g_ref[...], beta_ref[...], M=M, Mp=Mp)
        o_ref[...] = feat.astype(o_ref.dtype)
    return kernel


def _make_block_head_kernel(M, Mp):
    """Third conv block with the classification head fused in as an epilogue."""
    def kernel(p_ref, w_ref, b_ref, g_ref, beta_ref,
               pool_ref, wfc_ref, bfc_ref, o_ref):
        feat = _conv_pool_bn_relu(p_ref[...], w_ref[...], b_ref[...],
                                  g_ref[...], beta_ref[...], M=M, Mp=Mp)   # [Mp, C]
        # x.mean((2, 3)) as a tiny [N, Mp] x [Mp, C] matmul (rows of pool_ref hold 1/S).
        pooled = jnp.dot(pool_ref[...], feat, preferred_element_type=jnp.float32)   # [N, C]
        logits = jnp.dot(pooled, wfc_ref[...],
                         preferred_element_type=jnp.float32) + bfc_ref[...]         # [N, 2]
        m = jnp.max(logits, axis=1, keepdims=True)                    # softmax(dim=1)
        e = jnp.exp(logits - m)
        o_ref[...] = (e / jnp.sum(e, axis=1, keepdims=True)).astype(o_ref.dtype)
    return kernel


def _pool_patches(x, K, pool):
    """im2col glue (pure data movement, bf16): returns [4*Mp, K*K*C] patches.

    Rows are ordered pool-position-major: group q = (di, dj) occupies rows [q*Mp, (q+1)*Mp);
    within a group rows are (n, hp, wp) row-major; padded rows (>= M) are zeros.
    """
    N, H, W, C = x.shape
    Ho, Wo = H - K + 1, W - K + 1
    Hp, Wp = (Ho - pool) // pool + 1, (Wo - pool) // pool + 1
    M = N * Hp * Wp
    Mp = -(-M // 8) * 8                     # round up to a multiple of 8 (sublane alignment)
    groups = []
    for di in range(pool):
        for dj in range(pool):
            taps = []
            for kh in range(K):
                for kw in range(K):
                    r0, c0 = di + kh, dj + kw
                    taps.append(x[:, r0:r0 + pool * (Hp - 1) + 1:pool,
                                  c0:c0 + pool * (Wp - 1) + 1:pool, :])
            g = jnp.concatenate(taps, axis=-1).reshape(M, K * K * C)   # (kh, kw, cin) order
            if Mp != M:
                g = jnp.pad(g, ((0, Mp - M), (0, 0)))
            groups.append(g)
    return jnp.concatenate(groups, axis=0), M, Mp, Hp, Wp


def conv_block(x, w_flat, b, gamma, beta, *, K=3, pool=2):
    """x: [N, H, W, Cin] (NHWC, bf16) -> [N, Hp, Wp, Cout] (bf16)."""
    N, H, W, Cin = x.shape
    KK, Cout = w_flat.shape
    patches, M, Mp, Hp, Wp = _pool_patches(x.astype(jnp.bfloat16), K, pool)
    flops = 2 * 4 * Mp * KK * Cout + 10 * Mp * Cout
    bytes_accessed = patches.size * 2 + KK * Cout * 2 + 3 * Cout * 4 + Mp * Cout * 2
    out = pl.pallas_call(
        _make_block_kernel(M, Mp),
        out_shape=jax.ShapeDtypeStruct((Mp, Cout), jnp.bfloat16),
        in_specs=_vmem_specs(5),
        out_specs=pl.BlockSpec(memory_space=pltpu.MemorySpace.VMEM),
        compiler_params=pltpu.CompilerParams(vmem_limit_bytes=VMEM_LIMIT_BYTES),
        cost_estimate=pl.CostEstimate(flops=flops, transcendentals=Cout,
                                      bytes_accessed=bytes_accessed),
    )(patches, w_flat.astype(jnp.bfloat16), b.reshape(1, Cout),
      gamma.reshape(1, Cout), beta.reshape(1, Cout))
    return out[:M].reshape(N, Hp, Wp, Cout)


def conv_block_head(x, w_flat, b, gamma, beta, w_fc, b_fc, *, K=3, pool=2):
    """Third conv block + (spatial mean -> Linear -> softmax), one fused kernel. Returns [N, 2] f32."""
    N, H, W, Cin = x.shape
    KK, Cout = w_flat.shape
    n_cls = w_fc.shape[1]
    patches, M, Mp, Hp, Wp = _pool_patches(x.astype(jnp.bfloat16), K, pool)
    S = Hp * Wp
    # Spatial-mean matrix: pool_mat[n, m] = 1/S for rows m belonging to sample n, else 0.
    m_ids = jnp.arange(Mp)[None, :]
    n_ids = jnp.arange(N)[:, None]
    pool_mat = jnp.where((m_ids >= n_ids * S) & (m_ids < (n_ids + 1) * S),
                         1.0 / S, 0.0).astype(jnp.float32)            # [N, Mp]
    flops = (2 * 4 * Mp * KK * Cout + 10 * Mp * Cout
             + 2 * N * Mp * Cout + 2 * N * Cout * n_cls)
    bytes_accessed = (patches.size * 2 + KK * Cout * 2 + 3 * Cout * 4
                      + N * Mp * 4 + Cout * n_cls * 4 + N * n_cls * 4)
    return pl.pallas_call(
        _make_block_head_kernel(M, Mp),
        out_shape=jax.ShapeDtypeStruct((N, n_cls), jnp.float32),
        in_specs=_vmem_specs(8),
        out_specs=pl.BlockSpec(memory_space=pltpu.MemorySpace.VMEM),
        compiler_params=pltpu.CompilerParams(vmem_limit_bytes=VMEM_LIMIT_BYTES),
        cost_estimate=pl.CostEstimate(flops=flops, transcendentals=Cout + N * n_cls,
                                      bytes_accessed=bytes_accessed),
    )(patches, w_flat.astype(jnp.bfloat16), b.reshape(1, Cout),
      gamma.reshape(1, Cout), beta.reshape(1, Cout),
      pool_mat, w_fc.astype(jnp.float32), b_fc.reshape(1, n_cls))


def init_params(key):
    """Deterministic synthetic parameters (shapes from Net.__init__).

    NOTE: to load real nn.Conv2d weights, permute (cout, cin, kh, kw) -> (kh, kw, cin, cout)
    before the flatten below so the (kh, kw, cin) row order matches the im2col tap order.
    """
    ks = jax.random.split(key, 5)

    def conv_params(k, cin, cout, kk=3):
        k1, k2, k3, k4 = jax.random.split(k, 4)
        fan_in = cin * kk * kk
        w = jax.random.normal(k1, (kk, kk, cin, cout), jnp.float32) / jnp.sqrt(fan_in)
        return dict(
            w=w.reshape(kk * kk * cin, cout),          # (kh, kw, cin) x cout
            b=0.1 * jax.random.normal(k2, (cout,), jnp.float32),
            gamma=1.0 + 0.1 * jax.random.normal(k3, (cout,), jnp.float32),
            beta=0.1 * jax.random.normal(k4, (cout,), jnp.float32),
        )

    return dict(
        c1=conv_params(ks[0], 3, 16),
        c2=conv_params(ks[1], 16, 64),
        c3=conv_params(ks[2], 64, 128),
        w_fc=jax.random.normal(ks[3], (128, 2), jnp.float32) / jnp.sqrt(128.0),
        b_fc=0.1 * jax.random.normal(ks[4], (2,), jnp.float32),
    )


@jax.jit
def net_forward(params, x_nchw):
    # TODO(synk): running_mean/running_var are not tracked (training-mode forward only).
    x = jnp.transpose(x_nchw, (0, 2, 3, 1)).astype(jnp.bfloat16)     # NCHW -> NHWC, bf16 for MXU
    for name in ("c1", "c2"):
        c = params[name]
        x = conv_block(x, c["w"], c["b"], c["gamma"], c["beta"])
    c = params["c3"]
    return conv_block_head(x, c["w"], c["b"], c["gamma"], c["beta"],
                           params["w_fc"], params["b_fc"])


if __name__ == "__main__":
    key = jax.random.PRNGKey(0)
    kp, kx = jax.random.split(key)
    params = init_params(kp)
    # Input matches nn.Conv2d NCHW convention; 32x32 so all three conv+pool stages stay
    # valid: 32 -> 15 -> 6 -> 2 spatial, 128 channels at the end.
    x = jax.random.normal(kx, (2, 3, 32, 32), jnp.float32)
    out = net_forward(params, x)
    jax.block_until_ready(out)
    assert out.shape == (2, 2)
    assert bool(jnp.all(jnp.isfinite(out)))
    assert bool(jnp.allclose(jnp.sum(out, axis=1), 1.0, atol=1e-3))  # softmax rows sum to 1
    print("KERNEL_OK")
</pallas_src>

<mosaic_0001>
module attributes {stable_mosaic.version = 11 : i64} {
  func.func @kernel(%arg0: memref<1824x27xbf16, #tpu.memory_space<vmem>>, %arg1: memref<27x16xbf16, #tpu.memory_space<vmem>>, %arg2: memref<1x16xf32, #tpu.memory_space<vmem>>, %arg3: memref<1x16xf32, #tpu.memory_space<vmem>>, %arg4: memref<1x16xf32, #tpu.memory_space<vmem>>, %arg5: memref<456x16xbf16, #tpu.memory_space<vmem>>) attributes {dimension_semantics = [], scalar_prefetch = 0 : i64, scratch_operands = 0 : i64, tpu.core_type = #tpu.core_type<tc>} {
    %c0 = arith.constant 0 : index
    %c0_0 = arith.constant 0 : index
    %0 = vector.load %arg0[%c0, %c0_0] : memref<1824x27xbf16, #tpu.memory_space<vmem>>, vector<1824x27xbf16>
    %c0_1 = arith.constant 0 : index
    %c0_2 = arith.constant 0 : index
    %1 = vector.load %arg1[%c0_1, %c0_2] : memref<27x16xbf16, #tpu.memory_space<vmem>>, vector<27x16xbf16>
    %c0_3 = arith.constant 0 : index
    %c0_4 = arith.constant 0 : index
    %2 = vector.load %arg2[%c0_3, %c0_4] : memref<1x16xf32, #tpu.memory_space<vmem>>, vector<1x16xf32>
    %c0_5 = arith.constant 0 : index
    %c0_6 = arith.constant 0 : index
    %3 = vector.load %arg3[%c0_5, %c0_6] : memref<1x16xf32, #tpu.memory_space<vmem>>, vector<1x16xf32>
    %c0_7 = arith.constant 0 : index
    %c0_8 = arith.constant 0 : index
    %4 = vector.load %arg4[%c0_7, %c0_8] : memref<1x16xf32, #tpu.memory_space<vmem>>, vector<1x16xf32>
    %cst = arith.constant dense<0.000000e+00> : vector<1824x16xf32>
    %5 = tpu.matmul %0, %1, %cst {dimension_numbers = #tpu.dot_dimension_numbers<[1], [0], [0], [1], [0, 0, 1, 1], [], []>} : vector<1824x27xbf16>, vector<27x16xbf16>, vector<1824x16xf32> -> vector<1824x16xf32>
    %6 = vector.extract_strided_slice %5 {offsets = [0, 0], sizes = [456, 16], strides = [1, 1]} : vector<1824x16xf32> to vector<456x16xf32>
    %7 = vector.extract_strided_slice %5 {offsets = [456, 0], sizes = [456, 16], strides = [1, 1]} : vector<1824x16xf32> to vector<456x16xf32>
    %8 = arith.maximumf %6, %7 : vector<456x16xf32>
    %9 = vector.extract_strided_slice %5 {offsets = [912, 0], sizes = [456, 16], strides = [1, 1]} : vector<1824x16xf32> to vector<456x16xf32>
    %10 = vector.extract_strided_slice %5 {offsets = [1368, 0], sizes = [456, 16], strides = [1, 1]} : vector<1824x16xf32> to vector<456x16xf32>
    %11 = arith.maximumf %9, %10 : vector<456x16xf32>
    %12 = arith.maximumf %8, %11 : vector<456x16xf32>
    %13 = vector.broadcast %2 : vector<1x16xf32> to vector<456x16xf32>
    %14 = arith.addf %12, %13 : vector<456x16xf32>
    %15 = tpu.iota {dimensions = array<i32: 0>} : vector<456x1xi32>
    %c450_i32 = arith.constant 450 : i32
    %16 = vector.broadcast %c450_i32 : i32 to vector<456x1xi32>
    %17 = arith.cmpi slt, %15, %16 : vector<456x1xi32>
    %18 = arith.extui %17 : vector<456x1xi1> to vector<456x1xi32>
    %19 = arith.sitofp %18 : vector<456x1xi32> to vector<456x1xf32>
    %20 = vector.broadcast %19 : vector<456x1xf32> to vector<456x16xf32>
    %21 = arith.mulf %14, %20 : vector<456x16xf32>
    %cst_9 = arith.constant dense<0.000000e+00> : vector<16xf32>
    %22 = vector.multi_reduction <add>, %21, %cst_9 [0] : vector<456x16xf32> to vector<16xf32>
    %23 = vector.shape_cast %22 : vector<16xf32> to vector<1x16xf32>
    %24 = arith.mulf %21, %14 : vector<456x16xf32>
    %cst_10 = arith.constant dense<0.000000e+00> : vector<16xf32>
    %25 = vector.multi_reduction <add>, %24, %cst_10 [0] : vector<456x16xf32> to vector<16xf32>
    %26 = vector.shape_cast %25 : vector<16xf32> to vector<1x16xf32>
    %cst_11 = arith.constant 0.00222222228 : f32
    %27 = vector.broadcast %cst_11 : f32 to vector<1x16xf32>
    %28 = arith.mulf %23, %27 : vector<1x16xf32>
    %cst_12 = arith.constant 0.00222222228 : f32
    %29 = vector.broadcast %cst_12 : f32 to vector<1x16xf32>
    %30 = arith.mulf %26, %29 : vector<1x16xf32>
    %31 = arith.mulf %28, %28 : vector<1x16xf32>
    %32 = arith.subf %30, %31 : vector<1x16xf32>
    %33 = vector.broadcast %28 : vector<1x16xf32> to vector<456x16xf32>
    %34 = arith.subf %14, %33 : vector<456x16xf32>
    %cst_13 = arith.constant 9.99999974E-6 : f32
    %35 = vector.broadcast %cst_13 : f32 to vector<1x16xf32>
    %36 = arith.addf %32, %35 : vector<1x16xf32>
    %37 = math.rsqrt %36 : vector<1x16xf32>
    %38 = vector.broadcast %37 : vector<1x16xf32> to vector<456x16xf32>
    %39 = arith.mulf %34, %38 : vector<456x16xf32>
    %40 = vector.broadcast %3 : vector<1x16xf32> to vector<456x16xf32>
    %41 = arith.mulf %39, %40 : vector<456x16xf32>
    %42 = vector.broadcast %4 : vector<1x16xf32> to vector<456x16xf32>
    %43 = arith.addf %41, %42 : vector<456x16xf32>
    %cst_14 = arith.constant 0.000000e+00 : f32
    %44 = vector.broadcast %cst_14 : f32 to vector<456x16xf32>
    %45 = arith.maximumf %43, %44 : vector<456x16xf32>
    %46 = arith.truncf %45 : vector<456x16xf32> to vector<456x16xbf16>
    %c0_15 = arith.constant 0 : index
    %c0_16 = arith.constant 0 : index
    %47 = vector.load %arg5[%c0_15, %c0_16] : memref<456x16xbf16, #tpu.memory_space<vmem>>, vector<456x16xbf16>
    tpu.vector_store %arg5[%c0_15, %c0_16], %46 {strides = array<i32>} : memref<456x16xbf16, #tpu.memory_space<vmem>>, vector<456x16xbf16>,
    return
  }
}

module attributes {stable_mosaic.version = 11 : i64} {
  func.func @kernel(%arg0: memref<288x144xbf16, #tpu.memory_space<vmem>>, %arg1: memref<144x64xbf16, #tpu.memory_space<vmem>>, %arg2: memref<1x64xf32, #tpu.memory_space<vmem>>, %arg3: memref<1x64xf32, #tpu.memory_space<vmem>>, %arg4: memref<1x64xf32, #tpu.memory_space<vmem>>, %arg5: memref<72x64xbf16, #tpu.memory_space<vmem>>) attributes {dimension_semantics = [], scalar_prefetch = 0 : i64, scratch_operands = 0 : i64, tpu.core_type = #tpu.core_type<tc>} {
    %c0 = arith.constant 0 : index
    %c0_0 = arith.constant 0 : index
    %0 = vector.load %arg0[%c0, %c0_0] : memref<288x144xbf16, #tpu.memory_space<vmem>>, vector<288x144xbf16>
    %c0_1 = arith.constant 0 : index
    %c0_2 = arith.constant 0 : index
    %1 = vector.load %arg1[%c0_1, %c0_2] : memref<144x64xbf16, #tpu.memory_space<vmem>>, vector<144x64xbf16>
    %c0_3 = arith.constant 0 : index
    %c0_4 = arith.constant 0 : index
    %2 = vector.load %arg2[%c0_3, %c0_4] : memref<1x64xf32, #tpu.memory_space<vmem>>, vector<1x64xf32>
    %c0_5 = arith.constant 0 : index
    %c0_6 = arith.constant 0 : index
    %3 = vector.load %arg3[%c0_5, %c0_6] : memref<1x64xf32, #tpu.memory_space<vmem>>, vector<1x64xf32>
    %c0_7 = arith.constant 0 : index
    %c0_8 = arith.constant 0 : index
    %4 = vector.load %arg4[%c0_7, %c0_8] : memref<1x64xf32, #tpu.memory_space<vmem>>, vector<1x64xf32>
    %cst = arith.constant dense<0.000000e+00> : vector<288x64xf32>
    %5 = tpu.matmul %0, %1, %cst {dimension_numbers = #tpu.dot_dimension_numbers<[1], [0], [0], [1], [0, 0, 1, 1], [], []>} : vector<288x144xbf16>, vector<144x64xbf16>, vector<288x64xf32> -> vector<288x64xf32>
    %6 = vector.extract_strided_slice %5 {offsets = [0, 0], sizes = [72, 64], strides = [1, 1]} : vector<288x64xf32> to vector<72x64xf32>
    %7 = vector.extract_strided_slice %5 {offsets = [72, 0], sizes = [72, 64], strides = [1, 1]} : vector<288x64xf32> to vector<72x64xf32>
    %8 = arith.maximumf %6, %7 : vector<72x64xf32>
    %9 = vector.extract_strided_slice %5 {offsets = [144, 0], sizes = [72, 64], strides = [1, 1]} : vector<288x64xf32> to vector<72x64xf32>
    %10 = vector.extract_strided_slice %5 {offsets = [216, 0], sizes = [72, 64], strides = [1, 1]} : vector<288x64xf32> to vector<72x64xf32>
    %11 = arith.maximumf %9, %10 : vector<72x64xf32>
    %12 = arith.maximumf %8, %11 : vector<72x64xf32>
    %13 = vector.broadcast %2 : vector<1x64xf32> to vector<72x64xf32>
    %14 = arith.addf %12, %13 : vector<72x64xf32>
    %cst_9 = arith.constant dense<0.000000e+00> : vector<64xf32>
    %15 = vector.multi_reduction <add>, %14, %cst_9 [0] : vector<72x64xf32> to vector<64xf32>
    %16 = vector.shape_cast %15 : vector<64xf32> to vector<1x64xf32>
    %17 = arith.mulf %14, %14 : vector<72x64xf32>
    %cst_10 = arith.constant dense<0.000000e+00> : vector<64xf32>
    %18 = vector.multi_reduction <add>, %17, %cst_10 [0] : vector<72x64xf32> to vector<64xf32>
    %19 = vector.shape_cast %18 : vector<64xf32> to vector<1x64xf32>
    %cst_11 = arith.constant 0.013888889 : f32
    %20 = vector.broadcast %cst_11 : f32 to vector<1x64xf32>
    %21 = arith.mulf %16, %20 : vector<1x64xf32>
    %cst_12 = arith.constant 0.013888889 : f32
    %22 = vector.broadcast %cst_12 : f32 to vector<1x64xf32>
    %23 = arith.mulf %19, %22 : vector<1x64xf32>
    %24 = arith.mulf %21, %21 : vector<1x64xf32>
    %25 = arith.subf %23, %24 : vector<1x64xf32>
    %26 = vector.broadcast %21 : vector<1x64xf32> to vector<72x64xf32>
    %27 = arith.subf %14, %26 : vector<72x64xf32>
    %cst_13 = arith.constant 9.99999974E-6 : f32
    %28 = vector.broadcast %cst_13 : f32 to vector<1x64xf32>
    %29 = arith.addf %25, %28 : vector<1x64xf32>
    %30 = math.rsqrt %29 : vector<1x64xf32>
    %31 = vector.broadcast %30 : vector<1x64xf32> to vector<72x64xf32>
    %32 = arith.mulf %27, %31 : vector<72x64xf32>
    %33 = vector.broadcast %3 : vector<1x64xf32> to vector<72x64xf32>
    %34 = arith.mulf %32, %33 : vector<72x64xf32>
    %35 = vector.broadcast %4 : vector<1x64xf32> to vector<72x64xf32>
    %36 = arith.addf %34, %35 : vector<72x64xf32>
    %cst_14 = arith.constant 0.000000e+00 : f32
    %37 = vector.broadcast %cst_14 : f32 to vector<72x64xf32>
    %38 = arith.maximumf %36, %37 : vector<72x64xf32>
    %39 = arith.truncf %38 : vector<72x64xf32> to vector<72x64xbf16>
    %c0_15 = arith.constant 0 : index
    %c0_16 = arith.constant 0 : index
    %40 = vector.load %arg5[%c0_15, %c0_16] : memref<72x64xbf16, #tpu.memory_space<vmem>>, vector<72x64xbf16>
    tpu.vector_store %arg5[%c0_15, %c0_16], %39 {strides = array<i32>} : memref<72x64xbf16, #tpu.memory_space<vmem>>, vector<72x64xbf16>,
    return
  }
}

module attributes {stable_mosaic.version = 11 : i64} {
  func.func @kernel(%arg0: memref<32x576xbf16, #tpu.memory_space<vmem>>, %arg1: memref<576x128xbf16, #tpu.memory_space<vmem>>, %arg2: memref<1x128xf32, #tpu.memory_space<vmem>>, %arg3: memref<1x128xf32, #tpu.memory_space<vmem>>, %arg4: memref<1x128xf32, #tpu.memory_space<vmem>>, %arg5: memref<2x8xf32, #tpu.memory_space<vmem>>, %arg6: memref<128x2xf32, #tpu.memory_space<vmem>>, %arg7: memref<1x2xf32, #tpu.memory_space<vmem>>, %arg8: memref<2x2xf32, #tpu.memory_space<vmem>>) attributes {dimension_semantics = [], scalar_prefetch = 0 : i64, scratch_operands = 0 : i64, tpu.core_type = #tpu.core_type<tc>} {
    %c0 = arith.constant 0 : index
    %c0_0 = arith.constant 0 : index
    %0 = vector.load %arg0[%c0, %c0_0] : memref<32x576xbf16, #tpu.memory_space<vmem>>, vector<32x576xbf16>
    %c0_1 = arith.constant 0 : index
    %c0_2 = arith.constant 0 : index
    %1 = vector.load %arg1[%c0_1, %c0_2] : memref<576x128xbf16, #tpu.memory_space<vmem>>, vector<576x128xbf16>
    %c0_3 = arith.constant 0 : index
    %c0_4 = arith.constant 0 : index
    %2 = vector.load %arg2[%c0_3, %c0_4] : memref<1x128xf32, #tpu.memory_space<vmem>>, vector<1x128xf32>
    %c0_5 = arith.constant 0 : index
    %c0_6 = arith.constant 0 : index
    %3 = vector.load %arg3[%c0_5, %c0_6] : memref<1x128xf32, #tpu.memory_space<vmem>>, vector<1x128xf32>
    %c0_7 = arith.constant 0 : index
    %c0_8 = arith.constant 0 : index
    %4 = vector.load %arg4[%c0_7, %c0_8] : memref<1x128xf32, #tpu.memory_space<vmem>>, vector<1x128xf32>
    %cst = arith.constant dense<0.000000e+00> : vector<32x128xf32>
    %5 = tpu.matmul %0, %1, %cst {dimension_numbers = #tpu.dot_dimension_numbers<[1], [0], [0], [1], [0, 0, 1, 1], [], []>} : vector<32x576xbf16>, vector<576x128xbf16>, vector<32x128xf32> -> vector<32x128xf32>
    %6 = vector.extract_strided_slice %5 {offsets = [0, 0], sizes = [8, 128], strides = [1, 1]} : vector<32x128xf32> to vector<8x128xf32>
    %7 = vector.extract_strided_slice %5 {offsets = [8, 0], sizes = [8, 128], strides = [1, 1]} : vector<32x128xf32> to vector<8x128xf32>
    %8 = arith.maximumf %6, %7 : vector<8x128xf32>
    %9 = vector.extract_strided_slice %5 {offsets = [16, 0], sizes = [8, 128], strides = [1, 1]} : vector<32x128xf32> to vector<8x128xf32>
    %10 = vector.extract_strided_slice %5 {offsets = [24, 0], sizes = [8, 128], strides = [1, 1]} : vector<32x128xf32> to vector<8x128xf32>
    %11 = arith.maximumf %9, %10 : vector<8x128xf32>
    %12 = arith.maximumf %8, %11 : vector<8x128xf32>
    %13 = vector.broadcast %2 : vector<1x128xf32> to vector<8x128xf32>
    %14 = arith.addf %12, %13 : vector<8x128xf32>
    %cst_9 = arith.constant dense<0.000000e+00> : vector<128xf32>
    %15 = vector.multi_reduction <add>, %14, %cst_9 [0] : vector<8x128xf32> to vector<128xf32>
    %16 = vector.shape_cast %15 : vector<128xf32> to vector<1x128xf32>
    %17 = arith.mulf %14, %14 : vector<8x128xf32>
    %cst_10 = arith.constant dense<0.000000e+00> : vector<128xf32>
    %18 = vector.multi_reduction <add>, %17, %cst_10 [0] : vector<8x128xf32> to vector<128xf32>
    %19 = vector.shape_cast %18 : vector<128xf32> to vector<1x128xf32>
    %cst_11 = arith.constant 1.250000e-01 : f32
    %20 = vector.broadcast %cst_11 : f32 to vector<1x128xf32>
    %21 = arith.mulf %16, %20 : vector<1x128xf32>
    %cst_12 = arith.constant 1.250000e-01 : f32
    %22 = vector.broadcast %cst_12 : f32 to vector<1x128xf32>
    %23 = arith.mulf %19, %22 : vector<1x128xf32>
    %24 = arith.mulf %21, %21 : vector<1x128xf32>
    %25 = arith.subf %23, %24 : vector<1x128xf32>
    %26 = vector.broadcast %21 : vector<1x128xf32> to vector<8x128xf32>
    %27 = arith.subf %14, %26 : vector<8x128xf32>
    %cst_13 = arith.constant 9.99999974E-6 : f32
    %28 = vector.broadcast %cst_13 : f32 to vector<1x128xf32>
    %29 = arith.addf %25, %28 : vector<1x128xf32>
    %30 = math.rsqrt %29 : vector<1x128xf32>
    %31 = vector.broadcast %30 : vector<1x128xf32> to vector<8x128xf32>
    %32 = arith.mulf %27, %31 : vector<8x128xf32>
    %33 = vector.broadcast %3 : vector<1x128xf32> to vector<8x128xf32>
    %34 = arith.mulf %32, %33 : vector<8x128xf32>
    %35 = vector.broadcast %4 : vector<1x128xf32> to vector<8x128xf32>
    %36 = arith.addf %34, %35 : vector<8x128xf32>
    %cst_14 = arith.constant 0.000000e+00 : f32
    %37 = vector.broadcast %cst_14 : f32 to vector<8x128xf32>
    %38 = arith.maximumf %36, %37 : vector<8x128xf32>
    %c0_15 = arith.constant 0 : index
    %c0_16 = arith.constant 0 : index
    %39 = vector.load %arg5[%c0_15, %c0_16] : memref<2x8xf32, #tpu.memory_space<vmem>>, vector<2x8xf32>
    %cst_17 = arith.constant dense<0.000000e+00> : vector<2x128xf32>
    %40 = tpu.matmul %39, %38, %cst_17 {dimension_numbers = #tpu.dot_dimension_numbers<[1], [0], [0], [1], [0, 0, 1, 1], [], []>} : vector<2x8xf32>, vector<8x128xf32>, vector<2x128xf32> -> vector<2x128xf32>
    %c0_18 = arith.constant 0 : index
    %c0_19 = arith.constant 0 : index
    %41 = vector.load %arg6[%c0_18, %c0_19] : memref<128x2xf32, #tpu.memory_space<vmem>>, vector<128x2xf32>
    %cst_20 = arith.constant dense<0.000000e+00> : vector<2x2xf32>
    %42 = tpu.matmul %40, %41, %cst_20 {dimension_numbers = #tpu.dot_dimension_numbers<[1], [0], [0], [1], [0, 0, 1, 1], [], []>} : vector<2x128xf32>, vector<128x2xf32>, vector<2x2xf32> -> vector<2x2xf32>
    %c0_21 = arith.constant 0 : index
    %c0_22 = arith.constant 0 : index
    %43 = vector.load %arg7[%c0_21, %c0_22] : memref<1x2xf32, #tpu.memory_space<vmem>>, vector<1x2xf32>
    %44 = vector.broadcast %43 : vector<1x2xf32> to vector<2x2xf32>
    %45 = arith.addf %42, %44 : vector<2x2xf32>
    %cst_23 = arith.constant dense<0xFF800000> : vector<2xf32>
    %46 = vector.multi_reduction <maximumf>, %45, %cst_23 [1] : vector<2x2xf32> to vector<2xf32>
    %47 = vector.shape_cast %46 : vector<2xf32> to vector<2x1xf32>
    %48 = vector.broadcast %47 : vector<2x1xf32> to vector<2x2xf32>
    %49 = arith.subf %45, %48 : vector<2x2xf32>
    %50 = math.exp %49 : vector<2x2xf32>
    %cst_24 = arith.constant dense<0.000000e+00> : vector<2xf32>
    %51 = vector.multi_reduction <add>, %50, %cst_24 [1] : vector<2x2xf32> to vector<2xf32>
    %52 = vector.shape_cast %51 : vector<2xf32> to vector<2x1xf32>
    %53 = vector.broadcast %52 : vector<2x1xf32> to vector<2x2xf32>
    %54 = arith.divf %50, %53 : vector<2x2xf32>
    %c0_25 = arith.constant 0 : index
    %c0_26 = arith.constant 0 : index
    %55 = vector.load %arg8[%c0_25, %c0_26] : memref<2x2xf32, #tpu.memory_space<vmem>>, vector<2x2xf32>
    tpu.vector_store %arg8[%c0_25, %c0_26], %54 {strides = array<i32>} : memref<2x2xf32, #tpu.memory_space<vmem>>, vector<2x2xf32>,
    return
  }
}

</mosaic_0001>

<llo_original>
// kernel: net_forward.3
$region0: #{net_forward.3}
  #allocation0 [shape = 'u32[]', space=smem, size = 0x4, offset = 0x4, fixed_abs, tag = 'smem constant byte address 0x4 - core index']
  #allocation1 [shape = 'u32[144,128]{1,0:T(1,128)}', space=vmem, size = 0x12000, scoped, tag = 'internal scratch']
  %s0 = inlined_call_operand.vmem [shape: bf16[1824,27], index: 0, kind: input, shape index: {}]
  %s1 = inlined_call_operand.vmem [shape: bf16[27,16], index: 1, kind: input, shape index: {}]
  %s2 = inlined_call_operand.vmem [shape: f32[1,16], index: 2, kind: input, shape index: {}]
  %s3 = inlined_call_operand.vmem [shape: f32[1,16], index: 3, kind: input, shape index: {}]
  %s4 = inlined_call_operand.vmem [shape: f32[1,16], index: 4, kind: input, shape index: {}]
  %s5 = inlined_call_operand.vmem [shape: bf16[456,16], index: 5, kind: output, shape index: {}]
  %s6 = sld [smem:[#allocation0]]
  $region30: #{net_forward.3} parent=0
    _
  %s8 = ssub.s32 1, %s6
  %s9 = scalar_select 0, %s8, %s6
  // Predicated region
  $region2: #{net_forward.3} parent=0 // pred_check
    _
  $region3: #{net_forward.3} parent=0 // pred_check_branch
    %11 = sbr.rel (0) target = $region5
  $region4: #{net_forward.3} parent=0 // pred_region
    _
  $region5: #{net_forward.3} parent=0 // pred_fallthru
    _
  // Predicated region
  $region6: #{net_forward.3} parent=0 // pred_check
    _
  $region7: #{net_forward.3} parent=0 // pred_check_branch
    %13 = sbr.rel (0) target = $region9
  $region8: #{net_forward.3} parent=0 // pred_region
    _
  $region9: #{net_forward.3} parent=0 // pred_fallthru
    _
  // Predicated region
  $region10: #{net_forward.3} parent=0 // pred_check
    _
  $region11: #{net_forward.3} parent=0 // pred_check_branch
    %15 = sbr.rel (0) target = $region13
  $region12: #{net_forward.3} parent=0 // pred_region
    _
  $region13: #{net_forward.3} parent=0 // pred_fallthru
    _
  // Predicated region
  $region14: #{net_forward.3} parent=0 // pred_check
    _
  $region15: #{net_forward.3} parent=0 // pred_check_branch
    %17 = sbr.rel (0) target = $region17
  $region16: #{net_forward.3} parent=0 // pred_region
    _
  $region17: #{net_forward.3} parent=0 // pred_fallthru
    _
  // Predicated region
  $region18: #{net_forward.3} parent=0 // pred_check
    _
  $region19: #{net_forward.3} parent=0 // pred_check_branch
    %19 = sbr.rel (0) target = $region21
  $region20: #{net_forward.3} parent=0 // pred_region
    _
  $region21: #{net_forward.3} parent=0 // pred_fallthru
    _
  %v21 = vld [vmem:[%s0] sm:$0xf]
  %v22 = vld [vmem:[%s0 + $0x4] sm:$0xf]
  %v23 = vld [vmem:[%s0 + $0x8] sm:$0xf]
  %v24 = vld [vmem:[%s0 + $0xc] sm:$0xf]
  %v25 = vld [vmem:[%s0 + $0x10] sm:$0xf]
  %v26 = vld [vmem:[%s0 + $0x14] sm:$0xf]
  %v27 = vld [vmem:[%s0 + $0x18] sm:$0xf]
  %v28 = vld [vmem:[%s0 + $0x1c] sm:$0xf]
  %v29 = vld [vmem:[%s0 + $0x20] sm:$0xf]
  %v30 = vld [vmem:[%s0 + $0x24] sm:$0xf]
  %v31 = vld [vmem:[%s0 + $0x28] sm:$0xf]
  %v32 = vld [vmem:[%s0 + $0x2c] sm:$0xf]
  %v33 = vld [vmem:[%s0 + $0x30] sm:$0xf]
  %v34 = vld [vmem:[%s0 + $0x34] sm:$0xf]
  %v35 = vld [vmem:[%s0 + $0x38] sm:$0xf]
  %v36 = vld [vmem:[%s0 + $0x3c] sm:$0xf]
  %v37 = vld [vmem:[%s0 + $0x40] sm:$0xf]
  %v38 = vld [vmem:[%s0 + $0x44] sm:$0xf]
  %v39 = vld [vmem:[%s0 + $0x48] sm:$0xf]
  %v40 = vld [vmem:[%s0 + $0x4c] sm:$0xf]
  %v41 = vld [vmem:[%s0 + $0x50] sm:$0xf]
  %v42 = vld [vmem:[%s0 + $0x54] sm:$0xf]
  %v43 = vld [vmem:[%s0 + $0x58] sm:$0xf]
  %v44 = vld [vmem:[%s0 + $0x5c] sm:$0xf]
  %v45 = vld [vmem:[%s0 + $0x60] sm:$0xf]
  %v46 = vld [vmem:[%s0 + $0x64] sm:$0xf]
  %v47 = vld [vmem:[%s0 + $0x68] sm:$0xf]
  %v48 = vld [vmem:[%s0 + $0x6c] sm:$0xf]
  %v49 = vld [vmem:[%s0 + $0x70] sm:$0xf]
  %v50 = vld [vmem:[%s0 + $0x74] sm:$0xf]
  %v51 = vld [vmem:[%s0 + $0x78] sm:$0xf]
  %v52 = vld [vmem:[%s0 + $0x7c] sm:$0xf]
  %v53 = vld [vmem:[%s0 + $0x80] sm:$0xf]
  %v54 = vld [vmem:[%s0 + $0x84] sm:$0xf]
  %v55 = vld [vmem:[%s0 + $0x88] sm:$0xf]
  %v56 = vld [vmem:[%s0 + $0x8c] sm:$0xf]
  %v57 = vld [vmem:[%s0 + $0x90] sm:$0xf]
  %v58 = vld [vmem:[%s0 + $0x94] sm:$0xf]
  %v59 = vld [vmem:[%s0 + $0x98] sm:$0xf]
  %v60 = vld [vmem:[%s0 + $0x9c] sm:$0xf]
  %v61 = vld [vmem:[%s0 + $0xa0] sm:$0xf]
  %v62 = vld [vmem:[%s0 + $0xa4] sm:$0xf]
  %v63 = vld [vmem:[%s0 + $0xa8] sm:$0xf]
  %v64 = vld [vmem:[%s0 + $0xac] sm:$0xf]
  %v65 = vld [vmem:[%s0 + $0xb0] sm:$0xf]
  %v66 = vld [vmem:[%s0 + $0xb4] sm:$0xf]
  %v67 = vld [vmem:[%s0 + $0xb8] sm:$0xf]
  %v68 = vld [vmem:[%s0 + $0xbc] sm:$0xf]
  %v69 = vld [vmem:[%s0 + $0xc0] sm:$0xf]
  %v70 = vld [vmem:[%s0 + $0xc4] sm:$0xf]
  %v71 = vld [vmem:[%s0 + $0xc8] sm:$0xf]
  %v72 = vld [vmem:[%s0 + $0xcc] sm:$0xf]
  %v73 = vld [vmem:[%s0 + $0xd0] sm:$0xf]
  %v74 = vld [vmem:[%s0 + $0xd4] sm:$0xf]
  %v75 = vld [vmem:[%s0 + $0xd8] sm:$0xf]
  %v76 = vld [vmem:[%s0 + $0xdc] sm:$0xf]
  %v77 = vld [vmem:[%s0 + $0xe0] sm:$0xf]
  %v78 = vld [vmem:[%s0 + $0xe4] sm:$0xf]
  %v79 = vld [vmem:[%s0 + $0xe8] sm:$0xf]
  %v80 = vld [vmem:[%s0 + $0xec] sm:$0xf]
  %v81 = vld [vmem:[%s0 + $0xf0] sm:$0xf]
  %v82 = vld [vmem:[%s0 + $0xf4] sm:$0xf]
  %v83 = vld [vmem:[%s0 + $0xf8] sm:$0xf]
  %v84 = vld [vmem:[%s0 + $0xfc] sm:$0xf]
  %v85 = vld [vmem:[%s0 + $0x100] sm:$0xf]
  %v86 = vld [vmem:[%s0 + $0x104] sm:$0xf]
  %v87 = vld [vmem:[%s0 + $0x108] sm:$0xf]
  %v88 = vld [vmem:[%s0 + $0x10c] sm:$0xf]
  %v89 = vld [vmem:[%s0 + $0x110] sm:$0xf]
  %v90 = vld [vmem:[%s0 + $0x114] sm:$0xf]
  %v91 = vld [vmem:[%s0 + $0x118] sm:$0xf]
  %v92 = vld [vmem:[%s0 + $0x11c] sm:$0xf]
  %v93 = vld [vmem:[%s0 + $0x120] sm:$0xf]
  %v94 = vld [vmem:[%s0 + $0x124] sm:$0xf]
  %v95 = vld [vmem:[%s0 + $0x128] sm:$0xf]
  %v96 = vld [vmem:[%s0 + $0x12c] sm:$0xf]
  %v97 = vld [vmem:[%s0 + $0x130] sm:$0xf]
  %v98 = vld [vmem:[%s0 + $0x134] sm:$0xf]
  %v99 = vld [vmem:[%s0 + $0x138] sm:$0xf]
  %v100 = vld [vmem:[%s0 + $0x13c] sm:$0xf]
  %v101 = vld [vmem:[%s0 + $0x140] sm:$0xf]
  %v102 = vld [vmem:[%s0 + $0x144] sm:$0xf]
  %v103 = vld [vmem:[%s0 + $0x148] sm:$0xf]
  %v104 = vld [vmem:[%s0 + $0x14c] sm:$0xf]
  %v105 = vld [vmem:[%s0 + $0x150] sm:$0xf]
  %v106 = vld [vmem:[%s0 + $0x154] sm:$0xf]
  %v107 = vld [vmem:[%s0 + $0x158] sm:$0xf]
  %v108 = vld [vmem:[%s0 + $0x15c] sm:$0xf]
  %v109 = vld [vmem:[%s0 + $0x160] sm:$0xf]
  %v110 = vld [vmem:[%s0 + $0x164] sm:$0xf]
  %v111 = vld [vmem:[%s0 + $0x168] sm:$0xf]
  %v112 = vld [vmem:[%s0 + $0x16c] sm:$0xf]
  %v113 = vld [vmem:[%s0 + $0x170] sm:$0xf]
  %v114 = vld [vmem:[%s0 + $0x174] sm:$0xf]
  %v115 = vld [vmem:[%s0 + $0x178] sm:$0xf]
  %v116 = vld [vmem:[%s0 + $0x17c] sm:$0xf]
  %v117 = vld [vmem:[%s0 + $0x180] sm:$0xf]
  %v118 = vld [vmem:[%s0 + $0x184] sm:$0xf]
  %v119 = vld [vmem:[%s0 + $0x188] sm:$0xf]
  %v120 = vld [vmem:[%s0 + $0x18c] sm:$0xf]
  %v121 = vld [vmem:[%s0 + $0x190] sm:$0xf]
  %v122 = vld [vmem:[%s0 + $0x194] sm:$0xf]
  %v123 = vld [vmem:[%s0 + $0x198] sm:$0xf]
  %v124 = vld [vmem:[%s0 + $0x19c] sm:$0xf]
  %v125 = vld [vmem:[%s0 + $0x1a0] sm:$0xf]
  %v126 = vld [vmem:[%s0 + $0x1a4] sm:$0xf]
  %v127 = vld [vmem:[%s0 + $0x1a8] sm:$0xf]
  %v128 = vld [vmem:[%s0 + $0x1ac] sm:$0xf]
  %v129 = vld [vmem:[%s0 + $0x1b0] sm:$0xf]
  %v130 = vld [vmem:[%s0 + $0x1b4] sm:$0xf]
  %v131 = vld [vmem:[%s0 + $0x1b8] sm:$0xf]
  %v132 = vld [vmem:[%s0 + $0x1bc] sm:$0xf]
  %v133 = vld [vmem:[%s0 + $0x1c0] sm:$0xf]
  %v134 = vld [vmem:[%s0 + $0x1c4] sm:$0xf]
  %v135 = vld [vmem:[%s0 + $0x1c8] sm:$0xf]
  %v136 = vld [vmem:[%s0 + $0x1cc] sm:$0xf]
  %v137 = vld [vmem:[%s0 + $0x1d0] sm:$0xf]
  %v138 = vld [vmem:[%s0 + $0x1d4] sm:$0xf]
  %v139 = vld [vmem:[%s0 + $0x1d8] sm:$0xf]
  %v140 = vld [vmem:[%s0 + $0x1dc] sm:$0xf]
  %v141 = vld [vmem:[%s0 + $0x1e0] sm:$0xf]
  %v142 = vld [vmem:[%s0 + $0x1e4] sm:$0xf]
  %v143 = vld [vmem:[%s0 + $0x1e8] sm:$0xf]
  %v144 = vld [vmem:[%s0 + $0x1ec] sm:$0xf]
  %v145 = vld [vmem:[%s0 + $0x1f0] sm:$0xf]
  %v146 = vld [vmem:[%s0 + $0x1f4] sm:$0xf]
  %v147 = vld [vmem:[%s0 + $0x1f8] sm:$0xf]
  %v148 = vld [vmem:[%s0 + $0x1fc] sm:$0xf]
  %v149 = vld [vmem:[%s0 + $0x200] sm:$0xf]
  %v150 = vld [vmem:[%s0 + $0x204] sm:$0xf]
  %v151 = vld [vmem:[%s0 + $0x208] sm:$0xf]
  %v152 = vld [vmem:[%s0 + $0x20c] sm:$0xf]
  %v153 = vld [vmem:[%s0 + $0x210] sm:$0xf]
  %v154 = vld [vmem:[%s0 + $0x214] sm:$0xf]
  %v155 = vld [vmem:[%s0 + $0x218] sm:$0xf]
  %v156 = vld [vmem:[%s0 + $0x21c] sm:$0xf]
  %v157 = vld [vmem:[%s0 + $0x220] sm:$0xf]
  %v158 = vld [vmem:[%s0 + $0x224] sm:$0xf]
  %v159 = vld [vmem:[%s0 + $0x228] sm:$0xf]
  %v160 = vld [vmem:[%s0 + $0x22c] sm:$0xf]
  %v161 = vld [vmem:[%s0 + $0x230] sm:$0xf]
  %v162 = vld [vmem:[%s0 + $0x234] sm:$0xf]
  %v163 = vld [vmem:[%s0 + $0x238] sm:$0xf]
  %v164 = vld [vmem:[%s0 + $0x23c] sm:$0xf]
  %v165 = vld [vmem:[%s0 + $0x240] sm:$0xf]
  %v166 = vld [vmem:[%s0 + $0x244] sm:$0xf]
  %v167 = vld [vmem:[%s0 + $0x248] sm:$0xf]
  %v168 = vld [vmem:[%s0 + $0x24c] sm:$0xf]
  %v169 = vld [vmem:[%s0 + $0x250] sm:$0xf]
  %v170 = vld [vmem:[%s0 + $0x254] sm:$0xf]
  %v171 = vld [vmem:[%s0 + $0x258] sm:$0xf]
  %v172 = vld [vmem:[%s0 + $0x25c] sm:$0xf]
  %v173 = vld [vmem:[%s0 + $0x260] sm:$0xf]
  %v174 = vld [vmem:[%s0 + $0x264] sm:$0xf]
  %v175 = vld [vmem:[%s0 + $0x268] sm:$0xf]
  %v176 = vld [vmem:[%s0 + $0x26c] sm:$0xf]
  %v177 = vld [vmem:[%s0 + $0x270] sm:$0xf]
  %v178 = vld [vmem:[%s0 + $0x274] sm:$0xf]
  %v179 = vld [vmem:[%s0 + $0x278] sm:$0xf]
  %v180 = vld [vmem:[%s0 + $0x27c] sm:$0xf]
  %v181 = vld [vmem:[%s0 + $0x280] sm:$0xf]
  %v182 = vld [vmem:[%s0 + $0x284] sm:$0xf]
  %v183 = vld [vmem:[%s0 + $0x288] sm:$0xf]
  %v184 = vld [vmem:[%s0 + $0x28c] sm:$0xf]
  %v185 = vld [vmem:[%s0 + $0x290] sm:$0xf]
  %v186 = vld [vmem:[%s0 + $0x294] sm:$0xf]
  %v187 = vld [vmem:[%s0 + $0x298] sm:$0xf]
  %v188 = vld [vmem:[%s0 + $0x29c] sm:$0xf]
  %v189 = vld [vmem:[%s0 + $0x2a0] sm:$0xf]
  %v190 = vld [vmem:[%s0 + $0x2a4] sm:$0xf]
  %v191 = vld [vmem:[%s0 + $0x2a8] sm:$0xf]
  %v192 = vld [vmem:[%s0 + $0x2ac] sm:$0xf]
  %v193 = vld [vmem:[%s0 + $0x2b0] sm:$0xf]
  %v194 = vld [vmem:[%s0 + $0x2b4] sm:$0xf]
  %v195 = vld [vmem:[%s0 + $0x2b8] sm:$0xf]
  %v196 = vld [vmem:[%s0 + $0x2bc] sm:$0xf]
  %v197 = vld [vmem:[%s0 + $0x2c0] sm:$0xf]
  %v198 = vld [vmem:[%s0 + $0x2c4] sm:$0xf]
  %v199 = vld [vmem:[%s0 + $0x2c8] sm:$0xf]
  %v200 = vld [vmem:[%s0 + $0x2cc] sm:$0xf]
  %v201 = vld [vmem:[%s0 + $0x2d0] sm:$0xf]
  %v202 = vld [vmem:[%s0 + $0x2d4] sm:$0xf]
  %v203 = vld [vmem:[%s0 + $0x2d8] sm:$0xf]
  %v204 = vld [vmem:[%s0 + $0x2dc] sm:$0xf]
  %v205 = vld [vmem:[%s0 + $0x2e0] sm:$0xf]
  %v206 = vld [vmem:[%s0 + $0x2e4] sm:$0xf]
  %v207 = vld [vmem:[%s0 + $0x2e8] sm:$0xf]
  %v208 = vld [vmem:[%s0 + $0x2ec] sm:$0xf]
  %v209 = vld [vmem:[%s0 + $0x2f0] sm:$0xf]
  %v210 = vld [vmem:[%s0 + $0x2f4] sm:$0xf]
  %v211 = vld [vmem:[%s0 + $0x2f8] sm:$0xf]
  %v212 = vld [vmem:[%s0 + $0x2fc] sm:$0xf]
  %v213 = vld [vmem:[%s0 + $0x300] sm:$0xf]
  %v214 = vld [vmem:[%s0 + $0x304] sm:$0xf]
  %v215 = vld [vmem:[%s0 + $0x308] sm:$0xf]
  %v216 = vld [vmem:[%s0 + $0x30c] sm:$0xf]
  %v217 = vld [vmem:[%s0 + $0x310] sm:$0xf]
  %v218 = vld [vmem:[%s0 + $0x314] sm:$0xf]
  %v219 = vld [vmem:[%s0 + $0x318] sm:$0xf]
  %v220 = vld [vmem:[%s0 + $0x31c] sm:$0xf]
  %v221 = vld [vmem:[%s0 + $0x320] sm:$0xf]
  %v222 = vld [vmem:[%s0 + $0x324] sm:$0xf]
  %v223 = vld [vmem:[%s0 + $0x328] sm:$0xf]
  %v224 = vld [vmem:[%s0 + $0x32c] sm:$0xf]
  %v225 = vld [vmem:[%s0 + $0x330] sm:$0xf]
  %v226 = vld [vmem:[%s0 + $0x334] sm:$0xf]
  %v227 = vld [vmem:[%s0 + $0x338] sm:$0xf]
  %v228 = vld [vmem:[%s0 + $0x33c] sm:$0xf]
  %v229 = vld [vmem:[%s0 + $0x340] sm:$0xf]
  %v230 = vld [vmem:[%s0 + $0x344] sm:$0xf]
  %v231 = vld [vmem:[%s0 + $0x348] sm:$0xf]
  %v232 = vld [vmem:[%s0 + $0x34c] sm:$0xf]
  %v233 = vld [vmem:[%s0 + $0x350] sm:$0xf]
  %v234 = vld [vmem:[%s0 + $0x354] sm:$0xf]
  %v235 = vld [vmem:[%s0 + $0x358] sm:$0xf]
  %v236 = vld [vmem:[%s0 + $0x35c] sm:$0xf]
  %v237 = vld [vmem:[%s0 + $0x360] sm:$0xf]
  %v238 = vld [vmem:[%s0 + $0x364] sm:$0xf]
  %v239 = vld [vmem:[%s0 + $0x368] sm:$0xf]
  %v240 = vld [vmem:[%s0 + $0x36c] sm:$0xf]
  %v241 = vld [vmem:[%s0 + $0x370] sm:$0xf]
  %v242 = vld [vmem:[%s0 + $0x374] sm:$0xf]
  %v243 = vld [vmem:[%s0 + $0x378] sm:$0xf]
  %v244 = vld [vmem:[%s0 + $0x37c] sm:$0xf]
  %v245 = vld [vmem:[%s0 + $0x380] sm:$0xf]
  %v246 = vld [vmem:[%s0 + $0x384] sm:$0xf]
  %v247 = vld [vmem:[%s0 + $0x388] sm:$0xf]
  %v248 = vld [vmem:[%s0 + $0x38c] sm:$0xf]
  %v249 = vld [vmem:[%s1] sm:$0xf]
  %v250 = vld [vmem:[%s1 + $0x4] sm:$0xf]
  %v251 = vld [vmem:[%s1 + $0x8] sm:$0xf]
  %v252 = vld [vmem:[%s1 + $0xc] sm:$0x3]
  %v253 = vld [vmem:[%s2] sm:$0x1]
  %v254 = vld [vmem:[%s3] sm:$0x1]
  %v255 = vld [vmem:[%s4] sm:$0x1]
  %v484 = vunpack.c.l.b16 %v21
  %v485 = vunpack.c.l.b16 %v22
  %v486 = vunpack.c.l.b16 %v23
  %v487 = vunpack.c.l.b16 %v24
  %v488 = vunpack.c.l.b16 %v25
  %v489 = vunpack.c.l.b16 %v26
  %v490 = vunpack.c.l.b16 %v27
  %v491 = vunpack.c.l.b16 %v28
  %v492 = vunpack.c.l.b16 %v29
  %v493 = vunpack.c.l.b16 %v30
  %v494 = vunpack.c.l.b16 %v31
  %v495 = vunpack.c.l.b16 %v32
  %v496 = vunpack.c.l.b16 %v33
  %v497 = vunpack.c.l.b16 %v34
  %v498 = vunpack.c.l.b16 %v35
  %v499 = vunpack.c.l.b16 %v36
  %v500 = vunpack.c.l.b16 %v37
  %v501 = vunpack.c.l.b16 %v38
  %v502 = vunpack.c.l.b16 %v39
  %v503 = vunpack.c.l.b16 %v40
  %v504 = vunpack.c.l.b16 %v41
  %v505 = vunpack.c.l.b16 %v42
  %v506 = vunpack.c.l.b16 %v43
  %v507 = vunpack.c.l.b16 %v44
  %v508 = vunpack.c.l.b16 %v45
  %v509 = vunpack.c.l.b16 %v46
  %v510 = vunpack.c.l.b16 %v47
  %v511 = vunpack.c.l.b16 %v48
  %v512 = vunpack.c.l.b16 %v49
  %v513 = vunpack.c.l.b16 %v50
  %v514 = vunpack.c.l.b16 %v51
  %v515 = vunpack.c.l.b16 %v52
  %v516 = vunpack.c.l.b16 %v53
  %v517 = vunpack.c.l.b16 %v54
  %v518 = vunpack.c.l.b16 %v55
  %v519 = vunpack.c.l.b16 %v56
  %v520 = vunpack.c.l.b16 %v57
  %v521 = vunpack.c.l.b16 %v58
  %v522 = vunpack.c.l.b16 %v59
  %v523 = vunpack.c.l.b16 %v60
  %v524 = vunpack.c.l.b16 %v61
  %v525 = vunpack.c.l.b16 %v62
  %v526 = vunpack.c.l.b16 %v63
  %v527 = vunpack.c.l.b16 %v64
  %v528 = vunpack.c.l.b16 %v65
  %v529 = vunpack.c.l.b16 %v66
  %v530 = vunpack.c.l.b16 %v67
  %v531 = vunpack.c.l.b16 %v68
  %v532 = vunpack.c.l.b16 %v69
  %v533 = vunpack.c.l.b16 %v70
  %v534 = vunpack.c.l.b16 %v71
  %v535 = vunpack.c.l.b16 %v72
  %v536 = vunpack.c.l.b16 %v73
  %v537 = vunpack.c.l.b16 %v74
  %v538 = vunpack.c.l.b16 %v75
  %v539 = vunpack.c.l.b16 %v76
  %v540 = vunpack.c.l.b16 %v77
  %v541 = vunpack.c.l.b16 %v78
  %v542 = vunpack.c.l.b16 %v79
  %v543 = vunpack.c.l.b16 %v80
  %v544 = vunpack.c.l.b16 %v81
  %v545 = vunpack.c.l.b16 %v82
  %v546 = vunpack.c.l.b16 %v83
  %v547 = vunpack.c.l.b16 %v84
  %v548 = vunpack.c.l.b16 %v85
  %v549 = vunpack.c.l.b16 %v86
  %v550 = vunpack.c.l.b16 %v87
  %v551 = vunpack.c.l.b16 %v88
  %v552 = vunpack.c.l.b16 %v89
  %v553 = vunpack.c.l.b16 %v90
  %v554 = vunpack.c.l.b16 %v91
  %v555 = vunpack.c.l.b16 %v92
  %v556 = vunpack.c.l.b16 %v93
  %v557 = vunpack.c.l.b16 %v94
  %v558 = vunpack.c.l.b16 %v95
  %v559 = vunpack.c.l.b16 %v96
  %v560 = vunpack.c.l.b16 %v97
  %v561 = vunpack.c.l.b16 %v98
  %v562 = vunpack.c.l.b16 %v99
  %v563 = vunpack.c.l.b16 %v100
  %v564 = vunpack.c.l.b16 %v101
  %v565 = vunpack.c.l.b16 %v102
  %v566 = vunpack.c.l.b16 %v103
  %v567 = vunpack.c.l.b16 %v104
  %v568 = vunpack.c.l.b16 %v105
  %v569 = vunpack.c.l.b16 %v106
  %v570 = vunpack.c.l.b16 %v107
  %v571 = vunpack.c.l.b16 %v108
  %v572 = vunpack.c.l.b16 %v109
  %v573 = vunpack.c.l.b16 %v110
  %v574 = vunpack.c.l.b16 %v111
  %v575 = vunpack.c.l.b16 %v112
  %v576 = vunpack.c.l.b16 %v113
  %v577 = vunpack.c.l.b16 %v114
  %v578 = vunpack.c.l.b16 %v115
  %v579 = vunpack.c.l.b16 %v116
  %v580 = vunpack.c.l.b16 %v117
  %v581 = vunpack.c.l.b16 %v118
  %v582 = vunpack.c.l.b16 %v119
  %v583 = vunpack.c.l.b16 %v120
  %v584 = vunpack.c.l.b16 %v121
  %v585 = vunpack.c.l.b16 %v122
  %v586 = vunpack.c.l.b16 %v123
  %v587 = vunpack.c.l.b16 %v124
  %v588 = vunpack.c.l.b16 %v125
  %v589 = vunpack.c.l.b16 %v126
  %v590 = vunpack.c.l.b16 %v127
  %v591 = vunpack.c.l.b16 %v128
  %v592 = vunpack.c.l.b16 %v129
  %v593 = vunpack.c.l.b16 %v130
  %v594 = vunpack.c.l.b16 %v131
  %v595 = vunpack.c.l.b16 %v132
  %v596 = vunpack.c.l.b16 %v133
  %v597 = vunpack.c.l.b16 %v134
  %v598 = vunpack.c.l.b16 %v135
  %v599 = vunpack.c.l.b16 %v136
  %v600 = vunpack.c.l.b16 %v137
  %v601 = vunpack.c.l.b16 %v138
  %v602 = vunpack.c.l.b16 %v139
  %v603 = vunpack.c.l.b16 %v140
  %v604 = vunpack.c.l.b16 %v141
  %v605 = vunpack.c.l.b16 %v142
  %v606 = vunpack.c.l.b16 %v143
  %v607 = vunpack.c.l.b16 %v144
  %v608 = vunpack.c.l.b16 %v145
  %v609 = vunpack.c.l.b16 %v146
  %v610 = vunpack.c.l.b16 %v147
  %v611 = vunpack.c.l.b16 %v148
  %v612 = vunpack.c.l.b16 %v149
  %v613 = vunpack.c.l.b16 %v150
  %v614 = vunpack.c.l.b16 %v151
  %v615 = vunpack.c.l.b16 %v152
  %v616 = vunpack.c.l.b16 %v153
  %v617 = vunpack.c.l.b16 %v154
  %v618 = vunpack.c.l.b16 %v155
  %v619 = vunpack.c.l.b16 %v156
  %v620 = vunpack.c.l.b16 %v157
  %v621 = vunpack.c.l.b16 %v158
  %v622 = vunpack.c.l.b16 %v159
  %v623 = vunpack.c.l.b16 %v160
  %v624 = vunpack.c.l.b16 %v161
  %v625 = vunpack.c.l.b16 %v162
  %v626 = vunpack.c.l.b16 %v163
  %v627 = vunpack.c.l.b16 %v164
  %v628 = vunpack.c.l.b16 %v165
  %v629 = vunpack.c.l.b16 %v166
  %v630 = vunpack.c.l.b16 %v167
  %v631 = vunpack.c.l.b16 %v168
  %v632 = vunpack.c.l.b16 %v169
  %v633 = vunpack.c.l.b16 %v170
  %v634 = vunpack.c.l.b16 %v171
  %v635 = vunpack.c.l.b16 %v172
  %v636 = vunpack.c.l.b16 %v173
  %v637 = vunpack.c.l.b16 %v174
  %v638 = vunpack.c.l.b16 %v175
  %v639 = vunpack.c.l.b16 %v176
  %v640 = vunpack.c.l.b16 %v177
  %v641 = vunpack.c.l.b16 %v178
  %v642 = vunpack.c.l.b16 %v179
  %v643 = vunpack.c.l.b16 %v180
  %v644 = vunpack.c.l.b16 %v181
  %v645 = vunpack.c.l.b16 %v182
  %v646 = vunpack.c.l.b16 %v183
  %v647 = vunpack.c.l.b16 %v184
  %v648 = vunpack.c.l.b16 %v185
  %v649 = vunpack.c.l.b16 %v186
  %v650 = vunpack.c.l.b16 %v187
  %v651 = vunpack.c.l.b16 %v188
  %v652 = vunpack.c.l.b16 %v189
  %v653 = vunpack.c.l.b16 %v190
  %v654 = vunpack.c.l.b16 %v191
  %v655 = vunpack.c.l.b16 %v192
  %v656 = vunpack.c.l.b16 %v193
  %v657 = vunpack.c.l.b16 %v194
  %v658 = vunpack.c.l.b16 %v195
  %v659 = vunpack.c.l.b16 %v196
  %v660 = vunpack.c.l.b16 %v197
  %v661 = vunpack.c.l.b16 %v198
  %v662 = vunpack.c.l.b16 %v199
  %v663 = vunpack.c.l.b16 %v200
  %v664 = vunpack.c.l.b16 %v201
  %v665 = vunpack.c.l.b16 %v202
  %v666 = vunpack.c.l.b16 %v203
  %v667 = vunpack.c.l.b16 %v204
  %v668 = vunpack.c.l.b16 %v205
  %v669 = vunpack.c.l.b16 %v206
  %v670 = vunpack.c.l.b16 %v207
  %v671 = vunpack.c.l.b16 %v208
  %v672 = vunpack.c.l.b16 %v209
  %v673 = vunpack.c.l.b16 %v210
  %v674 = vunpack.c.l.b16 %v211
  %v675 = vunpack.c.l.b16 %v212
  %v676 = vunpack.c.l.b16 %v213
  %v677 = vunpack.c.l.b16 %v214
  %v678 = vunpack.c.l.b16 %v215
  %v679 = vunpack.c.l.b16 %v216
  %v680 = vunpack.c.l.b16 %v217
  %v681 = vunpack.c.l.b16 %v218
  %v682 = vunpack.c.l.b16 %v219
  %v683 = vunpack.c.l.b16 %v220
  %v684 = vunpack.c.l.b16 %v221
  %v685 = vunpack.c.l.b16 %v222
  %v686 = vunpack.c.l.b16 %v223
  %v687 = vunpack.c.l.b16 %v224
  %v688 = vunpack.c.l.b16 %v225
  %v689 = vunpack.c.l.b16 %v226
  %v690 = vunpack.c.l.b16 %v227
  %v691 = vunpack.c.l.b16 %v228
  %v692 = vunpack.c.l.b16 %v229
  %v693 = vunpack.c.l.b16 %v230
  %v694 = vunpack.c.l.b16 %v231
  %v695 = vunpack.c.l.b16 %v232
  %v696 = vunpack.c.l.b16 %v233
  %v697 = vunpack.c.l.b16 %v234
  %v698 = vunpack.c.l.b16 %v235
  %v699 = vunpack.c.l.b16 %v236
  %v700 = vunpack.c.l.b16 %v237
  %v701 = vunpack.c.l.b16 %v238
  %v702 = vunpack.c.l.b16 %v239
  %v703 = vunpack.c.l.b16 %v240
  %v704 = vunpack.c.l.b16 %v241
  %v705 = vunpack.c.l.b16 %v242
  %v706 = vunpack.c.l.b16 %v243
  %v707 = vunpack.c.l.b16 %v244
  %v708 = vunpack.c.l.b16 %v245
  %v709 = vunpack.c.l.b16 %v246
  %v710 = vunpack.c.l.b16 %v247
  %v711 = vunpack.c.l.b16 %v248
  %v712 = vpack.c.b16 %v485, %v484
  %v713 = vpack.c.b16 %v487, %v486
  %v714 = vpack.c.b16 %v489, %v488
  %v715 = vpack.c.b16 %v491, %v490
  %v716 = vpack.c.b16 %v493, %v492
  %v717 = vpack.c.b16 %v495, %v494
  %v718 = vpack.c.b16 %v497, %v496
  %v719 = vpack.c.b16 %v499, %v498
  %v720 = vpack.c.b16 %v501, %v500
  %v721 = vpack.c.b16 %v503, %v502
  %v722 = vpack.c.b16 %v505, %v504
  %v723 = vpack.c.b16 %v507, %v506
  %v724 = vpack.c.b16 %v509, %v508
  %v725 = vpack.c.b16 %v511, %v510
  %v726 = vpack.c.b16 %v513, %v512
  %v727 = vpack.c.b16 %v515, %v514
  %v728 = vpack.c.b16 %v517, %v516
  %v729 = vpack.c.b16 %v519, %v518
  %v730 = vpack.c.b16 %v521, %v520
  %v731 = vpack.c.b16 %v523, %v522
  %v732 = vpack.c.b16 %v525, %v524
  %v733 = vpack.c.b16 %v527, %v526
  %v734 = vpack.c.b16 %v529, %v528
  %v735 = vpack.c.b16 %v531, %v530
  %v736 = vpack.c.b16 %v533, %v532
  %v737 = vpack.c.b16 %v535, %v534
  %v738 = vpack.c.b16 %v537, %v536
  %v739 = vpack.c.b16 %v539, %v538
  %v740 = vpack.c.b16 %v541, %v540
  %v741 = vpack.c.b16 %v543, %v542
  %v742 = vpack.c.b16 %v545, %v544
  %v743 = vpack.c.b16 %v547, %v546
  %v744 = vpack.c.b16 %v549, %v548
  %v745 = vpack.c.b16 %v551, %v550
  %v746 = vpack.c.b16 %v553, %v552
  %v747 = vpack.c.b16 %v555, %v554
  %v748 = vpack.c.b16 %v557, %v556
  %v749 = vpack.c.b16 %v559, %v558
  %v750 = vpack.c.b16 %v561, %v560
  %v751 = vpack.c.b16 %v563, %v562
  %v752 = vpack.c.b16 %v565, %v564
  %v753 = vpack.c.b16 %v567, %v566
  %v754 = vpack.c.b16 %v569, %v568
  %v755 = vpack.c.b16 %v571, %v570
  %v756 = vpack.c.b16 %v573, %v572
  %v757 = vpack.c.b16 %v575, %v574
  %v758 = vpack.c.b16 %v577, %v576
  %v759 = vpack.c.b16 %v579, %v578
  %v760 = vpack.c.b16 %v581, %v580
  %v761 = vpack.c.b16 %v583, %v582
  %v762 = vpack.c.b16 %v585, %v584
  %v763 = vpack.c.b16 %v587, %v586
  %v764 = vpack.c.b16 %v589, %v588
  %v765 = vpack.c.b16 %v591, %v590
  %v766 = vpack.c.b16 %v593, %v592
  %v767 = vpack.c.b16 %v595, %v594
  %v768 = vpack.c.b16 %v597, %v596
  %v769 = vpack.c.b16 %v599, %v598
  %v770 = vpack.c.b16 %v601, %v600
  %v771 = vpack.c.b16 %v603, %v602
  %v772 = vpack.c.b16 %v605, %v604
  %v773 = vpack.c.b16 %v607, %v606
  %v774 = vpack.c.b16 %v609, %v608
  %v775 = vpack.c.b16 %v611, %v610
  %v776 = vpack.c.b16 %v613, %v612
  %v777 = vpack.c.b16 %v615, %v614
  %v778 = vpack.c.b16 %v617, %v616
  %v779 = vpack.c.b16 %v619, %v618
  %v780 = vpack.c.b16 %v621, %v620
  %v781 = vpack.c.b16 %v623, %v622
  %v782 = vpack.c.b16 %v625, %v624
  %v783 = vpack.c.b16 %v627, %v626
  %v784 = vpack.c.b16 %v629, %v628
  %v785 = vpack.c.b16 %v631, %v630
  %v786 = vpack.c.b16 %v633, %v632
  %v787 = vpack.c.b16 %v635, %v634
  %v788 = vpack.c.b16 %v637, %v636
  %v789 = vpack.c.b16 %v639, %v638
  %v790 = vpack.c.b16 %v641, %v640
  %v791 = vpack.c.b16 %v643, %v642
  %v792 = vpack.c.b16 %v645, %v644
  %v793 = vpack.c.b16 %v647, %v646
  %v794 = vpack.c.b16 %v649, %v648
  %v795 = vpack.c.b16 %v651, %v650
  %v796 = vpack.c.b16 %v653, %v652
  %v797 = vpack.c.b16 %v655, %v654
  %v798 = vpack.c.b16 %v657, %v656
  %v799 = vpack.c.b16 %v659, %v658
  %v800 = vpack.c.b16 %v661, %v660
  %v801 = vpack.c.b16 %v663, %v662
  %v802 = vpack.c.b16 %v665, %v664
  %v803 = vpack.c.b16 %v667, %v666
  %v804 = vpack.c.b16 %v669, %v668
  %v805 = vpack.c.b16 %v671, %v670
  %v806 = vpack.c.b16 %v673, %v672
  %v807 = vpack.c.b16 %v675, %v674
  %v808 = vpack.c.b16 %v677, %v676
  %v809 = vpack.c.b16 %v679, %v678
  %v810 = vpack.c.b16 %v681, %v680
  %v811 = vpack.c.b16 %v683, %v682
  %v812 = vpack.c.b16 %v685, %v684
  %v813 = vpack.c.b16 %v687, %v686
  %v814 = vpack.c.b16 %v689, %v688
  %v815 = vpack.c.b16 %v691, %v690
  %v816 = vpack.c.b16 %v693, %v692
  %v817 = vpack.c.b16 %v695, %v694
  %v818 = vpack.c.b16 %v697, %v696
  %v819 = vpack.c.b16 %v699, %v698
  %v820 = vpack.c.b16 %v701, %v700
  %v821 = vpack.c.b16 %v703, %v702
  %v822 = vpack.c.b16 %v705, %v704
  %v823 = vpack.c.b16 %v707, %v706
  %v824 = vpack.c.b16 %v709, %v708
  %v825 = vpack.c.b16 %v711, %v710
  %v830 = vunpack.c.l.b16 %v249
  %v831 = vunpack.c.l.b16 %v250
  %v832 = vunpack.c.l.b16 %v251
  %v833 = vunpack.c.l.b16 %v252
  %v834 = vpack.c.b16 %v831, %v830
  %v835 = vpack.c.b16 %v833, %v832
  %vm837 = vcmask 220160
  %v839 = vsel %vm837, %v712, 0
  %v842 = vsel %vm837, %v713, 0
  %v845 = vsel %vm837, %v714, 0
  %v848 = vsel %vm837, %v715, 0
  %v851 = vsel %vm837, %v716, 0
  %v854 = vsel %vm837, %v717, 0
  %v857 = vsel %vm837, %v718, 0
  %v860 = vsel %vm837, %v719, 0
  %v863 = vsel %vm837, %v720, 0
  %v866 = vsel %vm837, %v721, 0
  %v869 = vsel %vm837, %v722, 0
  %v872 = vsel %vm837, %v723, 0
  %v875 = vsel %vm837, %v724, 0
  %v878 = vsel %vm837, %v725, 0
  %v881 = vsel %vm837, %v726, 0
  %v884 = vsel %vm837, %v727, 0
  %v887 = vsel %vm837, %v728, 0
  %v890 = vsel %vm837, %v729, 0
  %v893 = vsel %vm837, %v730, 0
  %v896 = vsel %vm837, %v731, 0
  %v899 = vsel %vm837, %v732, 0
  %v902 = vsel %vm837, %v733, 0
  %v905 = vsel %vm837, %v734, 0
  %v908 = vsel %vm837, %v735, 0
  %v911 = vsel %vm837, %v736, 0
  %v914 = vsel %vm837, %v737, 0
  %v917 = vsel %vm837, %v738, 0
  %v920 = vsel %vm837, %v739, 0
  %v923 = vsel %vm837, %v740, 0
  %v926 = vsel %vm837, %v741, 0
  %v929 = vsel %vm837, %v742, 0
  %v932 = vsel %vm837, %v743, 0
  %v935 = vsel %vm837, %v744, 0
  %v938 = vsel %vm837, %v745, 0
  %v941 = vsel %vm837, %v746, 0
  %v944 = vsel %vm837, %v747, 0
  %v947 = vsel %vm837, %v748, 0
  %v950 = vsel %vm837, %v749, 0
  %v953 = vsel %vm837, %v750, 0
  %v956 = vsel %vm837, %v751, 0
  %v959 = vsel %vm837, %v752, 0
  %v962 = vsel %vm837, %v753, 0
  %v965 = vsel %vm837, %v754, 0
  %v968 = vsel %vm837, %v755, 0
  %v971 = vsel %vm837, %v756, 0
  %v974 = vsel %vm837, %v757, 0
  %v977 = vsel %vm837, %v758, 0
  %v980 = vsel %vm837, %v759, 0
  %v983 = vsel %vm837, %v760, 0
  %v986 = vsel %vm837, %v761, 0
  %v989 = vsel %vm837, %v762, 0
  %v992 = vsel %vm837, %v763, 0
  %v995 = vsel %vm837, %v764, 0
  %v998 = vsel %vm837, %v765, 0
  %v1001 = vsel %vm837, %v766, 0
  %v1004 = vsel %vm837, %v767, 0
  %v1007 = vsel %vm837, %v768, 0
  %v1010 = vsel %vm837, %v769, 0
  %v1013 = vsel %vm837, %v770, 0
  %v1016 = vsel %vm837, %v771, 0
  %v1019 = vsel %vm837, %v772, 0
  %v1022 = vsel %vm837, %v773, 0
  %v1025 = vsel %vm837, %v774, 0
  %v1028 = vsel %vm837, %v775, 0
  %v1031 = vsel %vm837, %v776, 0
  %v1034 = vsel %vm837, %v777, 0
  %v1037 = vsel %vm837, %v778, 0
  %v1040 = vsel %vm837, %v779, 0
  %v1043 = vsel %vm837, %v780, 0
  %v1046 = vsel %vm837, %v781, 0
  %v1049 = vsel %vm837, %v782, 0
  %v1052 = vsel %vm837, %v783, 0
  %v1055 = vsel %vm837, %v784, 0
  %v1058 = vsel %vm837, %v785, 0
  %v1061 = vsel %vm837, %v786, 0
  %v1064 = vsel %vm837, %v787, 0
  %v1067 = vsel %vm837, %v788, 0
  %v1070 = vsel %vm837, %v789, 0
  %v1073 = vsel %vm837, %v790, 0
  %v1076 = vsel %vm837, %v791, 0
  %v1079 = vsel %vm837, %v792, 0
  %v1082 = vsel %vm837, %v793, 0
  %v1085 = vsel %vm837, %v794, 0
  %v1088 = vsel %vm837, %v795, 0
  %v1091 = vsel %vm837, %v796, 0
  %v1094 = vsel %vm837, %v797, 0
  %v1097 = vsel %vm837, %v798, 0
  %v1100 = vsel %vm837, %v799, 0
  %v1103 = vsel %vm837, %v800, 0
  %v1106 = vsel %vm837, %v801, 0
  %v1109 = vsel %vm837, %v802, 0
  %v1112 = vsel %vm837, %v803, 0
  %v1115 = vsel %vm837, %v804, 0
  %v1118 = vsel %vm837, %v805, 0
  %v1121 = vsel %vm837, %v806, 0
  %v1124 = vsel %vm837, %v807, 0
  %v1127 = vsel %vm837, %v808, 0
  %v1130 = vsel %vm837, %v809, 0
  %v1133 = vsel %vm837, %v810, 0
  %v1136 = vsel %vm837, %v811, 0
  %v1139 = vsel %vm837, %v812, 0
  %v1142 = vsel %vm837, %v813, 0
  %v1145 = vsel %vm837, %v814, 0
  %v1148 = vsel %vm837, %v815, 0
  %v1151 = vsel %vm837, %v816, 0
  %v1154 = vsel %vm837, %v817, 0
  %v1157 = vsel %vm837, %v818, 0
  %v1160 = vsel %vm837, %v819, 0
  %v1163 = vsel %vm837, %v820, 0
  %v1166 = vsel %vm837, %v821, 0
  %v1169 = vsel %vm837, %v822, 0
  %v1172 = vsel %vm837, %v823, 0
  %v1175 = vsel %vm837, %v824, 0
  %v1178 = vsel %vm837, %v825, 0
  %vm1180 = vcmask 1044480
  %vm1181 = vcmask 1045504
  %v1182 = vsel %vm1180, 4294967295, 65535
  %v1183 = vsel %vm1181, %v1182, 0
  %v1185 = vand.u32 %v835, %v1183
  %1187 = vmatprep.subr.bf16.mxu0 0
  %1188 = vmatpush1.bf16.msra.mxu0 %v834
  %1189 = vmatprep.subr.bf16.mxu0 0
  %1190 = vmatpush1.bf16.msra.mxu0 %v1185
  %1191 = vmatprep.subr.bf16.mxu0 0
  %1192 = vmatpush1.bf16.msra.mxu0 0
  %1193 = vmatprep.subr.bf16.mxu0 0
  %1194 = vmatpush1.bf16.msra.mxu0 0
  %1195 = vmatprep.subr.bf16.mxu0 0
  %1196 = vmatpush1.bf16.msra.mxu0 0
  %1197 = vmatprep.subr.bf16.mxu0 0
  %1198 = vmatpush1.bf16.msra.mxu0 0
  %1199 = vmatprep.subr.bf16.mxu0 0
  %1200 = vmatpush1.bf16.msra.mxu0 0
  %1201 = vmatprep.subr.bf16.mxu0 0
  %1202 = vmatpush1.bf16.msra.mxu0 0
  %1203 = vmatprep.subr.bf16.mxu0 0
  %1204 = vmatpush1.bf16.msra.mxu0 0
  %1205 = vmatprep.subr.bf16.mxu0 0
  %1206 = vmatpush1.bf16.msra.mxu0 0
  %1207 = vmatprep.subr.bf16.mxu0 0
  %1208 = vmatpush1.bf16.msra.mxu0 0
  %1209 = vmatprep.subr.bf16.mxu0 0
  %1210 = vmatpush1.bf16.msra.mxu0 0
  %1211 = vmatprep.subr.bf16.mxu0 0
  %1212 = vmatpush1.bf16.msra.mxu0 0
  %1213 = vmatprep.subr.bf16.mxu0 0
  %1214 = vmatpush1.bf16.msra.mxu0 0
  %1215 = vmatprep.subr.bf16.mxu0 0
  %1216 = vmatpush1.bf16.msra.mxu0 0
  %1217 = vmatprep.subr.bf16.mxu0 0
  %1218 = vmatpush1.bf16.msra.mxu0 0
  %1219 = vmatprep.mubr.bf16.mxu0 0
  %1220 = vmatmul.mubr.bf16.gmra.mrb[0].mxu0 %v839
  %v1221 = vpop.f32.mrb[0].mxu0
  %v1222 = vadd.f32 0.0, %v1221
  %v1223 = vpop.f32.mrb[0].mxu0
  %v1224 = vpop.f32.mrb[0].mxu0
  %v1225 = vadd.f32 0.0, %v1224
  %v1226 = vpop.f32.mrb[0].mxu0
  %1227 = vmatprep.mubr.bf16.mxu0 0
  %1228 = vmatmul.mubr.bf16.gmra.mrb[0].mxu0 %v842
  %v1229 = vpop.f32.mrb[0].mxu0
  %v1230 = vadd.f32 0.0, %v1229
  %v1231 = vpop.f32.mrb[0].mxu0
  %v1232 = vpop.f32.mrb[0].mxu0
  %v1233 = vadd.f32 0.0, %v1232
  %v1234 = vpop.f32.mrb[0].mxu0
  %1235 = vmatprep.mubr.bf16.mxu0 0
  %1236 = vmatmul.mubr.bf16.gmra.mrb[0].mxu0 %v845
  %v1237 = vpop.f32.mrb[0].mxu0
  %v1238 = vadd.f32 0.0, %v1237
  %v1239 = vpop.f32.mrb[0].mxu0
  %v1240 = vpop.f32.mrb[0].mxu0
  %v1241 = vadd.f32 0.0, %v1240
  %v1242 = vpop.f32.mrb[0].mxu0
  %1243 = vmatprep.mubr.bf16.mxu0 0
  %1244 = vmatmul.mubr.bf16.gmra.mrb[0].mxu0 %v848
  %v1245 = vpop.f32.mrb[0].mxu0
  %v1246 = vadd.f32 0.0, %v1245
  %v1247 = vpop.f32.mrb[0].mxu0
  %v1248 = vpop.f32.mrb[0].mxu0
  %v1249 = vadd.f32 0.0, %v1248
  %v1250 = vpop.f32.mrb[0].mxu0
  %1251 = vmatprep.mubr.bf16.mxu0 0
  %1252 = vmatmul.mubr.bf16.gmra.mrb[0].mxu0 %v851
  %v1253 = vpop.f32.mrb[0].mxu0
  %v1254 = vadd.f32 0.0, %v1253
  %v1255 = vpop.f32.mrb[0].mxu0
  %v1256 = vpop.f32.mrb[0].mxu0
  %v1257 = vadd.f32 0.0, %v1256
  %v1258 = vpop.f32.mrb[0].mxu0
  %1259 = vmatprep.mubr.bf16.mxu0 0
  %1260 = vmatmul.mubr.bf16.gmra.mrb[0].mxu0 %v854
  %v1261 = vpop.f32.mrb[0].mxu0
  %v1262 = vadd.f32 0.0, %v1261
  %v1263 = vpop.f32.mrb[0].mxu0
  %v1264 = vpop.f32.mrb[0].mxu0
  %v1265 = vadd.f32 0.0, %v1264
  %v1266 = vpop.f32.mrb[0].mxu0
  %1267 = vmatprep.mubr.bf16.mxu0 0
  %1268 = vmatmul.mubr.bf16.gmra.mrb[0].mxu0 %v857
  %v1269 = vpop.f32.mrb[0].mxu0
  %v1270 = vadd.f32 0.0, %v1269
  %v1271 = vpop.f32.mrb[0].mxu0
  %v1272 = vpop.f32.mrb[0].mxu0
  %v1273 = vadd.f32 0.0, %v1272
  %v1274 = vpop.f32.mrb[0].mxu0
  %1275 = vmatprep.mubr.bf16.mxu0 0
  %1276 = vmatmul.mubr.bf16.gmra.mrb[0].mxu0 %v860
  %v1277 = vpop.f32.mrb[0].mxu0
  %v1278 = vadd.f32 0.0, %v1277
  %v1279 = vpop.f32.mrb[0].mxu0
  %v1280 = vpop.f32.mrb[0].mxu0
  %v1281 = vadd.f32 0.0, %v1280
  %v1282 = vpop.f32.mrb[0].mxu0
  %1283 = vmatprep.mubr.bf16.mxu0 0
  %1284 = vmatmul.mubr.bf16.gmra.mrb[0].mxu0 %v863
  %v1285 = vpop.f32.mrb[0].mxu0
  %v1286 = vadd.f32 0.0, %v1285
  %v1287 = vpop.f32.mrb[0].mxu0
  %v1288 = vpop.f32.mrb[0].mxu0
  %v1289 = vadd.f32 0.0, %v1288
  %v1290 = vpop.f32.mrb[0].mxu0
  %1291 = vmatprep.mubr.bf16.mxu0 0
  %1292 = vmatmul.mubr.bf16.gmra.mrb[0].mxu0 %v866
  %v1293 = vpop.f32.mrb[0].mxu0
  %v1294 = vadd.f32 0.0, %v1293
  %v1295 = vpop.f32.mrb[0].mxu0
  %v1296 = vpop.f32.mrb[0].mxu0
  %v1297 = vadd.f32 0.0, %v1296
  %v1298 = vpop.f32.mrb[0].mxu0
  %1299 = vmatprep.mubr.bf16.mxu0 0
  %1300 = vmatmul.mubr.bf16.gmra.mrb[0].mxu0 %v869
  %v1301 = vpop.f32.mrb[0].mxu0
  %v1302 = vadd.f32 0.0, %v1301
  %v1303 = vpop.f32.mrb[0].mxu0
  %v1304 = vpop.f32.mrb[0].mxu0
  %v1305 = vadd.f32 0.0, %v1304
  %v1306 = vpop.f32.mrb[0].mxu0
  %1307 = vmatprep.mubr.bf16.mxu0 0
  %1308 = vmatmul.mubr.bf16.gmra.mrb[0].mxu0 %v872
  %v1309 = vpop.f32.mrb[0].mxu0
  %v1310 = vadd.f32 0.0, %v1309
  %v1311 = vpop.f32.mrb[0].mxu0
  %v1312 = vpop.f32.mrb[0].mxu0
  %v1313 = vadd.f32 0.0, %v1312
  %v1314 = vpop.f32.mrb[0].mxu0
  %1315 = vmatprep.mubr.bf16.mxu0 0
  %1316 = vmatmul.mubr.bf16.gmra.mrb[0].mxu0 %v875
  %v1317 = vpop.f32.mrb[0].mxu0
  %v1318 = vadd.f32 0.0, %v1317
  %v1319 = vpop.f32.mrb[0].mxu0
  %v1320 = vpop.f32.mrb[0].mxu0
  %v1321 = vadd.f32 0.0, %v1320
  %v1322 = vpop.f32.mrb[0].mxu0
  %1323 = vmatprep.mubr.bf16.mxu0 0
  %1324 = vmatmul.mubr.bf16.gmra.mrb[0].mxu0 %v878
  %v1325 = vpop.f32.mrb[0].mxu0
  %v1326 = vadd.f32 0.0, %v1325
  %v1327 = vpop.f32.mrb[0].mxu0
  %v1328 = vpop.f32.mrb[0].mxu0
  %v1329 = vadd.f32 0.0, %v1328
  %v1330 = vpop.f32.mrb[0].mxu0
  %1331 = vmatprep.mubr.bf16.mxu0 0
  %1332 = vmatmul.mubr.bf16.gmra.mrb[0].mxu0 %v881
  %v1333 = vpop.f32.mrb[0].mxu0
  %v1334 = vadd.f32 0.0, %v1333
  %v1335 = vpop.f32.mrb[0].mxu0
  %v1336 = vpop.f32.mrb[0].mxu0
  %v1337 = vadd.f32 0.0, %v1336
  %v1338 = vpop.f32.mrb[0].mxu0
  %1339 = vmatprep.mubr.bf16.mxu0 0
  %1340 = vmatmul.mubr.bf16.gmra.mrb[0].mxu0 %v884
  %v1341 = vpop.f32.mrb[0].mxu0
  %v1342 = vadd.f32 0.0, %v1341
  %v1343 = vpop.f32.mrb[0].mxu0
  %v1344 = vpop.f32.mrb[0].mxu0
  %v1345 = vadd.f32 0.0, %v1344
  %v1346 = vpop.f32.mrb[0].mxu0
  %1347 = vmatprep.mubr.bf16.mxu0 0
  %1348 = vmatmul.mubr.bf16.gmra.mrb[0].mxu0 %v887
  %v1349 = vpop.f32.mrb[0].mxu0
  %v1350 = vadd.f32 0.0, %v1349
  %v1351 = vpop.f32.mrb[0].mxu0
  %v1352 = vpop.f32.mrb[0].mxu0
  %v1353 = vadd.f32 0.0, %v1352
  %v1354 = vpop.f32.mrb[0].mxu0
  %1355 = vmatprep.mubr.bf16.mxu0 0
  %1356 = vmatmul.mubr.bf16.gmra.mrb[0].mxu0 %v890
  %v1357 = vpop.f32.mrb[0].mxu0
  %v1358 = vadd.f32 0.0, %v1357
  %v1359 = vpop.f32.mrb[0].mxu0
  %v1360 = vpop.f32.mrb[0].mxu0
  %v1361 = vadd.f32 0.0, %v1360
  %v1362 = vpop.f32.mrb[0].mxu0
  %1363 = vmatprep.mubr.bf16.mxu0 0
  %1364 = vmatmul.mubr.bf16.gmra.mrb[0].mxu0 %v893
  %v1365 = vpop.f32.mrb[0].mxu0
  %v1366 = vadd.f32 0.0, %v1365
  %v1367 = vpop.f32.mrb[0].mxu0
  %v1368 = vpop.f32.mrb[0].mxu0
  %v1369 = vadd.f32 0.0, %v1368
  %v1370 = vpop.f32.mrb[0].mxu0
  %1371 = vmatprep.mubr.bf16.mxu0 0
  %1372 = vmatmul.mubr.bf16.gmra.mrb[0].mxu0 %v896
  %v1373 = vpop.f32.mrb[0].mxu0
  %v1374 = vadd.f32 0.0, %v1373
  %v1375 = vpop.f32.mrb[0].mxu0
  %v1376 = vpop.f32.mrb[0].mxu0
  %v1377 = vadd.f32 0.0, %v1376
  %v1378 = vpop.f32.mrb[0].mxu0
  %1379 = vmatprep.mubr.bf16.mxu0 0
  %1380 = vmatmul.mubr.bf16.gmra.mrb[0].mxu0 %v899
  %v1381 = vpop.f32.mrb[0].mxu0
  %v1382 = vadd.f32 0.0, %v1381
  %v1383 = vpop.f32.mrb[0].mxu0
  %v1384 = vpop.f32.mrb[0].mxu0
  %v1385 = vadd.f32 0.0, %v1384
  %v1386 = vpop.f32.mrb[0].mxu0
  %1387 = vmatprep.mubr.bf16.mxu0 0
  %1388 = vmatmul.mubr.bf16.gmra.mrb[0].mxu0 %v902
  %v1389 = vpop.f32.mrb[0].mxu0
  %v1390 = vadd.f32 0.0, %v1389
  %v1391 = vpop.f32.mrb[0].mxu0
  %v1392 = vpop.f32.mrb[0].mxu0
  %v1393 = vadd.f32 0.0, %v1392
  %v1394 = vpop.f32.mrb[0].mxu0
  %1395 = vmatprep.mubr.bf16.mxu0 0
  %1396 = vmatmul.mubr.bf16.gmra.mrb[0].mxu0 %v905
  %v1397 = vpop.f32.mrb[0].mxu0
  %v1398 = vadd.f32 0.0, %v1397
  %v1399 = vpop.f32.mrb[0].mxu0
  %v1400 = vpop.f32.mrb[0].mxu0
  %v1401 = vadd.f32 0.0, %v1400
  %v1402 = vpop.f32.mrb[0].mxu0
  %1403 = vmatprep.mubr.bf16.mxu0 0
  %1404 = vmatmul.mubr.bf16.gmra.mrb[0].mxu0 %v908
  %v1405 = vpop.f32.mrb[0].mxu0
  %v1406 = vadd.f32 0.0, %v1405
  %v1407 = vpop.f32.mrb[0].mxu0
  %v1408 = vpop.f32.mrb[0].mxu0
  %v1409 = vadd.f32 0.0, %v1408
  %v1410 = vpop.f32.mrb[0].mxu0
  %1411 = vmatprep.mubr.bf16.mxu0 0
  %1412 = vmatmul.mubr.bf16.gmra.mrb[0].mxu0 %v911
  %v1413 = vpop.f32.mrb[0].mxu0
  %v1414 = vadd.f32 0.0, %v1413
  %v1415 = vpop.f32.mrb[0].mxu0
  %v1416 = vpop.f32.mrb[0].mxu0
  %v1417 = vadd.f32 0.0, %v1416
  %v1418 = vpop.f32.mrb[0].mxu0
  %1419 = vmatprep.mubr.bf16.mxu0 0
  %1420 = vmatmul.mubr.bf16.gmra.mrb[0].mxu0 %v914
  %v1421 = vpop.f32.mrb[0].mxu0
  %v1422 = vadd.f32 0.0, %v1421
  %v1423 = vpop.f32.mrb[0].mxu0
  %v1424 = vpop.f32.mrb[0].mxu0
  %v1425 = vadd.f32 0.0, %v1424
  %v1426 = vpop.f32.mrb[0].mxu0
  %1427 = vmatprep.mubr.bf16.mxu0 0
  %1428 = vmatmul.mubr.bf16.gmra.mrb[0].mxu0 %v917
  %v1429 = vpop.f32.mrb[0].mxu0
  %v1430 = vadd.f32 0.0, %v1429
  %v1431 = vpop.f32.mrb[0].mxu0
  %v1432 = vpop.f32.mrb[0].mxu0
  %v1433 = vadd.f32 0.0, %v1432
  %v1434 = vpop.f32.mrb[0].mxu0
  %1435 = vmatprep.mubr.bf16.mxu0 0
  %1436 = vmatmul.mubr.bf16.gmra.mrb[0].mxu0 %v920
  %v1437 = vpop.f32.mrb[0].mxu0
  %v1438 = vadd.f32 0.0, %v1437
  %v1439 = vpop.f32.mrb[0].mxu0
  %v1440 = vpop.f32.mrb[0].mxu0
  %v1441 = vadd.f32 0.0, %v1440
  %v1442 = vpop.f32.mrb[0].mxu0
  %1443 = vmatprep.mubr.bf16.mxu0 0
  %1444 = vmatmul.mubr.bf16.gmra.mrb[0].mxu0 %v923
  %v1445 = vpop.f32.mrb[0].mxu0
  %v1446 = vadd.f32 0.0, %v1445
  %v1447 = vpop.f32.mrb[0].mxu0
  %v1448 = vpop.f32.mrb[0].mxu0
  %v1449 = vadd.f32 0.0, %v1448
  %v1450 = vpop.f32.mrb[0].mxu0
  %1451 = vmatprep.mubr.bf16.mxu0 0
  %1452 = vmatmul.mubr.bf16.gmra.mrb[0].mxu0 %v926
  %v1453 = vpop.f32.mrb[0].mxu0
  %v1454 = vadd.f32 0.0, %v1453
  %v1455 = vpop.f32.mrb[0].mxu0
  %v1456 = vpop.f32.mrb[0].mxu0
  %v1457 = vadd.f32 0.0, %v1456
  %v1458 = vpop.f32.mrb[0].mxu0
  %1459 = vmatprep.mubr.bf16.mxu0 0
  %1460 = vmatmul.mubr.bf16.gmra.mrb[0].mxu0 %v929
  %v1461 = vpop.f32.mrb[0].mxu0
  %v1462 = vadd.f32 0.0, %v1461
  %v1463 = vpop.f32.mrb[0].mxu0
  %v1464 = vpop.f32.mrb[0].mxu0
  %v1465 = vadd.f32 0.0, %v1464
  %v1466 = vpop.f32.mrb[0].mxu0
  %1467 = vmatprep.mubr.bf16.mxu0 0
  %1468 = vmatmul.mubr.bf16.gmra.mrb[0].mxu0 %v932
  %v1469 = vpop.f32.mrb[0].mxu0
  %v1470 = vadd.f32 0.0, %v1469
  %v1471 = vpop.f32.mrb[0].mxu0
  %v1472 = vpop.f32.mrb[0].mxu0
  %v1473 = vadd.f32 0.0, %v1472
  %v1474 = vpop.f32.mrb[0].mxu0
  %1475 = vmatprep.mubr.bf16.mxu0 0
  %1476 = vmatmul.mubr.bf16.gmra.mrb[0].mxu0 %v935
  %v1477 = vpop.f32.mrb[0].mxu0
  %v1478 = vadd.f32 0.0, %v1477
  %v1479 = vpop.f32.mrb[0].mxu0
  %v1480 = vpop.f32.mrb[0].mxu0
  %v1481 = vadd.f32 0.0, %v1480
  %v1482 = vpop.f32.mrb[0].mxu0
  %1483 = vmatprep.mubr.bf16.mxu0 0
  %1484 = vmatmul.mubr.bf16.gmra.mrb[0].mxu0 %v938
  %v1485 = vpop.f32.mrb[0].mxu0
  %v1486 = vadd.f32 0.0, %v1485
  %v1487 = vpop.f32.mrb[0].mxu0
  %v1488 = vpop.f32.mrb[0].mxu0
  %v1489 = vadd.f32 0.0, %v1488
  %v1490 = vpop.f32.mrb[0].mxu0
  %1491 = vmatprep.mubr.bf16.mxu0 0
  %1492 = vmatmul.mubr.bf16.gmra.mrb[0].mxu0 %v941
  %v1493 = vpop.f32.mrb[0].mxu0
  %v1494 = vadd.f32 0.0, %v1493
  %v1495 = vpop.f32.mrb[0].mxu0
  %v1496 = vpop.f32.mrb[0].mxu0
  %v1497 = vadd.f32 0.0, %v1496
  %v1498 = vpop.f32.mrb[0].mxu0
  %1499 = vmatprep.mubr.bf16.mxu0 0
  %1500 = vmatmul.mubr.bf16.gmra.mrb[0].mxu0 %v944
  %v1501 = vpop.f32.mrb[0].mxu0
  %v1502 = vadd.f32 0.0, %v1501
  %v1503 = vpop.f32.mrb[0].mxu0
  %v1504 = vpop.f32.mrb[0].mxu0
  %v1505 = vadd.f32 0.0, %v1504
  %v1506 = vpop.f32.mrb[0].mxu0
  %1507 = vmatprep.mubr.bf16.mxu0 0
  %1508 = vmatmul.mubr.bf16.gmra.mrb[0].mxu0 %v947
  %v1509 = vpop.f32.mrb[0].mxu0
  %v1510 = vadd.f32 0.0, %v1509
  %v1511 = vpop.f32.mrb[0].mxu0
  %v1512 = vpop.f32.mrb[0].mxu0
  %v1513 = vadd.f32 0.0, %v1512
  %v1514 = vpop.f32.mrb[0].mxu0
  %1515 = vmatprep.mubr.bf16.mxu0 0
  %1516 = vmatmul.mubr.bf16.gmra.mrb[0].mxu0 %v950
  %v1517 = vpop.f32.mrb[0].mxu0
  %v1518 = vadd.f32 0.0, %v1517
  %v1519 = vpop.f32.mrb[0].mxu0
  %v1520 = vpop.f32.mrb[0].mxu0
  %v1521 = vadd.f32 0.0, %v1520
  %v1522 = vpop.f32.mrb[0].mxu0
  %1523 = vmatprep.mubr.bf16.mxu0 0
  %1524 = vmatmul.mubr.bf16.gmra.mrb[0].mxu0 %v953
  %v1525 = vpop.f32.mrb[0].mxu0
  %v1526 = vadd.f32 0.0, %v1525
  %v1527 = vpop.f32.mrb[0].mxu0
  %v1528 = vpop.f32.mrb[0].mxu0
  %v1529 = vadd.f32 0.0, %v1528
  %v1530 = vpop.f32.mrb[0].mxu0
  %1531 = vmatprep.mubr.bf16.mxu0 0
  %1532 = vmatmul.mubr.bf16.gmra.mrb[0].mxu0 %v956
  %v1533 = vpop.f32.mrb[0].mxu0
  %v1534 = vadd.f32 0.0, %v1533
  %v1535 = vpop.f32.mrb[0].mxu0
  %v1536 = vpop.f32.mrb[0].mxu0
  %v1537 = vadd.f32 0.0, %v1536
  %v1538 = vpop.f32.mrb[0].mxu0
  %1539 = vmatprep.mubr.bf16.mxu0 0
  %1540 = vmatmul.mubr.bf16.gmra.mrb[0].mxu0 %v959
  %v1541 = vpop.f32.mrb[0].mxu0
  %v1542 = vadd.f32 0.0, %v1541
  %v1543 = vpop.f32.mrb[0].mxu0
  %v1544 = vpop.f32.mrb[0].mxu0
  %v1545 = vadd.f32 0.0, %v1544
  %v1546 = vpop.f32.mrb[0].mxu0
  %1547 = vmatprep.mubr.bf16.mxu0 0
  %1548 = vmatmul.mubr.bf16.gmra.mrb[0].mxu0 %v962
  %v1549 = vpop.f32.mrb[0].mxu0
  %v1550 = vadd.f32 0.0, %v1549
  %v1551 = vpop.f32.mrb[0].mxu0
  %v1552 = vpop.f32.mrb[0].mxu0
  %v1553 = vadd.f32 0.0, %v1552
  %v1554 = vpop.f32.mrb[0].mxu0
  %1555 = vmatprep.mubr.bf16.mxu0 0
  %1556 = vmatmul.mubr.bf16.gmra.mrb[0].mxu0 %v965
  %v1557 = vpop.f32.mrb[0].mxu0
  %v1558 = vadd.f32 0.0, %v1557
  %v1559 = vpop.f32.mrb[0].mxu0
  %v1560 = vpop.f32.mrb[0].mxu0
  %v1561 = vadd.f32 0.0, %v1560
  %v1562 = vpop.f32.mrb[0].mxu0
  %1563 = vmatprep.mubr.bf16.mxu0 0
  %1564 = vmatmul.mubr.bf16.gmra.mrb[0].mxu0 %v968
  %v1565 = vpop.f32.mrb[0].mxu0
  %v1566 = vadd.f32 0.0, %v1565
  %v1567 = vpop.f32.mrb[0].mxu0
  %v1568 = vpop.f32.mrb[0].mxu0
  %v1569 = vadd.f32 0.0, %v1568
  %v1570 = vpop.f32.mrb[0].mxu0
  %1571 = vmatprep.mubr.bf16.mxu0 0
  %1572 = vmatmul.mubr.bf16.gmra.mrb[0].mxu0 %v971
  %v1573 = vpop.f32.mrb[0].mxu0
  %v1574 = vadd.f32 0.0, %v1573
  %v1575 = vpop.f32.mrb[0].mxu0
  %v1576 = vpop.f32.mrb[0].mxu0
  %v1577 = vadd.f32 0.0, %v1576
  %v1578 = vpop.f32.mrb[0].mxu0
  %1579 = vmatprep.mubr.bf16.mxu0 0
  %1580 = vmatmul.mubr.bf16.gmra.mrb[0].mxu0 %v974
  %v1581 = vpop.f32.mrb[0].mxu0
  %v1582 = vadd.f32 0.0, %v1581
  %v1583 = vpop.f32.mrb[0].mxu0
  %v1584 = vpop.f32.mrb[0].mxu0
  %v1585 = vadd.f32 0.0, %v1584
  %v1586 = vpop.f32.mrb[0].mxu0
  %1587 = vmatprep.mubr.bf16.mxu0 0
  %1588 = vmatmul.mubr.bf16.gmra.mrb[0].mxu0 %v977
  %v1589 = vpop.f32.mrb[0].mxu0
  %v1590 = vadd.f32 0.0, %v1589
  %v1591 = vpop.f32.mrb[0].mxu0
  %v1592 = vpop.f32.mrb[0].mxu0
  %v1593 = vadd.f32 0.0, %v1592
  %v1594 = vpop.f32.mrb[0].mxu0
  %1595 = vmatprep.mubr.bf16.mxu0 0
  %1596 = vmatmul.mubr.bf16.gmra.mrb[0].mxu0 %v980
  %v1597 = vpop.f32.mrb[0].mxu0
  %v1598 = vadd.f32 0.0, %v1597
  %v1599 = vpop.f32.mrb[0].mxu0
  %v1600 = vpop.f32.mrb[0].mxu0
  %v1601 = vadd.f32 0.0, %v1600
  %v1602 = vpop.f32.mrb[0].mxu0
  %1603 = vmatprep.mubr.bf16.mxu0 0
  %1604 = vmatmul.mubr.bf16.gmra.mrb[0].mxu0 %v983
  %v1605 = vpop.f32.mrb[0].mxu0
  %v1606 = vadd.f32 0.0, %v1605
  %v1607 = vpop.f32.mrb[0].mxu0
  %v1608 = vpop.f32.mrb[0].mxu0
  %v1609 = vadd.f32 0.0, %v1608
  %v1610 = vpop.f32.mrb[0].mxu0
  %1611 = vmatprep.mubr.bf16.mxu0 0
  %1612 = vmatmul.mubr.bf16.gmra.mrb[0].mxu0 %v986
  %v1613 = vpop.f32.mrb[0].mxu0
  %v1614 = vadd.f32 0.0, %v1613
  %v1615 = vpop.f32.mrb[0].mxu0
  %v1616 = vpop.f32.mrb[0].mxu0
  %v1617 = vadd.f32 0.0, %v1616
  %v1618 = vpop.f32.mrb[0].mxu0
  %1619 = vmatprep.mubr.bf16.mxu0 0
  %1620 = vmatmul.mubr.bf16.gmra.mrb[0].mxu0 %v989
  %v1621 = vpop.f32.mrb[0].mxu0
  %v1622 = vadd.f32 0.0, %v1621
  %v1623 = vpop.f32.mrb[0].mxu0
  %v1624 = vpop.f32.mrb[0].mxu0
  %v1625 = vadd.f32 0.0, %v1624
  %v1626 = vpop.f32.mrb[0].mxu0
  %1627 = vmatprep.mubr.bf16.mxu0 0
  %1628 = vmatmul.mubr.bf16.gmra.mrb[0].mxu0 %v992
  %v1629 = vpop.f32.mrb[0].mxu0
  %v1630 = vadd.f32 0.0, %v1629
  %v1631 = vpop.f32.mrb[0].mxu0
  %v1632 = vpop.f32.mrb[0].mxu0
  %v1633 = vadd.f32 0.0, %v1632
  %v1634 = vpop.f32.mrb[0].mxu0
  %1635 = vmatprep.mubr.bf16.mxu0 0
  %1636 = vmatmul.mubr.bf16.gmra.mrb[0].mxu0 %v995
  %v1637 = vpop.f32.mrb[0].mxu0
  %v1638 = vadd.f32 0.0, %v1637
  %v1639 = vpop.f32.mrb[0].mxu0
  %v1640 = vpop.f32.mrb[0].mxu0
  %v1641 = vadd.f32 0.0, %v1640
  %v1642 = vpop.f32.mrb[0].mxu0
  %1643 = vmatprep.mubr.bf16.mxu0 0
  %1644 = vmatmul.mubr.bf16.gmra.mrb[0].mxu0 %v998
  %v1645 = vpop.f32.mrb[0].mxu0
  %v1646 = vadd.f32 0.0, %v1645
  %v1647 = vpop.f32.mrb[0].mxu0
  %v1648 = vpop.f32.mrb[0].mxu0
  %v1649 = vadd.f32 0.0, %v1648
  %v1650 = vpop.f32.mrb[0].mxu0
  %1651 = vmatprep.mubr.bf16.mxu0 0
  %1652 = vmatmul.mubr.bf16.gmra.mrb[0].mxu0 %v1001
  %v1653 = vpop.f32.mrb[0].mxu0
  %v1654 = vadd.f32 0.0, %v1653
  %v1655 = vpop.f32.mrb[0].mxu0
  %v1656 = vpop.f32.mrb[0].mxu0
  %v1657 = vadd.f32 0.0, %v1656
  %v1658 = vpop.f32.mrb[0].mxu0
  %1659 = vmatprep.mubr.bf16.mxu0 0
  %1660 = vmatmul.mubr.bf16.gmra.mrb[0].mxu0 %v1004
  %v1661 = vpop.f32.mrb[0].mxu0
  %v1662 = vadd.f32 0.0, %v1661
  %v1663 = vpop.f32.mrb[0].mxu0
  %v1664 = vpop.f32.mrb[0].mxu0
  %v1665 = vadd.f32 0.0, %v1664
  %v1666 = vpop.f32.mrb[0].mxu0
  %1667 = vmatprep.mubr.bf16.mxu0 0
  %1668 = vmatmul.mubr.bf16.gmra.mrb[0].mxu0 %v1007
  %v1669 = vpop.f32.mrb[0].mxu0
  %v1670 = vadd.f32 0.0, %v1669
  %v1671 = vpop.f32.mrb[0].mxu0
  %v1672 = vpop.f32.mrb[0].mxu0
  %v1673 = vadd.f32 0.0, %v1672
  %v1674 = vpop.f32.mrb[0].mxu0
  %1675 = vmatprep.mubr.bf16.mxu0 0
  %1676 = vmatmul.mubr.bf16.gmra.mrb[0].mxu0 %v1010
  %v1677 = vpop.f32.mrb[0].mxu0
  %v1678 = vadd.f32 0.0, %v1677
  %v1679 = vpop.f32.mrb[0].mxu0
  %v1680 = vpop.f32.mrb[0].mxu0
  %v1681 = vadd.f32 0.0, %v1680
  %v1682 = vpop.f32.mrb[0].mxu0
  %1683 = vmatprep.mubr.bf16.mxu0 0
  %1684 = vmatmul.mubr.bf16.gmra.mrb[0].mxu0 %v1013
  %v1685 = vpop.f32.mrb[0].mxu0
  %v1686 = vadd.f32 0.0, %v1685
  %v1687 = vpop.f32.mrb[0].mxu0
  %v1688 = vpop.f32.mrb[0].mxu0
  %v1689 = vadd.f32 0.0, %v1688
  %v1690 = vpop.f32.mrb[0].mxu0
  %1691 = vmatprep.mubr.bf16.mxu0 0
  %1692 = vmatmul.mubr.bf16.gmra.mrb[0].mxu0 %v1016
  %v1693 = vpop.f32.mrb[0].mxu0
  %v1694 = vadd.f32 0.0, %v1693
  %v1695 = vpop.f32.mrb[0].mxu0
  %v1696 = vpop.f32.mrb[0].mxu0
  %v1697 = vadd.f32 0.0, %v1696
  %v1698 = vpop.f32.mrb[0].mxu0
  %1699 = vmatprep.mubr.bf16.mxu0 0
  %1700 = vmatmul.mubr.bf16.gmra.mrb[0].mxu0 %v1019
  %v1701 = vpop.f32.mrb[0].mxu0
  %v1702 = vadd.f32 0.0, %v1701
  %v1703 = vpop.f32.mrb[0].mxu0
  %v1704 = vpop.f32.mrb[0].mxu0
  %v1705 = vadd.f32 0.0, %v1704
  %v1706 = vpop.f32.mrb[0].mxu0
  %1707 = vmatprep.mubr.bf16.mxu0 0
  %1708 = vmatmul.mubr.bf16.gmra.mrb[0].mxu0 %v1022
  %v1709 = vpop.f32.mrb[0].mxu0
  %v1710 = vadd.f32 0.0, %v1709
  %v1711 = vpop.f32.mrb[0].mxu0
  %v1712 = vpop.f32.mrb[0].mxu0
  %v1713 = vadd.f32 0.0, %v1712
  %v1714 = vpop.f32.mrb[0].mxu0
  %1715 = vmatprep.mubr.bf16.mxu0 0
  %1716 = vmatmul.mubr.bf16.gmra.mrb[0].mxu0 %v1025
  %v1717 = vpop.f32.mrb[0].mxu0
  %v1718 = vadd.f32 0.0, %v1717
  %v1719 = vpop.f32.mrb[0].mxu0
  %v1720 = vpop.f32.mrb[0].mxu0
  %v1721 = vadd.f32 0.0, %v1720
  %v1722 = vpop.f32.mrb[0].mxu0
  %1723 = vmatprep.mubr.bf16.mxu0 0
  %1724 = vmatmul.mubr.bf16.gmra.mrb[0].mxu0 %v1028
  %v1725 = vpop.f32.mrb[0].mxu0
  %v1726 = vadd.f32 0.0, %v1725
  %v1727 = vpop.f32.mrb[0].mxu0
  %v1728 = vpop.f32.mrb[0].mxu0
  %v1729 = vadd.f32 0.0, %v1728
  %v1730 = vpop.f32.mrb[0].mxu0
  %1731 = vmatprep.mubr.bf16.mxu0 0
  %1732 = vmatmul.mubr.bf16.gmra.mrb[0].mxu0 %v1031
  %v1733 = vpop.f32.mrb[0].mxu0
  %v1734 = vadd.f32 0.0, %v1733
  %v1735 = vpop.f32.mrb[0].mxu0
  %v1736 = vpop.f32.mrb[0].mxu0
  %v1737 = vadd.f32 0.0, %v1736
  %v1738 = vpop.f32.mrb[0].mxu0
  %1739 = vmatprep.mubr.bf16.mxu0 0
  %1740 = vmatmul.mubr.bf16.gmra.mrb[0].mxu0 %v1034
  %v1741 = vpop.f32.mrb[0].mxu0
  %v1742 = vadd.f32 0.0, %v1741
  %v1743 = vpop.f32.mrb[0].mxu0
  %v1744 = vpop.f32.mrb[0].mxu0
  %v1745 = vadd.f32 0.0, %v1744
  %v1746 = vpop.f32.mrb[0].mxu0
  %1747 = vmatprep.mubr.bf16.mxu0 0
  %1748 = vmatmul.mubr.bf16.gmra.mrb[0].mxu0 %v1037
  %v1749 = vpop.f32.mrb[0].mxu0
  %v1750 = vadd.f32 0.0, %v1749
  %v1751 = vpop.f32.mrb[0].mxu0
  %v1752 = vpop.f32.mrb[0].mxu0
  %v1753 = vadd.f32 0.0, %v1752
  %v1754 = vpop.f32.mrb[0].mxu0
  %1755 = vmatprep.mubr.bf16.mxu0 0
  %1756 = vmatmul.mubr.bf16.gmra.mrb[0].mxu0 %v1040
  %v1757 = vpop.f32.mrb[0].mxu0
  %v1758 = vadd.f32 0.0, %v1757
  %v1759 = vpop.f32.mrb[0].mxu0
  %v1760 = vpop.f32.mrb[0].mxu0
  %v1761 = vadd.f32 0.0, %v1760
  %v1762 = vpop.f32.mrb[0].mxu0
  %1763 = vmatprep.mubr.bf16.mxu0 0
  %1764 = vmatmul.mubr.bf16.gmra.mrb[0].mxu0 %v1043
  %v1765 = vpop.f32.mrb[0].mxu0
  %v1766 = vadd.f32 0.0, %v1765
  %v1767 = vpop.f32.mrb[0].mxu0
  %v1768 = vpop.f32.mrb[0].mxu0
  %v1769 = vadd.f32 0.0, %v1768
  %v1770 = vpop.f32.mrb[0].mxu0
  %1771 = vmatprep.mubr.bf16.mxu0 0
  %1772 = vmatmul.mubr.bf16.gmra.mrb[0].mxu0 %v1046
  %v1773 = vpop.f32.mrb[0].mxu0
  %v1774 = vadd.f32 0.0, %v1773
  %v1775 = vpop.f32.mrb[0].mxu0
  %v1776 = vpop.f32.mrb[0].mxu0
  %v1777 = vadd.f32 0.0, %v1776
  %v1778 = vpop.f32.mrb[0].mxu0
  %1779 = vmatprep.mubr.bf16.mxu0 0
  %1780 = vmatmul.mubr.bf16.gmra.mrb[0].mxu0 %v1049
  %v1781 = vpop.f32.mrb[0].mxu0
  %v1782 = vadd.f32 0.0, %v1781
  %v1783 = vpop.f32.mrb[0].mxu0
  %v1784 = vpop.f32.mrb[0].mxu0
  %v1785 = vadd.f32 0.0, %v1784
  %v1786 = vpop.f32.mrb[0].mxu0
  %1787 = vmatprep.mubr.bf16.mxu0 0
  %1788 = vmatmul.mubr.bf16.gmra.mrb[0].mxu0 %v1052
  %v1789 = vpop.f32.mrb[0].mxu0
  %v1790 = vadd.f32 0.0, %v1789
  %v1791 = vpop.f32.mrb[0].mxu0
  %v1792 = vpop.f32.mrb[0].mxu0
  %v1793 = vadd.f32 0.0, %v1792
  %v1794 = vpop.f32.mrb[0].mxu0
  %1795 = vmatprep.mubr.bf16.mxu0 0
  %1796 = vmatmul.mubr.bf16.gmra.mrb[0].mxu0 %v1055
  %v1797 = vpop.f32.mrb[0].mxu0
  %v1798 = vadd.f32 0.0, %v1797
  %v1799 = vpop.f32.mrb[0].mxu0
  %v1800 = vpop.f32.mrb[0].mxu0
  %v1801 = vadd.f32 0.0, %v1800
  %v1802 = vpop.f32.mrb[0].mxu0
  %1803 = vmatprep.mubr.bf16.mxu0 0
  %1804 = vmatmul.mubr.bf16.gmra.mrb[0].mxu0 %v1058
  %v1805 = vpop.f32.mrb[0].mxu0
  %v1806 = vadd.f32 0.0, %v1805
  %v1807 = vpop.f32.mrb[0].mxu0
  %v1808 = vpop.f32.mrb[0].mxu0
  %v1809 = vadd.f32 0.0, %v1808
  %v1810 = vpop.f32.mrb[0].mxu0
  %1811 = vmatprep.mubr.bf16.mxu0 0
  %1812 = vmatmul.mubr.bf16.gmra.mrb[0].mxu0 %v1061
  %v1813 = vpop.f32.mrb[0].mxu0
  %v1814 = vadd.f32 0.0, %v1813
  %v1815 = vpop.f32.mrb[0].mxu0
  %v1816 = vpop.f32.mrb[0].mxu0
  %v1817 = vadd.f32 0.0, %v1816
  %v1818 = vpop.f32.mrb[0].mxu0
  %1819 = vmatprep.mubr.bf16.mxu0 0
  %1820 = vmatmul.mubr.bf16.gmra.mrb[0].mxu0 %v1064
  %v1821 = vpop.f32.mrb[0].mxu0
  %v1822 = vadd.f32 0.0, %v1821
  %v1823 = vpop.f32.mrb[0].mxu0
  %v1824 = vpop.f32.mrb[0].mxu0
  %v1825 = vadd.f32 0.0, %v1824
  %v1826 = vpop.f32.mrb[0].mxu0
  %1827 = vmatprep.mubr.bf16.mxu0 0
  %1828 = vmatmul.mubr.bf16.gmra.mrb[0].mxu0 %v1067
  %v1829 = vpop.f32.mrb[0].mxu0
  %v1830 = vadd.f32 0.0, %v1829
  %v1831 = vpop.f32.mrb[0].mxu0
  %v1832 = vpop.f32.mrb[0].mxu0
  %v1833 = vadd.f32 0.0, %v1832
  %v1834 = vpop.f32.mrb[0].mxu0
  %1835 = vmatprep.mubr.bf16.mxu0 0
  %1836 = vmatmul.mubr.bf16.gmra.mrb[0].mxu0 %v1070
  %v1837 = vpop.f32.mrb[0].mxu0
  %v1838 = vadd.f32 0.0, %v1837
  %v1839 = vpop.f32.mrb[0].mxu0
  %v1840 = vpop.f32.mrb[0].mxu0
  %v1841 = vadd.f32 0.0, %v1840
  %v1842 = vpop.f32.mrb[0].mxu0
  %1843 = vmatprep.mubr.bf16.mxu0 0
  %1844 = vmatmul.mubr.bf16.gmra.mrb[0].mxu0 %v1073
  %v1845 = vpop.f32.mrb[0].mxu0
  %v1846 = vadd.f32 0.0, %v1845
  %v1847 = vpop.f32.mrb[0].mxu0
  %v1848 = vpop.f32.mrb[0].mxu0
  %v1849 = vadd.f32 0.0, %v1848
  %v1850 = vpop.f32.mrb[0].mxu0
  %1851 = vmatprep.mubr.bf16.mxu0 0
  %1852 = vmatmul.mubr.bf16.gmra.mrb[0].mxu0 %v1076
  %v1853 = vpop.f32.mrb[0].mxu0
  %v1854 = vadd.f32 0.0, %v1853
  %v1855 = vpop.f32.mrb[0].mxu0
  %v1856 = vpop.f32.mrb[0].mxu0
  %v1857 = vadd.f32 0.0, %v1856
  %v1858 = vpop.f32.mrb[0].mxu0
  %1859 = vmatprep.mubr.bf16.mxu0 0
  %1860 = vmatmul.mubr.bf16.gmra.mrb[0].mxu0 %v1079
  %v1861 = vpop.f32.mrb[0].mxu0
  %v1862 = vadd.f32 0.0, %v1861
  %v1863 = vpop.f32.mrb[0].mxu0
  %v1864 = vpop.f32.mrb[0].mxu0
  %v1865 = vadd.f32 0.0, %v1864
  %v1866 = vpop.f32.mrb[0].mxu0
  %1867 = vmatprep.mubr.bf16.mxu0 0
  %1868 = vmatmul.mubr.bf16.gmra.mrb[0].mxu0 %v1082
  %v1869 = vpop.f32.mrb[0].mxu0
  %v1870 = vadd.f32 0.0, %v1869
  %v1871 = vpop.f32.mrb[0].mxu0
  %v1872 = vpop.f32.mrb[0].mxu0
  %v1873 = vadd.f32 0.0, %v1872
  %v1874 = vpop.f32.mrb[0].mxu0
  %1875 = vmatprep.mubr.bf16.mxu0 0
  %1876 = vmatmul.mubr.bf16.gmra.mrb[0].mxu0 %v1085
  %v1877 = vpop.f32.mrb[0].mxu0
  %v1878 = vadd.f32 0.0, %v1877
  %v1879 = vpop.f32.mrb[0].mxu0
  %v1880 = vpop.f32.mrb[0].mxu0
  %v1881 = vadd.f32 0.0, %v1880
  %v1882 = vpop.f32.mrb[0].mxu0
  %1883 = vmatprep.mubr.bf16.mxu0 0
  %1884 = vmatmul.mubr.bf16.gmra.mrb[0].mxu0 %v1088
  %v1885 = vpop.f32.mrb[0].mxu0
  %v1886 = vadd.f32 0.0, %v1885
  %v1887 = vpop.f32.mrb[0].mxu0
  %v1888 = vpop.f32.mrb[0].mxu0
  %v1889 = vadd.f32 0.0, %v1888
  %v1890 = vpop.f32.mrb[0].mxu0
  %1891 = vmatprep.mubr.bf16.mxu0 0
  %1892 = vmatmul.mubr.bf16.gmra.mrb[0].mxu0 %v1091
  %v1893 = vpop.f32.mrb[0].mxu0
  %v1894 = vadd.f32 0.0, %v1893
  %v1895 = vpop.f32.mrb[0].mxu0
  %v1896 = vpop.f32.mrb[0].mxu0
  %v1897 = vadd.f32 0.0, %v1896
  %v1898 = vpop.f32.mrb[0].mxu0
  %1899 = vmatprep.mubr.bf16.mxu0 0
  %1900 = vmatmul.mubr.bf16.gmra.mrb[0].mxu0 %v1094
  %v1901 = vpop.f32.mrb[0].mxu0
  %v1902 = vadd.f32 0.0, %v1901
  %v1903 = vpop.f32.mrb[0].mxu0
  %v1904 = vpop.f32.mrb[0].mxu0
  %v1905 = vadd.f32 0.0, %v1904
  %v1906 = vpop.f32.mrb[0].mxu0
  %1907 = vmatprep.mubr.bf16.mxu0 0
  %1908 = vmatmul.mubr.bf16.gmra.mrb[0].mxu0 %v1097
  %v1909 = vpop.f32.mrb[0].mxu0
  %v1910 = vadd.f32 0.0, %v1909
  %v1911 = vpop.f32.mrb[0].mxu0
  %v1912 = vpop.f32.mrb[0].mxu0
  %v1913 = vadd.f32 0.0, %v1912
  %v1914 = vpop.f32.mrb[0].mxu0
  %1915 = vmatprep.mubr.bf16.mxu0 0
  %1916 = vmatmul.mubr.bf16.gmra.mrb[0].mxu0 %v1100
  %v1917 = vpop.f32.mrb[0].mxu0
  %v1918 = vadd.f32 0.0, %v1917
  %v1919 = vpop.f32.mrb[0].mxu0
  %v1920 = vpop.f32.mrb[0].mxu0
  %v1921 = vadd.f32 0.0, %v1920
  %v1922 = vpop.f32.mrb[0].mxu0
  %1923 = vmatprep.mubr.bf16.mxu0 0
  %1924 = vmatmul.mubr.bf16.gmra.mrb[0].mxu0 %v1103
  %v1925 = vpop.f32.mrb[0].mxu0
  %v1926 = vadd.f32 0.0, %v1925
  %v1927 = vpop.f32.mrb[0].mxu0
  %v1928 = vpop.f32.mrb[0].mxu0
  %v1929 = vadd.f32 0.0, %v1928
  %v1930 = vpop.f32.mrb[0].mxu0
  %1931 = vmatprep.mubr.bf16.mxu0 0
  %1932 = vmatmul.mubr.bf16.gmra.mrb[0].mxu0 %v1106
  %v1933 = vpop.f32.mrb[0].mxu0
  %v1934 = vadd.f32 0.0, %v1933
  %v1935 = vpop.f32.mrb[0].mxu0
  %v1936 = vpop.f32.mrb[0].mxu0
  %v1937 = vadd.f32 0.0, %v1936
  %v1938 = vpop.f32.mrb[0].mxu0
  %1939 = vmatprep.mubr.bf16.mxu0 0
  %1940 = vmatmul.mubr.bf16.gmra.mrb[0].mxu0 %v1109
  %v1941 = vpop.f32.mrb[0].mxu0
  %v1942 = vadd.f32 0.0, %v1941
  %v1943 = vpop.f32.mrb[0].mxu0
  %v1944 = vpop.f32.mrb[0].mxu0
  %v1945 = vadd.f32 0.0, %v1944
  %v1946 = vpop.f32.mrb[0].mxu0
  %1947 = vmatprep.mubr.bf16.mxu0 0
  %1948 = vmatmul.mubr.bf16.gmra.mrb[0].mxu0 %v1112
  %v1949 = vpop.f32.mrb[0].mxu0
  %v1950 = vadd.f32 0.0, %v1949
  %v1951 = vpop.f32.mrb[0].mxu0
  %v1952 = vpop.f32.mrb[0].mxu0
  %v1953 = vadd.f32 0.0, %v1952
  %v1954 = vpop.f32.mrb[0].mxu0
  %1955 = vmatprep.mubr.bf16.mxu0 0
  %1956 = vmatmul.mubr.bf16.gmra.mrb[0].mxu0 %v1115
  %v1957 = vpop.f32.mrb[0].mxu0
  %v1958 = vadd.f32 0.0, %v1957
  %v1959 = vpop.f32.mrb[0].mxu0
  %v1960 = vpop.f32.mrb[0].mxu0
  %v1961 = vadd.f32 0.0, %v1960
  %v1962 = vpop.f32.mrb[0].mxu0
  %1963 = vmatprep.mubr.bf16.mxu0 0
  %1964 = vmatmul.mubr.bf16.gmra.mrb[0].mxu0 %v1118
  %v1965 = vpop.f32.mrb[0].mxu0
  %v1966 = vadd.f32 0.0, %v1965
  %v1967 = vpop.f32.mrb[0].mxu0
  %v1968 = vpop.f32.mrb[0].mxu0
  %v1969 = vadd.f32 0.0, %v1968
  %v1970 = vpop.f32.mrb[0].mxu0
  %1971 = vmatprep.mubr.bf16.mxu0 0
  %1972 = vmatmul.mubr.bf16.gmra.mrb[0].mxu0 %v1121
  %v1973 = vpop.f32.mrb[0].mxu0
  %v1974 = vadd.f32 0.0, %v1973
  %v1975 = vpop.f32.mrb[0].mxu0
  %v1976 = vpop.f32.mrb[0].mxu0
  %v1977 = vadd.f32 0.0, %v1976
  %v1978 = vpop.f32.mrb[0].mxu0
  %1979 = vmatprep.mubr.bf16.mxu0 0
  %1980 = vmatmul.mubr.bf16.gmra.mrb[0].mxu0 %v1124
  %v1981 = vpop.f32.mrb[0].mxu0
  %v1982 = vadd.f32 0.0, %v1981
  %v1983 = vpop.f32.mrb[0].mxu0
  %v1984 = vpop.f32.mrb[0].mxu0
  %v1985 = vadd.f32 0.0, %v1984
  %v1986 = vpop.f32.mrb[0].mxu0
  %1987 = vmatprep.mubr.bf16.mxu0 0
  %1988 = vmatmul.mubr.bf16.gmra.mrb[0].mxu0 %v1127
  %v1989 = vpop.f32.mrb[0].mxu0
  %v1990 = vadd.f32 0.0, %v1989
  %v1991 = vpop.f32.mrb[0].mxu0
  %v1992 = vpop.f32.mrb[0].mxu0
  %v1993 = vadd.f32 0.0, %v1992
  %v1994 = vpop.f32.mrb[0].mxu0
  %1995 = vmatprep.mubr.bf16.mxu0 0
  %1996 = vmatmul.mubr.bf16.gmra.mrb[0].mxu0 %v1130
  %v1997 = vpop.f32.mrb[0].mxu0
  %v1998 = vadd.f32 0.0, %v1997
  %v1999 = vpop.f32.mrb[0].mxu0
  %v2000 = vpop.f32.mrb[0].mxu0
  %v2001 = vadd.f32 0.0, %v2000
  %v2002 = vpop.f32.mrb[0].mxu0
  %2003 = vmatprep.mubr.bf16.mxu0 0
  %2004 = vmatmul.mubr.bf16.gmra.mrb[0].mxu0 %v1133
  %v2005 = vpop.f32.mrb[0].mxu0
  %v2006 = vadd.f32 0.0, %v2005
  %v2007 = vpop.f32.mrb[0].mxu0
  %v2008 = vpop.f32.mrb[0].mxu0
  %v2009 = vadd.f32 0.0, %v2008
  %v2010 = vpop.f32.mrb[0].mxu0
  %2011 = vmatprep.mubr.bf16.mxu0 0
  %2012 = vmatmul.mubr.bf16.gmra.mrb[0].mxu0 %v1136
  %v2013 = vpop.f32.mrb[0].mxu0
  %v2014 = vadd.f32 0.0, %v2013
  %v2015 = vpop.f32.mrb[0].mxu0
  %v2016 = vpop.f32.mrb[0].mxu0
  %v2017 = vadd.f32 0.0, %v2016
  %v2018 = vpop.f32.mrb[0].mxu0
  %2019 = vmatprep.mubr.bf16.mxu0 0
  %2020 = vmatmul.mubr.bf16.gmra.mrb[0].mxu0 %v1139
  %v2021 = vpop.f32.mrb[0].mxu0
  %v2022 = vadd.f32 0.0, %v2021
  %v2023 = vpop.f32.mrb[0].mxu0
  %v2024 = vpop.f32.mrb[0].mxu0
  %v2025 = vadd.f32 0.0, %v2024
  %v2026 = vpop.f32.mrb[0].mxu0
  %2027 = vmatprep.mubr.bf16.mxu0 0
  %2028 = vmatmul.mubr.bf16.gmra.mrb[0].mxu0 %v1142
  %v2029 = vpop.f32.mrb[0].mxu0
  %v2030 = vadd.f32 0.0, %v2029
  %v2031 = vpop.f32.mrb[0].mxu0
  %v2032 = vpop.f32.mrb[0].mxu0
  %v2033 = vadd.f32 0.0, %v2032
  %v2034 = vpop.f32.mrb[0].mxu0
  %2035 = vmatprep.mubr.bf16.mxu0 0
  %2036 = vmatmul.mubr.bf16.gmra.mrb[0].mxu0 %v1145
  %v2037 = vpop.f32.mrb[0].mxu0
  %v2038 = vadd.f32 0.0, %v2037
  %v2039 = vpop.f32.mrb[0].mxu0
  %v2040 = vpop.f32.mrb[0].mxu0
  %v2041 = vadd.f32 0.0, %v2040
  %v2042 = vpop.f32.mrb[0].mxu0
  %2043 = vmatprep.mubr.bf16.mxu0 0
  %2044 = vmatmul.mubr.bf16.gmra.mrb[0].mxu0 %v1148
  %v2045 = vpop.f32.mrb[0].mxu0
  %v2046 = vadd.f32 0.0, %v2045
  %v2047 = vpop.f32.mrb[0].mxu0
  %v2048 = vpop.f32.mrb[0].mxu0
  %v2049 = vadd.f32 0.0, %v2048
  %v2050 = vpop.f32.mrb[0].mxu0
  %2051 = vmatprep.mubr.bf16.mxu0 0
  %2052 = vmatmul.mubr.bf16.gmra.mrb[0].mxu0 %v1151
  %v2053 = vpop.f32.mrb[0].mxu0
  %v2054 = vadd.f32 0.0, %v2053
  %v2055 = vpop.f32.mrb[0].mxu0
  %v2056 = vpop.f32.mrb[0].mxu0
  %v2057 = vadd.f32 0.0, %v2056
  %v2058 = vpop.f32.mrb[0].mxu0
  %2059 = vmatprep.mubr.bf16.mxu0 0
  %2060 = vmatmul.mubr.bf16.gmra.mrb[0].mxu0 %v1154
  %v2061 = vpop.f32.mrb[0].mxu0
  %v2062 = vadd.f32 0.0, %v2061
  %v2063 = vpop.f32.mrb[0].mxu0
  %v2064 = vpop.f32.mrb[0].mxu0
  %v2065 = vadd.f32 0.0, %v2064
  %v2066 = vpop.f32.mrb[0].mxu0
  %2067 = vmatprep.mubr.bf16.mxu0 0
  %2068 = vmatmul.mubr.bf16.gmra.mrb[0].mxu0 %v1157
  %v2069 = vpop.f32.mrb[0].mxu0
  %v2070 = vadd.f32 0.0, %v2069
  %v2071 = vpop.f32.mrb[0].mxu0
  %v2072 = vpop.f32.mrb[0].mxu0
  %v2073 = vadd.f32 0.0, %v2072
  %v2074 = vpop.f32.mrb[0].mxu0
  %2075 = vmatprep.mubr.bf16.mxu0 0
  %2076 = vmatmul.mubr.bf16.gmra.mrb[0].mxu0 %v1160
  %v2077 = vpop.f32.mrb[0].mxu0
  %v2078 = vadd.f32 0.0, %v2077
  %v2079 = vpop.f32.mrb[0].mxu0
  %v2080 = vpop.f32.mrb[0].mxu0
  %v2081 = vadd.f32 0.0, %v2080
  %v2082 = vpop.f32.mrb[0].mxu0
  %2083 = vmatprep.mubr.bf16.mxu0 0
  %2084 = vmatmul.mubr.bf16.gmra.mrb[0].mxu0 %v1163
  %v2085 = vpop.f32.mrb[0].mxu0
  %v2086 = vadd.f32 0.0, %v2085
  %v2087 = vpop.f32.mrb[0].mxu0
  %v2088 = vpop.f32.mrb[0].mxu0
  %v2089 = vadd.f32 0.0, %v2088
  %v2090 = vpop.f32.mrb[0].mxu0
  %2091 = vmatprep.mubr.bf16.mxu0 0
  %2092 = vmatmul.mubr.bf16.gmra.mrb[0].mxu0 %v1166
  %v2093 = vpop.f32.mrb[0].mxu0
  %v2094 = vadd.f32 0.0, %v2093
  %v2095 = vpop.f32.mrb[0].mxu0
  %v2096 = vpop.f32.mrb[0].mxu0
  %v2097 = vadd.f32 0.0, %v2096
  %v2098 = vpop.f32.mrb[0].mxu0
  %2099 = vmatprep.mubr.bf16.mxu0 0
  %2100 = vmatmul.mubr.bf16.gmra.mrb[0].mxu0 %v1169
  %v2101 = vpop.f32.mrb[0].mxu0
  %v2102 = vadd.f32 0.0, %v2101
  %v2103 = vpop.f32.mrb[0].mxu0
  %v2104 = vpop.f32.mrb[0].mxu0
  %v2105 = vadd.f32 0.0, %v2104
  %v2106 = vpop.f32.mrb[0].mxu0
  %2107 = vmatprep.mubr.bf16.mxu0 0
  %2108 = vmatmul.mubr.bf16.gmra.mrb[0].mxu0 %v1172
  %v2109 = vpop.f32.mrb[0].mxu0
  %v2110 = vadd.f32 0.0, %v2109
  %v2111 = vpop.f32.mrb[0].mxu0
  %v2112 = vpop.f32.mrb[0].mxu0
  %v2113 = vadd.f32 0.0, %v2112
  %v2114 = vpop.f32.mrb[0].mxu0
  %2115 = vmatprep.mubr.bf16.mxu0 0
  %2116 = vmatmul.mubr.bf16.gmra.mrb[0].mxu0 %v1175
  %v2117 = vpop.f32.mrb[0].mxu0
  %v2118 = vadd.f32 0.0, %v2117
  %v2119 = vpop.f32.mrb[0].mxu0
  %v2120 = vpop.f32.mrb[0].mxu0
  %v2121 = vadd.f32 0.0, %v2120
  %v2122 = vpop.f32.mrb[0].mxu0
  %2123 = vmatprep.mubr.bf16.mxu0 0
  %2124 = vmatmul.mubr.bf16.gmra.mrb[0].mxu0 %v1178
  %v2125 = vpop.f32.mrb[0].mxu0
  %v2126 = vadd.f32 0.0, %v2125
  %v2127 = vpop.f32.mrb[0].mxu0
  %v2128 = vpop.f32.mrb[0].mxu0
  %v2129 = vadd.f32 0.0, %v2128
  %v2130 = vpop.f32.mrb[0].mxu0
  %2131 = vdwg.mxu0
  %v2132 = vmax.f32 %v1222, %v1449
  %v2133 = vmax.f32 %v1225, %v1454
  %v2134 = vmax.f32 %v1230, %v1457
  %v2135 = vmax.f32 %v1233, %v1462
  %v2136 = vmax.f32 %v1238, %v1465
  %v2137 = vmax.f32 %v1241, %v1470
  %v2138 = vmax.f32 %v1246, %v1473
  %v2139 = vmax.f32 %v1249, %v1478
  %v2140 = vmax.f32 %v1254, %v1481
  %v2141 = vmax.f32 %v1257, %v1486
  %v2142 = vmax.f32 %v1262, %v1489
  %v2143 = vmax.f32 %v1265, %v1494
  %v2144 = vmax.f32 %v1270, %v1497
  %v2145 = vmax.f32 %v1273, %v1502
  %v2146 = vmax.f32 %v1278, %v1505
  %v2147 = vmax.f32 %v1281, %v1510
  %v2148 = vmax.f32 %v1286, %v1513
  %v2149 = vmax.f32 %v1289, %v1518
  %v2150 = vmax.f32 %v1294, %v1521
  %v2151 = vmax.f32 %v1297, %v1526
  %v2152 = vmax.f32 %v1302, %v1529
  %v2153 = vmax.f32 %v1305, %v1534
  %v2154 = vmax.f32 %v1310, %v1537
  %v2155 = vmax.f32 %v1313, %v1542
  %v2156 = vmax.f32 %v1318, %v1545
  %v2157 = vmax.f32 %v1321, %v1550
  %v2158 = vmax.f32 %v1326, %v1553
  %v2159 = vmax.f32 %v1329, %v1558
  %v2160 = vmax.f32 %v1334, %v1561
  %v2161 = vmax.f32 %v1337, %v1566
  %v2162 = vmax.f32 %v1342, %v1569
  %v2163 = vmax.f32 %v1345, %v1574
  %v2164 = vmax.f32 %v1350, %v1577
  %v2165 = vmax.f32 %v1353, %v1582
  %v2166 = vmax.f32 %v1358, %v1585
  %v2167 = vmax.f32 %v1361, %v1590
  %v2168 = vmax.f32 %v1366, %v1593
  %v2169 = vmax.f32 %v1369, %v1598
  %v2170 = vmax.f32 %v1374, %v1601
  %v2171 = vmax.f32 %v1377, %v1606
  %v2172 = vmax.f32 %v1382, %v1609
  %v2173 = vmax.f32 %v1385, %v1614
  %v2174 = vmax.f32 %v1390, %v1617
  %v2175 = vmax.f32 %v1393, %v1622
  %v2176 = vmax.f32 %v1398, %v1625
  %v2177 = vmax.f32 %v1401, %v1630
  %v2178 = vmax.f32 %v1406, %v1633
  %v2179 = vmax.f32 %v1409, %v1638
  %v2180 = vmax.f32 %v1414, %v1641
  %v2181 = vmax.f32 %v1417, %v1646
  %v2182 = vmax.f32 %v1422, %v1649
  %v2183 = vmax.f32 %v1425, %v1654
  %v2184 = vmax.f32 %v1430, %v1657
  %v2185 = vmax.f32 %v1433, %v1662
  %v2186 = vmax.f32 %v1438, %v1665
  %v2187 = vmax.f32 %v1441, %v1670
  %v2188 = vmax.f32 %v1446, %v1673
  %v2189 = vmax.f32 %v1678, %v1905
  %v2190 = vmax.f32 %v1681, %v1910
  %v2191 = vmax.f32 %v1686, %v1913
  %v2192 = vmax.f32 %v1689, %v1918
  %v2193 = vmax.f32 %v1694, %v1921
  %v2194 = vmax.f32 %v1697, %v1926
  %v2195 = vmax.f32 %v1702, %v1929
  %v2196 = vmax.f32 %v1705, %v1934
  %v2197 = vmax.f32 %v1710, %v1937
  %v2198 = vmax.f32 %v1713, %v1942
  %v2199 = vmax.f32 %v1718, %v1945
  %v2200 = vmax.f32 %v1721, %v1950
  %v2201 = vmax.f32 %v1726, %v1953
  %v2202 = vmax.f32 %v1729, %v1958
  %v2203 = vmax.f32 %v1734, %v1961
  %v2204 = vmax.f32 %v1737, %v1966
  %v2205 = vmax.f32 %v1742, %v1969
  %v2206 = vmax.f32 %v1745, %v1974
  %v2207 = vmax.f32 %v1750, %v1977
  %v2208 = vmax.f32 %v1753, %v1982
  %v2209 = vmax.f32 %v1758, %v1985
  %v2210 = vmax.f32 %v1761, %v1990
  %v2211 = vmax.f32 %v1766, %v1993
  %v2212 = vmax.f32 %v1769, %v1998
  %v2213 = vmax.f32 %v1774, %v2001
  %v2214 = vmax.f32 %v1777, %v2006
  %v2215 = vmax.f32 %v1782, %v2009
  %v2216 = vmax.f32 %v1785, %v2014
  %v2217 = vmax.f32 %v1790, %v2017
  %v2218 = vmax.f32 %v1793, %v2022
  %v2219 = vmax.f32 %v1798, %v2025
  %v2220 = vmax.f32 %v1801, %v2030
  %v2221 = vmax.f32 %v1806, %v2033
  %v2222 = vmax.f32 %v1809, %v2038
  %v2223 = vmax.f32 %v1814, %v2041
  %v2224 = vmax.f32 %v1817, %v2046
  %v2225 = vmax.f32 %v1822, %v2049
  %v2226 = vmax.f32 %v1825, %v2054
  %v2227 = vmax.f32 %v1830, %v2057
  %v2228 = vmax.f32 %v1833, %v2062
  %v2229 = vmax.f32 %v1838, %v2065
  %v2230 = vmax.f32 %v1841, %v2070
  %v2231 = vmax.f32 %v1846, %v2073
  %v2232 = vmax.f32 %v1849, %v2078
  %v2233 = vmax.f32 %v1854, %v2081
  %v2234 = vmax.f32 %v1857, %v2086
  %v2235 = vmax.f32 %v1862, %v2089
  %v2236 = vmax.f32 %v1865, %v2094
  %v2237 = vmax.f32 %v1870, %v2097
  %v2238 = vmax.f32 %v1873, %v2102
  %v2239 = vmax.f32 %v1878, %v2105
  %v2240 = vmax.f32 %v1881, %v2110
  %v2241 = vmax.f32 %v1886, %v2113
  %v2242 = vmax.f32 %v1889, %v2118
  %v2243 = vmax.f32 %v1894, %v2121
  %v2244 = vmax.f32 %v1897, %v2126
  %v2245 = vmax.f32 %v1902, %v2129
  %v2246 = vmax.f32 %v2132, %v2189
  %v2247 = vmax.f32 %v2133, %v2190
  %v2248 = vmax.f32 %v2134, %v2191
  %v2249 = vmax.f32 %v2135, %v2192
  %v2250 = vmax.f32 %v2136, %v2193
  %v2251 = vmax.f32 %v2137, %v2194
  %v2252 = vmax.f32 %v2138, %v2195
  %v2253 = vmax.f32 %v2139, %v2196
  %v2254 = vmax.f32 %v2140, %v2197
  %v2255 = vmax.f32 %v2141, %v2198
  %v2256 = vmax.f32 %v2142, %v2199
  %v2257 = vmax.f32 %v2143, %v2200
  %v2258 = vmax.f32 %v2144, %v2201
  %v2259 = vmax.f32 %v2145, %v2202
  %v2260 = vmax.f32 %v2146, %v2203
  %v2261 = vmax.f32 %v2147, %v2204
  %v2262 = vmax.f32 %v2148, %v2205
  %v2263 = vmax.f32 %v2149, %v2206
  %v2264 = vmax.f32 %v2150, %v2207
  %v2265 = vmax.f32 %v2151, %v2208
  %v2266 = vmax.f32 %v2152, %v2209
  %v2267 = vmax.f32 %v2153, %v2210
  %v2268 = vmax.f32 %v2154, %v2211
  %v2269 = vmax.f32 %v2155, %v2212
  %v2270 = vmax.f32 %v2156, %v2213
  %v2271 = vmax.f32 %v2157, %v2214
  %v2272 = vmax.f32 %v2158, %v2215
  %v2273 = vmax.f32 %v2159, %v2216
  %v2274 = vmax.f32 %v2160, %v2217
  %v2275 = vmax.f32 %v2161, %v2218
  %v2276 = vmax.f32 %v2162, %v2219
  %v2277 = vmax.f32 %v2163, %v2220
  %v2278 = vmax.f32 %v2164, %v2221
  %v2279 = vmax.f32 %v2165, %v2222
  %v2280 = vmax.f32 %v2166, %v2223
  %v2281 = vmax.f32 %v2167, %v2224
  %v2282 = vmax.f32 %v2168, %v2225
  %v2283 = vmax.f32 %v2169, %v2226
  %v2284 = vmax.f32 %v2170, %v2227
  %v2285 = vmax.f32 %v2171, %v2228
  %v2286 = vmax.f32 %v2172, %v2229
  %v2287 = vmax.f32 %v2173, %v2230
  %v2288 = vmax.f32 %v2174, %v2231
  %v2289 = vmax.f32 %v2175, %v2232
  %v2290 = vmax.f32 %v2176, %v2233
  %v2291 = vmax.f32 %v2177, %v2234
  %v2292 = vmax.f32 %v2178, %v2235
  %v2293 = vmax.f32 %v2179, %v2236
  %v2294 = vmax.f32 %v2180, %v2237
  %v2295 = vmax.f32 %v2181, %v2238
  %v2296 = vmax.f32 %v2182, %v2239
  %v2297 = vmax.f32 %v2183, %v2240
  %v2298 = vmax.f32 %v2184, %v2241
  %v2299 = vmax.f32 %v2185, %v2242
  %v2300 = vmax.f32 %v2186, %v2243
  %v2301 = vmax.f32 %v2187, %v2244
  %v2302 = vmax.f32 %v2188, %v2245
  %v2304 = vlaneseq
  %v2305 = vshrl.u32 %v2304, 7
  %v2306 = vsub.s32 0, %v2305
  %v2307 = vrot.slane %v253, %v2306
  %v2309 = vadd.f32 %v2246, %v2307
  %v2310 = vadd.f32 %v2247, %v2307
  %v2311 = vadd.f32 %v2248, %v2307
  %v2312 = vadd.f32 %v2249, %v2307
  %v2313 = vadd.f32 %v2250, %v2307
  %v2314 = vadd.f32 %v2251, %v2307
  %v2315 = vadd.f32 %v2252, %v2307
  %v2316 = vadd.f32 %v2253, %v2307
  %v2317 = vadd.f32 %v2254, %v2307
  %v2318 = vadd.f32 %v2255, %v2307
  %v2319 = vadd.f32 %v2256, %v2307
  %v2320 = vadd.f32 %v2257, %v2307
  %v2321 = vadd.f32 %v2258, %v2307
  %v2322 = vadd.f32 %v2259, %v2307
  %v2323 = vadd.f32 %v2260, %v2307
  %v2324 = vadd.f32 %v2261, %v2307
  %v2325 = vadd.f32 %v2262, %v2307
  %v2326 = vadd.f32 %v2263, %v2307
  %v2327 = vadd.f32 %v2264, %v2307
  %v2328 = vadd.f32 %v2265, %v2307
  %v2329 = vadd.f32 %v2266, %v2307
  %v2330 = vadd.f32 %v2267, %v2307
  %v2331 = vadd.f32 %v2268, %v2307
  %v2332 = vadd.f32 %v2269, %v2307
  %v2333 = vadd.f32 %v2270, %v2307
  %v2334 = vadd.f32 %v2271, %v2307
  %v2335 = vadd.f32 %v2272, %v2307
  %v2336 = vadd.f32 %v2273, %v2307
  %v2337 = vadd.f32 %v2274, %v2307
  %v2338 = vadd.f32 %v2275, %v2307
  %v2339 = vadd.f32 %v2276, %v2307
  %v2340 = vadd.f32 %v2277, %v2307
  %v2341 = vadd.f32 %v2278, %v2307
  %v2342 = vadd.f32 %v2279, %v2307
  %v2343 = vadd.f32 %v2280, %v2307
  %v2344 = vadd.f32 %v2281, %v2307
  %v2345 = vadd.f32 %v2282, %v2307
  %v2346 = vadd.f32 %v2283, %v2307
  %v2347 = vadd.f32 %v2284, %v2307
  %v2348 = vadd.f32 %v2285, %v2307
  %v2349 = vadd.f32 %v2286, %v2307
  %v2350 = vadd.f32 %v2287, %v2307
  %v2351 = vadd.f32 %v2288, %v2307
  %v2352 = vadd.f32 %v2289, %v2307
  %v2353 = vadd.f32 %v2290, %v2307
  %v2354 = vadd.f32 %v2291, %v2307
  %v2355 = vadd.f32 %v2292, %v2307
  %v2356 = vadd.f32 %v2293, %v2307
  %v2357 = vadd.f32 %v2294, %v2307
  %v2358 = vadd.f32 %v2295, %v2307
  %v2359 = vadd.f32 %v2296, %v2307
  %v2360 = vadd.f32 %v2297, %v2307
  %v2361 = vadd.f32 %v2298, %v2307
  %v2362 = vadd.f32 %v2299, %v2307
  %v2363 = vadd.f32 %v2300, %v2307
  %v2364 = vadd.f32 %v2301, %v2307
  %v2365 = vadd.f32 %v2302, %v2307
  %v2366 = vlaneseq
  %v2367 = vshrl.u32 %v2366, 7
  %v2368 = vadd.s32 %v2367, 8
  %v2369 = vadd.s32 %v2367, 16
  %v2370 = vadd.s32 %v2367, 24
  %v2371 = vadd.s32 %v2367, 32
  %v2372 = vadd.s32 %v2367, 40
  %v2373 = vadd.s32 %v2367, 48
  %v2374 = vadd.s32 %v2367, 56
  %v2375 = vadd.s32 %v2367, 64
  %v2376 = vadd.s32 %v2367, 72
  %v2377 = vadd.s32 %v2367, 80
  %v2378 = vadd.s32 %v2367, 88
  %v2379 = vadd.s32 %v2367, 96
  %v2380 = vadd.s32 %v2367, 104
  %v2381 = vadd.s32 %v2367, 112
  %v2382 = vadd.s32 %v2367, 120
  %v2383 = vadd.s32 %v2367, 128
  %v2384 = vadd.s32 %v2367, 136
  %v2385 = vadd.s32 %v2367, 144
  %v2386 = vadd.s32 %v2367, 152
  %v2387 = vadd.s32 %v2367, 160
  %v2388 = vadd.s32 %v2367, 168
  %v2389 = vadd.s32 %v2367, 176
  %v2390 = vadd.s32 %v2367, 184
  %v2391 = vadd.s32 %v2367, 192
  %v2392 = vadd.s32 %v2367, 200
  %v2393 = vadd.s32 %v2367, 208
  %v2394 = vadd.s32 %v2367, 216
  %v2395 = vadd.s32 %v2367, 224
  %v2396 = vadd.s32 %v2367, 232
  %v2397 = vadd.s32 %v2367, 240
  %v2398 = vadd.s32 %v2367, 248
  %v2399 = vadd.s32 %v2367, 256
  %v2400 = vadd.s32 %v2367, 264
  %v2401 = vadd.s32 %v2367, 272
  %v2402 = vadd.s32 %v2367, 280
  %v2403 = vadd.s32 %v2367, 288
  %v2404 = vadd.s32 %v2367, 296
  %v2405 = vadd.s32 %v2367, 304
  %v2406 = vadd.s32 %v2367, 312
  %v2407 = vadd.s32 %v2367, 320
  %v2408 = vadd.s32 %v2367, 328
  %v2409 = vadd.s32 %v2367, 336
  %v2410 = vadd.s32 %v2367, 344
  %v2411 = vadd.s32 %v2367, 352
  %v2412 = vadd.s32 %v2367, 360
  %v2413 = vadd.s32 %v2367, 368
  %v2414 = vadd.s32 %v2367, 376
  %v2415 = vadd.s32 %v2367, 384
  %v2416 = vadd.s32 %v2367, 392
  %v2417 = vadd.s32 %v2367, 400
  %v2418 = vadd.s32 %v2367, 408
  %v2419 = vadd.s32 %v2367, 416
  %v2420 = vadd.s32 %v2367, 424
  %v2421 = vadd.s32 %v2367, 432
  %v2422 = vadd.s32 %v2367, 440
  %v2423 = vadd.s32 %v2367, 448
  %vm2424 = vcmp.lt.s32.totalorder %v2367, 450
  %vm2425 = vcmp.lt.s32.totalorder %v2368, 450
  %vm2426 = vcmp.lt.s32.totalorder %v2369, 450
  %vm2427 = vcmp.lt.s32.totalorder %v2370, 450
  %vm2428 = vcmp.lt.s32.totalorder %v2371, 450
  %vm2429 = vcmp.lt.s32.totalorder %v2372, 450
  %vm2430 = vcmp.lt.s32.totalorder %v2373, 450
  %vm2431 = vcmp.lt.s32.totalorder %v2374, 450
  %vm2432 = vcmp.lt.s32.totalorder %v2375, 450
  %vm2433 = vcmp.lt.s32.totalorder %v2376, 450
  %vm2434 = vcmp.lt.s32.totalorder %v2377, 450
  %vm2435 = vcmp.lt.s32.totalorder %v2378, 450
  %vm2436 = vcmp.lt.s32.totalorder %v2379, 450
  %vm2437 = vcmp.lt.s32.totalorder %v2380, 450
  %vm2438 = vcmp.lt.s32.totalorder %v2381, 450
  %vm2439 = vcmp.lt.s32.totalorder %v2382, 450
  %vm2440 = vcmp.lt.s32.totalorder %v2383, 450
  %vm2441 = vcmp.lt.s32.totalorder %v2384, 450
  %vm2442 = vcmp.lt.s32.totalorder %v2385, 450
  %vm2443 = vcmp.lt.s32.totalorder %v2386, 450
  %vm2444 = vcmp.lt.s32.totalorder %v2387, 450
  %vm2445 = vcmp.lt.s32.totalorder %v2388, 450
  %vm2446 = vcmp.lt.s32.totalorder %v2389, 450
  %vm2447 = vcmp.lt.s32.totalorder %v2390, 450
  %vm2448 = vcmp.lt.s32.totalorder %v2391, 450
  %vm2449 = vcmp.lt.s32.totalorder %v2392, 450
  %vm2450 = vcmp.lt.s32.totalorder %v2393, 450
  %vm2451 = vcmp.lt.s32.totalorder %v2394, 450
  %vm2452 = vcmp.lt.s32.totalorder %v2395, 450
  %vm2453 = vcmp.lt.s32.totalorder %v2396, 450
  %vm2454 = vcmp.lt.s32.totalorder %v2397, 450
  %vm2455 = vcmp.lt.s32.totalorder %v2398, 450
  %vm2456 = vcmp.lt.s32.totalorder %v2399, 450
  %vm2457 = vcmp.lt.s32.totalorder %v2400, 450
  %vm2458 = vcmp.lt.s32.totalorder %v2401, 450
  %vm2459 = vcmp.lt.s32.totalorder %v2402, 450
  %vm2460 = vcmp.lt.s32.totalorder %v2403, 450
  %vm2461 = vcmp.lt.s32.totalorder %v2404, 450
  %vm2462 = vcmp.lt.s32.totalorder %v2405, 450
  %vm2463 = vcmp.lt.s32.totalorder %v2406, 450
  %vm2464 = vcmp.lt.s32.totalorder %v2407, 450
  %vm2465 = vcmp.lt.s32.totalorder %v2408, 450
  %vm2466 = vcmp.lt.s32.totalorder %v2409, 450
  %vm2467 = vcmp.lt.s32.totalorder %v2410, 450
  %vm2468 = vcmp.lt.s32.totalorder %v2411, 450
  %vm2469 = vcmp.lt.s32.totalorder %v2412, 450
  %vm2470 = vcmp.lt.s32.totalorder %v2413, 450
  %vm2471 = vcmp.lt.s32.totalorder %v2414, 450
  %vm2472 = vcmp.lt.s32.totalorder %v2415, 450
  %vm2473 = vcmp.lt.s32.totalorder %v2416, 450
  %vm2474 = vcmp.lt.s32.totalorder %v2417, 450
  %vm2475 = vcmp.lt.s32.totalorder %v2418, 450
  %vm2476 = vcmp.lt.s32.totalorder %v2419, 450
  %vm2477 = vcmp.lt.s32.totalorder %v2420, 450
  %vm2478 = vcmp.lt.s32.totalorder %v2421, 450
  %vm2479 = vcmp.lt.s32.totalorder %v2422, 450
  %vm2480 = vcmp.lt.s32.totalorder %v2423, 450
  %v2481 = vsel %vm2424, 1, 0
  %v2482 = vsel %vm2425, 1, 0
  %v2483 = vsel %vm2426, 1, 0
  %v2484 = vsel %vm2427, 1, 0
  %v2485 = vsel %vm2428, 1, 0
  %v2486 = vsel %vm2429, 1, 0
  %v2487 = vsel %vm2430, 1, 0
  %v2488 = vsel %vm2431, 1, 0
  %v2489 = vsel %vm2432, 1, 0
  %v2490 = vsel %vm2433, 1, 0
  %v2491 = vsel %vm2434, 1, 0
  %v2492 = vsel %vm2435, 1, 0
  %v2493 = vsel %vm2436, 1, 0
  %v2494 = vsel %vm2437, 1, 0
  %v2495 = vsel %vm2438, 1, 0
  %v2496 = vsel %vm2439, 1, 0
  %v2497 = vsel %vm2440, 1, 0
  %v2498 = vsel %vm2441, 1, 0
  %v2499 = vsel %vm2442, 1, 0
  %v2500 = vsel %vm2443, 1, 0
  %v2501 = vsel %vm2444, 1, 0
  %v2502 = vsel %vm2445, 1, 0
  %v2503 = vsel %vm2446, 1, 0
  %v2504 = vsel %vm2447, 1, 0
  %v2505 = vsel %vm2448, 1, 0
  %v2506 = vsel %vm2449, 1, 0
  %v2507 = vsel %vm2450, 1, 0
  %v2508 = vsel %vm2451, 1, 0
  %v2509 = vsel %vm2452, 1, 0
  %v2510 = vsel %vm2453, 1, 0
  %v2511 = vsel %vm2454, 1, 0
  %v2512 = vsel %vm2455, 1, 0
  %v2513 = vsel %vm2456, 1, 0
  %v2514 = vsel %vm2457, 1, 0
  %v2515 = vsel %vm2458, 1, 0
  %v2516 = vsel %vm2459, 1, 0
  %v2517 = vsel %vm2460, 1, 0
  %v2518 = vsel %vm2461, 1, 0
  %v2519 = vsel %vm2462, 1, 0
  %v2520 = vsel %vm2463, 1, 0
  %v2521 = vsel %vm2464, 1, 0
  %v2522 = vsel %vm2465, 1, 0
  %v2523 = vsel %vm2466, 1, 0
  %v2524 = vsel %vm2467, 1, 0
  %v2525 = vsel %vm2468, 1, 0
  %v2526 = vsel %vm2469, 1, 0
  %v2527 = vsel %vm2470, 1, 0
  %v2528 = vsel %vm2471, 1, 0
  %v2529 = vsel %vm2472, 1, 0
  %v2530 = vsel %vm2473, 1, 0
  %v2531 = vsel %vm2474, 1, 0
  %v2532 = vsel %vm2475, 1, 0
  %v2533 = vsel %vm2476, 1, 0
  %v2534 = vsel %vm2477, 1, 0
  %v2535 = vsel %vm2478, 1, 0
  %v2536 = vsel %vm2479, 1, 0
  %v2537 = vsel %vm2480, 1, 0
  %v2538 = vcvt.s32.f32 %v2481
  %v2539 = vcvt.s32.f32 %v2482
  %v2540 = vcvt.s32.f32 %v2483
  %v2541 = vcvt.s32.f32 %v2484
  %v2542 = vcvt.s32.f32 %v2485
  %v2543 = vcvt.s32.f32 %v2486
  %v2544 = vcvt.s32.f32 %v2487
  %v2545 = vcvt.s32.f32 %v2488
  %v2546 = vcvt.s32.f32 %v2489
  %v2547 = vcvt.s32.f32 %v2490
  %v2548 = vcvt.s32.f32 %v2491
  %v2549 = vcvt.s32.f32 %v2492
  %v2550 = vcvt.s32.f32 %v2493
  %v2551 = vcvt.s32.f32 %v2494
  %v2552 = vcvt.s32.f32 %v2495
  %v2553 = vcvt.s32.f32 %v2496
  %v2554 = vcvt.s32.f32 %v2497
  %v2555 = vcvt.s32.f32 %v2498
  %v2556 = vcvt.s32.f32 %v2499
  %v2557 = vcvt.s32.f32 %v2500
  %v2558 = vcvt.s32.f32 %v2501
  %v2559 = vcvt.s32.f32 %v2502
  %v2560 = vcvt.s32.f32 %v2503
  %v2561 = vcvt.s32.f32 %v2504
  %v2562 = vcvt.s32.f32 %v2505
  %v2563 = vcvt.s32.f32 %v2506
  %v2564 = vcvt.s32.f32 %v2507
  %v2565 = vcvt.s32.f32 %v2508
  %v2566 = vcvt.s32.f32 %v2509
  %v2567 = vcvt.s32.f32 %v2510
  %v2568 = vcvt.s32.f32 %v2511
  %v2569 = vcvt.s32.f32 %v2512
  %v2570 = vcvt.s32.f32 %v2513
  %v2571 = vcvt.s32.f32 %v2514
  %v2572 = vcvt.s32.f32 %v2515
  %v2573 = vcvt.s32.f32 %v2516
  %v2574 = vcvt.s32.f32 %v2517
  %v2575 = vcvt.s32.f32 %v2518
  %v2576 = vcvt.s32.f32 %v2519
  %v2577 = vcvt.s32.f32 %v2520
  %v2578 = vcvt.s32.f32 %v2521
  %v2579 = vcvt.s32.f32 %v2522
  %v2580 = vcvt.s32.f32 %v2523
  %v2581 = vcvt.s32.f32 %v2524
  %v2582 = vcvt.s32.f32 %v2525
  %v2583 = vcvt.s32.f32 %v2526
  %v2584 = vcvt.s32.f32 %v2527
  %v2585 = vcvt.s32.f32 %v2528
  %v2586 = vcvt.s32.f32 %v2529
  %v2587 = vcvt.s32.f32 %v2530
  %v2588 = vcvt.s32.f32 %v2531
  %v2589 = vcvt.s32.f32 %v2532
  %v2590 = vcvt.s32.f32 %v2533
  %v2591 = vcvt.s32.f32 %v2534
  %v2592 = vcvt.s32.f32 %v2535
  %v2593 = vcvt.s32.f32 %v2536
  %v2594 = vcvt.s32.f32 %v2537
  %v2595 = vmul.f32 %v2309, %v2538
  %v2596 = vmul.f32 %v2310, %v2539
  %v2597 = vmul.f32 %v2311, %v2540
  %v2598 = vmul.f32 %v2312, %v2541
  %v2599 = vmul.f32 %v2313, %v2542
  %v2600 = vmul.f32 %v2314, %v2543
  %v2601 = vmul.f32 %v2315, %v2544
  %v2602 = vmul.f32 %v2316, %v2545
  %v2603 = vmul.f32 %v2317, %v2546
  %v2604 = vmul.f32 %v2318, %v2547
  %v2605 = vmul.f32 %v2319, %v2548
  %v2606 = vmul.f32 %v2320, %v2549
  %v2607 = vmul.f32 %v2321, %v2550
  %v2608 = vmul.f32 %v2322, %v2551
  %v2609 = vmul.f32 %v2323, %v2552
  %v2610 = vmul.f32 %v2324, %v2553
  %v2611 = vmul.f32 %v2325, %v2554
  %v2612 = vmul.f32 %v2326, %v2555
  %v2613 = vmul.f32 %v2327, %v2556
  %v2614 = vmul.f32 %v2328, %v2557
  %v2615 = vmul.f32 %v2329, %v2558
  %v2616 = vmul.f32 %v2330, %v2559
  %v2617 = vmul.f32 %v2331, %v2560
  %v2618 = vmul.f32 %v2332, %v2561
  %v2619 = vmul.f32 %v2333, %v2562
  %v2620 = vmul.f32 %v2334, %v2563
  %v2621 = vmul.f32 %v2335, %v2564
  %v2622 = vmul.f32 %v2336, %v2565
  %v2623 = vmul.f32 %v2337, %v2566
  %v2624 = vmul.f32 %v2338, %v2567
  %v2625 = vmul.f32 %v2339, %v2568
  %v2626 = vmul.f32 %v2340, %v2569
  %v2627 = vmul.f32 %v2341, %v2570
  %v2628 = vmul.f32 %v2342, %v2571
  %v2629 = vmul.f32 %v2343, %v2572
  %v2630 = vmul.f32 %v2344, %v2573
  %v2631 = vmul.f32 %v2345, %v2574
  %v2632 = vmul.f32 %v2346, %v2575
  %v2633 = vmul.f32 %v2347, %v2576
  %v2634 = vmul.f32 %v2348, %v2577
  %v2635 = vmul.f32 %v2349, %v2578
  %v2636 = vmul.f32 %v2350, %v2579
  %v2637 = vmul.f32 %v2351, %v2580
  %v2638 = vmul.f32 %v2352, %v2581
  %v2639 = vmul.f32 %v2353, %v2582
  %v2640 = vmul.f32 %v2354, %v2583
  %v2641 = vmul.f32 %v2355, %v2584
  %v2642 = vmul.f32 %v2356, %v2585
  %v2643 = vmul.f32 %v2357, %v2586
  %v2644 = vmul.f32 %v2358, %v2587
  %v2645 = vmul.f32 %v2359, %v2588
  %v2646 = vmul.f32 %v2360, %v2589
  %v2647 = vmul.f32 %v2361, %v2590
  %v2648 = vmul.f32 %v2362, %v2591
  %v2649 = vmul.f32 %v2363, %v2592
  %v2650 = vmul.f32 %v2364, %v2593
  %v2651 = vmul.f32 %v2365, %v2594
  %vm2652 = vcmask 130048
  %v2653 = vsel %vm2652, %v2595, 0.0
  %v2654 = vsel %vm2652, %v2596, 0.0
  %v2655 = vadd.f32 %v2653, %v2654
  %v2656 = vsel %vm2652, %v2597, 0.0
  %v2657 = vadd.f32 %v2655, %v2656
  %v2658 = vsel %vm2652, %v2598, 0.0
  %v2659 = vadd.f32 %v2657, %v2658
  %v2660 = vsel %vm2652, %v2599, 0.0
  %v2661 = vadd.f32 %v2659, %v2660
  %v2662 = vsel %vm2652, %v2600, 0.0
  %v2663 = vadd.f32 %v2661, %v2662
  %v2664 = vsel %vm2652, %v2601, 0.0
  %v2665 = vadd.f32 %v2663, %v2664
  %v2666 = vsel %vm2652, %v2602, 0.0
  %v2667 = vadd.f32 %v2665, %v2666
  %v2668 = vsel %vm2652, %v2603, 0.0
  %v2669 = vadd.f32 %v2667, %v2668
  %v2670 = vsel %vm2652, %v2604, 0.0
  %v2671 = vadd.f32 %v2669, %v2670
  %v2672 = vsel %vm2652, %v2605, 0.0
  %v2673 = vadd.f32 %v2671, %v2672
  %v2674 = vsel %vm2652, %v2606, 0.0
  %v2675 = vadd.f32 %v2673, %v2674
  %v2676 = vsel %vm2652, %v2607, 0.0
  %v2677 = vadd.f32 %v2675, %v2676
  %v2678 = vsel %vm2652, %v2608, 0.0
  %v2679 = vadd.f32 %v2677, %v2678
  %v2680 = vsel %vm2652, %v2609, 0.0
  %v2681 = vadd.f32 %v2679, %v2680
  %v2682 = vsel %vm2652, %v2610, 0.0
  %v2683 = vadd.f32 %v2681, %v2682
  %v2684 = vsel %vm2652, %v2611, 0.0
  %v2685 = vadd.f32 %v2683, %v2684
  %v2686 = vsel %vm2652, %v2612, 0.0
  %v2687 = vadd.f32 %v2685, %v2686
  %v2688 = vsel %vm2652, %v2613, 0.0
  %v2689 = vadd.f32 %v2687, %v2688
  %v2690 = vsel %vm2652, %v2614, 0.0
  %v2691 = vadd.f32 %v2689, %v2690
  %v2692 = vsel %vm2652, %v2615, 0.0
  %v2693 = vadd.f32 %v2691, %v2692
  %v2694 = vsel %vm2652, %v2616, 0.0
  %v2695 = vadd.f32 %v2693, %v2694
  %v2696 = vsel %vm2652, %v2617, 0.0
  %v2697 = vadd.f32 %v2695, %v2696
  %v2698 = vsel %vm2652, %v2618, 0.0
  %v2699 = vadd.f32 %v2697, %v2698
  %v2700 = vsel %vm2652, %v2619, 0.0
  %v2701 = vadd.f32 %v2699, %v2700
  %v2702 = vsel %vm2652, %v2620, 0.0
  %v2703 = vadd.f32 %v2701, %v2702
  %v2704 = vsel %vm2652, %v2621, 0.0
  %v2705 = vadd.f32 %v2703, %v2704
  %v2706 = vsel %vm2652, %v2622, 0.0
  %v2707 = vadd.f32 %v2705, %v2706
  %v2708 = vsel %vm2652, %v2623, 0.0
  %v2709 = vadd.f32 %v2707, %v2708
  %v2710 = vsel %vm2652, %v2624, 0.0
  %v2711 = vadd.f32 %v2709, %v2710
  %v2712 = vsel %vm2652, %v2625, 0.0
  %v2713 = vadd.f32 %v2711, %v2712
  %v2714 = vsel %vm2652, %v2626, 0.0
  %v2715 = vadd.f32 %v2713, %v2714
  %v2716 = vsel %vm2652, %v2627, 0.0
  %v2717 = vadd.f32 %v2715, %v2716
  %v2718 = vsel %vm2652, %v2628, 0.0
  %v2719 = vadd.f32 %v2717, %v2718
  %v2720 = vsel %vm2652, %v2629, 0.0
  %v2721 = vadd.f32 %v2719, %v2720
  %v2722 = vsel %vm2652, %v2630, 0.0
  %v2723 = vadd.f32 %v2721, %v2722
  %v2724 = vsel %vm2652, %v2631, 0.0
  %v2725 = vadd.f32 %v2723, %v2724
  %v2726 = vsel %vm2652, %v2632, 0.0
  %v2727 = vadd.f32 %v2725, %v2726
  %v2728 = vsel %vm2652, %v2633, 0.0
  %v2729 = vadd.f32 %v2727, %v2728
  %v2730 = vsel %vm2652, %v2634, 0.0
  %v2731 = vadd.f32 %v2729, %v2730
  %v2732 = vsel %vm2652, %v2635, 0.0
  %v2733 = vadd.f32 %v2731, %v2732
  %v2734 = vsel %vm2652, %v2636, 0.0
  %v2735 = vadd.f32 %v2733, %v2734
  %v2736 = vsel %vm2652, %v2637, 0.0
  %v2737 = vadd.f32 %v2735, %v2736
  %v2738 = vsel %vm2652, %v2638, 0.0
  %v2739 = vadd.f32 %v2737, %v2738
  %v2740 = vsel %vm2652, %v2639, 0.0
  %v2741 = vadd.f32 %v2739, %v2740
  %v2742 = vsel %vm2652, %v2640, 0.0
  %v2743 = vadd.f32 %v2741, %v2742
  %v2744 = vsel %vm2652, %v2641, 0.0
  %v2745 = vadd.f32 %v2743, %v2744
  %v2746 = vsel %vm2652, %v2642, 0.0
  %v2747 = vadd.f32 %v2745, %v2746
  %v2748 = vsel %vm2652, %v2643, 0.0
  %v2749 = vadd.f32 %v2747, %v2748
  %v2750 = vsel %vm2652, %v2644, 0.0
  %v2751 = vadd.f32 %v2749, %v2750
  %v2752 = vsel %vm2652, %v2645, 0.0
  %v2753 = vadd.f32 %v2751, %v2752
  %v2754 = vsel %vm2652, %v2646, 0.0
  %v2755 = vadd.f32 %v2753, %v2754
  %v2756 = vsel %vm2652, %v2647, 0.0
  %v2757 = vadd.f32 %v2755, %v2756
  %v2758 = vsel %vm2652, %v2648, 0.0
  %v2759 = vadd.f32 %v2757, %v2758
  %v2760 = vsel %vm2652, %v2649, 0.0
  %v2761 = vadd.f32 %v2759, %v2760
  %v2762 = vsel %vm2652, %v2650, 0.0
  %v2763 = vadd.f32 %v2761, %v2762
  %v2764 = vsel %vm2652, %v2651, 0.0
  %v2765 = vadd.f32 %v2763, %v2764
  %v2766 = vrot.slane %v2765, 4
  %v2767 = vadd.f32 %v2765, %v2766
  %v2768 = vrot.slane %v2767, 2
  %v2769 = vadd.f32 %v2767, %v2768
  %v2770 = vrot.slane %v2769, 1
  %v2771 = vadd.f32 %v2769, %v2770
  %v2772 = vmul.f32 %v2595, %v2309
  %v2773 = vmul.f32 %v2596, %v2310
  %v2774 = vmul.f32 %v2597, %v2311
  %v2775 = vmul.f32 %v2598, %v2312
  %v2776 = vmul.f32 %v2599, %v2313
  %v2777 = vmul.f32 %v2600, %v2314
  %v2778 = vmul.f32 %v2601, %v2315
  %v2779 = vmul.f32 %v2602, %v2316
  %v2780 = vmul.f32 %v2603, %v2317
  %v2781 = vmul.f32 %v2604, %v2318
  %v2782 = vmul.f32 %v2605, %v2319
  %v2783 = vmul.f32 %v2606, %v2320
  %v2784 = vmul.f32 %v2607, %v2321
  %v2785 = vmul.f32 %v2608, %v2322
  %v2786 = vmul.f32 %v2609, %v2323
  %v2787 = vmul.f32 %v2610, %v2324
  %v2788 = vmul.f32 %v2611, %v2325
  %v2789 = vmul.f32 %v2612, %v2326
  %v2790 = vmul.f32 %v2613, %v2327
  %v2791 = vmul.f32 %v2614, %v2328
  %v2792 = vmul.f32 %v2615, %v2329
  %v2793 = vmul.f32 %v2616, %v2330
  %v2794 = vmul.f32 %v2617, %v2331
  %v2795 = vmul.f32 %v2618, %v2332
  %v2796 = vmul.f32 %v2619, %v2333
  %v2797 = vmul.f32 %v2620, %v2334
  %v2798 = vmul.f32 %v2621, %v2335
  %v2799 = vmul.f32 %v2622, %v2336
  %v2800 = vmul.f32 %v2623, %v2337
  %v2801 = vmul.f32 %v2624, %v2338
  %v2802 = vmul.f32 %v2625, %v2339
  %v2803 = vmul.f32 %v2626, %v2340
  %v2804 = vmul.f32 %v2627, %v2341
  %v2805 = vmul.f32 %v2628, %v2342
  %v2806 = vmul.f32 %v2629, %v2343
  %v2807 = vmul.f32 %v2630, %v2344
  %v2808 = vmul.f32 %v2631, %v2345
  %v2809 = vmul.f32 %v2632, %v2346
  %v2810 = vmul.f32 %v2633, %v2347
  %v2811 = vmul.f32 %v2634, %v2348
  %v2812 = vmul.f32 %v2635, %v2349
  %v2813 = vmul.f32 %v2636, %v2350
  %v2814 = vmul.f32 %v2637, %v2351
  %v2815 = vmul.f32 %v2638, %v2352
  %v2816 = vmul.f32 %v2639, %v2353
  %v2817 = vmul.f32 %v2640, %v2354
  %v2818 = vmul.f32 %v2641, %v2355
  %v2819 = vmul.f32 %v2642, %v2356
  %v2820 = vmul.f32 %v2643, %v2357
  %v2821 = vmul.f32 %v2644, %v2358
  %v2822 = vmul.f32 %v2645, %v2359
  %v2823 = vmul.f32 %v2646, %v2360
  %v2824 = vmul.f32 %v2647, %v2361
  %v2825 = vmul.f32 %v2648, %v2362
  %v2826 = vmul.f32 %v2649, %v2363
  %v2827 = vmul.f32 %v2650, %v2364
  %v2828 = vmul.f32 %v2651, %v2365
  %v2829 = vsel %vm2652, %v2772, 0.0
  %v2830 = vsel %vm2652, %v2773, 0.0
  %v2831 = vadd.f32 %v2829, %v2830
  %v2832 = vsel %vm2652, %v2774, 0.0
  %v2833 = vadd.f32 %v2831, %v2832
  %v2834 = vsel %vm2652, %v2775, 0.0
  %v2835 = vadd.f32 %v2833, %v2834
  %v2836 = vsel %vm2652, %v2776, 0.0
  %v2837 = vadd.f32 %v2835, %v2836
  %v2838 = vsel %vm2652, %v2777, 0.0
  %v2839 = vadd.f32 %v2837, %v2838
  %v2840 = vsel %vm2652, %v2778, 0.0
  %v2841 = vadd.f32 %v2839, %v2840
  %v2842 = vsel %vm2652, %v2779, 0.0
  %v2843 = vadd.f32 %v2841, %v2842
  %v2844 = vsel %vm2652, %v2780, 0.0
  %v2845 = vadd.f32 %v2843, %v2844
  %v2846 = vsel %vm2652, %v2781, 0.0
  %v2847 = vadd.f32 %v2845, %v2846
  %v2848 = vsel %vm2652, %v2782, 0.0
  %v2849 = vadd.f32 %v2847, %v2848
  %v2850 = vsel %vm2652, %v2783, 0.0
  %v2851 = vadd.f32 %v2849, %v2850
  %v2852 = vsel %vm2652, %v2784, 0.0
  %v2853 = vadd.f32 %v2851, %v2852
  %v2854 = vsel %vm2652, %v2785, 0.0
  %v2855 = vadd.f32 %v2853, %v2854
  %v2856 = vsel %vm2652, %v2786, 0.0
  %v2857 = vadd.f32 %v2855, %v2856
  %v2858 = vsel %vm2652, %v2787, 0.0
  %v2859 = vadd.f32 %v2857, %v2858
  %v2860 = vsel %vm2652, %v2788, 0.0
  %v2861 = vadd.f32 %v2859, %v2860
  %v2862 = vsel %vm2652, %v2789, 0.0
  %v2863 = vadd.f32 %v2861, %v2862
  %v2864 = vsel %vm2652, %v2790, 0.0
  %v2865 = vadd.f32 %v2863, %v2864
  %v2866 = vsel %vm2652, %v2791, 0.0
  %v2867 = vadd.f32 %v2865, %v2866
  %v2868 = vsel %vm2652, %v2792, 0.0
  %v2869 = vadd.f32 %v2867, %v2868
  %v2870 = vsel %vm2652, %v2793, 0.0
  %v2871 = vadd.f32 %v2869, %v2870
  %v2872 = vsel %vm2652, %v2794, 0.0
  %v2873 = vadd.f32 %v2871, %v2872
  %v2874 = vsel %vm2652, %v2795, 0.0
  %v2875 = vadd.f32 %v2873, %v2874
  %v2876 = vsel %vm2652, %v2796, 0.0
  %v2877 = vadd.f32 %v2875, %v2876
  %v2878 = vsel %vm2652, %v2797, 0.0
  %v2879 = vadd.f32 %v2877, %v2878
  %v2880 = vsel %vm2652, %v2798, 0.0
  %v2881 = vadd.f32 %v2879, %v2880
  %v2882 = vsel %vm2652, %v2799, 0.0
  %v2883 = vadd.f32 %v2881, %v2882
  %v2884 = vsel %vm2652, %v2800, 0.0
  %v2885 = vadd.f32 %v2883, %v2884
  %v2886 = vsel %vm2652, %v2801, 0.0
  %v2887 = vadd.f32 %v2885, %v2886
  %v2888 = vsel %vm2652, %v2802, 0.0
  %v2889 = vadd.f32 %v2887, %v2888
  %v2890 = vsel %vm2652, %v2803, 0.0
  %v2891 = vadd.f32 %v2889, %v2890
  %v2892 = vsel %vm2652, %v2804, 0.0
  %v2893 = vadd.f32 %v2891, %v2892
  %v2894 = vsel %vm2652, %v2805, 0.0
  %v2895 = vadd.f32 %v2893, %v2894
  %v2896 = vsel %vm2652, %v2806, 0.0
  %v2897 = vadd.f32 %v2895, %v2896
  %v2898 = vsel %vm2652, %v2807, 0.0
  %v2899 = vadd.f32 %v2897, %v2898
  %v2900 = vsel %vm2652, %v2808, 0.0
  %v2901 = vadd.f32 %v2899, %v2900
  %v2902 = vsel %vm2652, %v2809, 0.0
  %v2903 = vadd.f32 %v2901, %v2902
  %v2904 = vsel %vm2652, %v2810, 0.0
  %v2905 = vadd.f32 %v2903, %v2904
  %v2906 = vsel %vm2652, %v2811, 0.0
  %v2907 = vadd.f32 %v2905, %v2906
  %v2908 = vsel %vm2652, %v2812, 0.0
  %v2909 = vadd.f32 %v2907, %v2908
  %v2910 = vsel %vm2652, %v2813, 0.0
  %v2911 = vadd.f32 %v2909, %v2910
  %v2912 = vsel %vm2652, %v2814, 0.0
  %v2913 = vadd.f32 %v2911, %v2912
  %v2914 = vsel %vm2652, %v2815, 0.0
  %v2915 = vadd.f32 %v2913, %v2914
  %v2916 = vsel %vm2652, %v2816, 0.0
  %v2917 = vadd.f32 %v2915, %v2916
  %v2918 = vsel %vm2652, %v2817, 0.0
  %v2919 = vadd.f32 %v2917, %v2918
  %v2920 = vsel %vm2652, %v2818, 0.0
  %v2921 = vadd.f32 %v2919, %v2920
  %v2922 = vsel %vm2652, %v2819, 0.0
  %v2923 = vadd.f32 %v2921, %v2922
  %v2924 = vsel %vm2652, %v2820, 0.0
  %v2925 = vadd.f32 %v2923, %v2924
  %v2926 = vsel %vm2652, %v2821, 0.0
  %v2927 = vadd.f32 %v2925, %v2926
  %v2928 = vsel %vm2652, %v2822, 0.0
  %v2929 = vadd.f32 %v2927, %v2928
  %v2930 = vsel %vm2652, %v2823, 0.0
  %v2931 = vadd.f32 %v2929, %v2930
  %v2932 = vsel %vm2652, %v2824, 0.0
  %v2933 = vadd.f32 %v2931, %v2932
  %v2934 = vsel %vm2652, %v2825, 0.0
  %v2935 = vadd.f32 %v2933, %v2934
  %v2936 = vsel %vm2652, %v2826, 0.0
  %v2937 = vadd.f32 %v2935, %v2936
  %v2938 = vsel %vm2652, %v2827, 0.0
  %v2939 = vadd.f32 %v2937, %v2938
  %v2940 = vsel %vm2652, %v2828, 0.0
  %v2941 = vadd.f32 %v2939, %v2940
  %v2942 = vrot.slane %v2941, 4
  %v2943 = vadd.f32 %v2941, %v2942
  %v2944 = vrot.slane %v2943, 2
  %v2945 = vadd.f32 %v2943, %v2944
  %v2946 = vrot.slane %v2945, 1
  %v2947 = vadd.f32 %v2945, %v2946
  %v2948 = vmul.f32 %v2771, 0.0022222223
  %v2949 = vmul.f32 %v2947, 0.0022222223
  %v2950 = vmul.f32 %v2948, %v2948
  %v2951 = vsub.f32 %v2949, %v2950
  %v2952 = vsub.f32 %v2309, %v2948
  %v2953 = vsub.f32 %v2310, %v2948
  %v2954 = vsub.f32 %v2311, %v2948
  %v2955 = vsub.f32 %v2312, %v2948
  %v2956 = vsub.f32 %v2313, %v2948
  %v2957 = vsub.f32 %v2314, %v2948
  %v2958 = vsub.f32 %v2315, %v2948
  %v2959 = vsub.f32 %v2316, %v2948
  %v2960 = vsub.f32 %v2317, %v2948
  %v2961 = vsub.f32 %v2318, %v2948
  %v2962 = vsub.f32 %v2319, %v2948
  %v2963 = vsub.f32 %v2320, %v2948
  %v2964 = vsub.f32 %v2321, %v2948
  %v2965 = vsub.f32 %v2322, %v2948
  %v2966 = vsub.f32 %v2323, %v2948
  %v2967 = vsub.f32 %v2324, %v2948
  %v2968 = vsub.f32 %v2325, %v2948
  %v2969 = vsub.f32 %v2326, %v2948
  %v2970 = vsub.f32 %v2327, %v2948
  %v2971 = vsub.f32 %v2328, %v2948
  %v2972 = vsub.f32 %v2329, %v2948
  %v2973 = vsub.f32 %v2330, %v2948
  %v2974 = vsub.f32 %v2331, %v2948
  %v2975 = vsub.f32 %v2332, %v2948
  %v2976 = vsub.f32 %v2333, %v2948
  %v2977 = vsub.f32 %v2334, %v2948
  %v2978 = vsub.f32 %v2335, %v2948
  %v2979 = vsub.f32 %v2336, %v2948
  %v2980 = vsub.f32 %v2337, %v2948
  %v2981 = vsub.f32 %v2338, %v2948
  %v2982 = vsub.f32 %v2339, %v2948
  %v2983 = vsub.f32 %v2340, %v2948
  %v2984 = vsub.f32 %v2341, %v2948
  %v2985 = vsub.f32 %v2342, %v2948
  %v2986 = vsub.f32 %v2343, %v2948
  %v2987 = vsub.f32 %v2344, %v2948
  %v2988 = vsub.f32 %v2345, %v2948
  %v2989 = vsub.f32 %v2346, %v2948
  %v2990 = vsub.f32 %v2347, %v2948
  %v2991 = vsub.f32 %v2348, %v2948
  %v2992 = vsub.f32 %v2349, %v2948
  %v2993 = vsub.f32 %v2350, %v2948
  %v2994 = vsub.f32 %v2351, %v2948
  %v2995 = vsub.f32 %v2352, %v2948
  %v2996 = vsub.f32 %v2353, %v2948
  %v2997 = vsub.f32 %v2354, %v2948
  %v2998 = vsub.f32 %v2355, %v2948
  %v2999 = vsub.f32 %v2356, %v2948
  %v3000 = vsub.f32 %v2357, %v2948
  %v3001 = vsub.f32 %v2358, %v2948
  %v3002 = vsub.f32 %v2359, %v2948
  %v3003 = vsub.f32 %v2360, %v2948
  %v3004 = vsub.f32 %v2361, %v2948
  %v3005 = vsub.f32 %v2362, %v2948
  %v3006 = vsub.f32 %v2363, %v2948
  %v3007 = vsub.f32 %v2364, %v2948
  %v3008 = vsub.f32 %v2365, %v2948
  %v3009 = vadd.f32 %v2951, 1e-05
  %v3010 = vrsqrt.pop %v3009
  %v3011 = vmul.f32 %v2952, %v3010
  %v3012 = vmul.f32 %v2953, %v3010
  %v3013 = vmul.f32 %v2954, %v3010
  %v3014 = vmul.f32 %v2955, %v3010
  %v3015 = vmul.f32 %v2956, %v3010
  %v3016 = vmul.f32 %v2957, %v3010
  %v3017 = vmul.f32 %v2958, %v3010
  %v3018 = vmul.f32 %v2959, %v3010
  %v3019 = vmul.f32 %v2960, %v3010
  %v3020 = vmul.f32 %v2961, %v3010
  %v3021 = vmul.f32 %v2962, %v3010
  %v3022 = vmul.f32 %v2963, %v3010
  %v3023 = vmul.f32 %v2964, %v3010
  %v3024 = vmul.f32 %v2965, %v3010
  %v3025 = vmul.f32 %v2966, %v3010
  %v3026 = vmul.f32 %v2967, %v3010
  %v3027 = vmul.f32 %v2968, %v3010
  %v3028 = vmul.f32 %v2969, %v3010
  %v3029 = vmul.f32 %v2970, %v3010
  %v3030 = vmul.f32 %v2971, %v3010
  %v3031 = vmul.f32 %v2972, %v3010
  %v3032 = vmul.f32 %v2973, %v3010
  %v3033 = vmul.f32 %v2974, %v3010
  %v3034 = vmul.f32 %v2975, %v3010
  %v3035 = vmul.f32 %v2976, %v3010
  %v3036 = vmul.f32 %v2977, %v3010
  %v3037 = vmul.f32 %v2978, %v3010
  %v3038 = vmul.f32 %v2979, %v3010
  %v3039 = vmul.f32 %v2980, %v3010
  %v3040 = vmul.f32 %v2981, %v3010
  %v3041 = vmul.f32 %v2982, %v3010
  %v3042 = vmul.f32 %v2983, %v3010
  %v3043 = vmul.f32 %v2984, %v3010
  %v3044 = vmul.f32 %v2985, %v3010
  %v3045 = vmul.f32 %v2986, %v3010
  %v3046 = vmul.f32 %v2987, %v3010
  %v3047 = vmul.f32 %v2988, %v3010
  %v3048 = vmul.f32 %v2989, %v3010
  %v3049 = vmul.f32 %v2990, %v3010
  %v3050 = vmul.f32 %v2991, %v3010
  %v3051 = vmul.f32 %v2992, %v3010
  %v3052 = vmul.f32 %v2993, %v3010
  %v3053 = vmul.f32 %v2994, %v3010
  %v3054 = vmul.f32 %v2995, %v3010
  %v3055 = vmul.f32 %v2996, %v3010
  %v3056 = vmul.f32 %v2997, %v3010
  %v3057 = vmul.f32 %v2998, %v3010
  %v3058 = vmul.f32 %v2999, %v3010
  %v3059 = vmul.f32 %v3000, %v3010
  %v3060 = vmul.f32 %v3001, %v3010
  %v3061 = vmul.f32 %v3002, %v3010
  %v3062 = vmul.f32 %v3003, %v3010
  %v3063 = vmul.f32 %v3004, %v3010
  %v3064 = vmul.f32 %v3005, %v3010
  %v3065 = vmul.f32 %v3006, %v3010
  %v3066 = vmul.f32 %v3007, %v3010
  %v3067 = vmul.f32 %v3008, %v3010
  %v3069 = vlaneseq
  %v3070 = vshrl.u32 %v3069, 7
  %v3071 = vsub.s32 0, %v3070
  %v3072 = vrot.slane %v254, %v3071
  %v3074 = vmul.f32 %v3011, %v3072
  %v3075 = vmul.f32 %v3012, %v3072
  %v3076 = vmul.f32 %v3013, %v3072
  %v3077 = vmul.f32 %v3014, %v3072
  %v3078 = vmul.f32 %v3015, %v3072
  %v3079 = vmul.f32 %v3016, %v3072
  %v3080 = vmul.f32 %v3017, %v3072
  %v3081 = vmul.f32 %v3018, %v3072
  %v3082 = vmul.f32 %v3019, %v3072
  %v3083 = vmul.f32 %v3020, %v3072
  %v3084 = vmul.f32 %v3021, %v3072
  %v3085 = vmul.f32 %v3022, %v3072
  %v3086 = vmul.f32 %v3023, %v3072
  %v3087 = vmul.f32 %v3024, %v3072
  %v3088 = vmul.f32 %v3025, %v3072
  %v3089 = vmul.f32 %v3026, %v3072
  %v3090 = vmul.f32 %v3027, %v3072
  %v3091 = vmul.f32 %v3028, %v3072
  %v3092 = vmul.f32 %v3029, %v3072
  %v3093 = vmul.f32 %v3030, %v3072
  %v3094 = vmul.f32 %v3031, %v3072
  %v3095 = vmul.f32 %v3032, %v3072
  %v3096 = vmul.f32 %v3033, %v3072
  %v3097 = vmul.f32 %v3034, %v3072
  %v3098 = vmul.f32 %v3035, %v3072
  %v3099 = vmul.f32 %v3036, %v3072
  %v3100 = vmul.f32 %v3037, %v3072
  %v3101 = vmul.f32 %v3038, %v3072
  %v3102 = vmul.f32 %v3039, %v3072
  %v3103 = vmul.f32 %v3040, %v3072
  %v3104 = vmul.f32 %v3041, %v3072
  %v3105 = vmul.f32 %v3042, %v3072
  %v3106 = vmul.f32 %v3043, %v3072
  %v3107 = vmul.f32 %v3044, %v3072
  %v3108 = vmul.f32 %v3045, %v3072
  %v3109 = vmul.f32 %v3046, %v3072
  %v3110 = vmul.f32 %v3047, %v3072
  %v3111 = vmul.f32 %v3048, %v3072
  %v3112 = vmul.f32 %v3049, %v3072
  %v3113 = vmul.f32 %v3050, %v3072
  %v3114 = vmul.f32 %v3051, %v3072
  %v3115 = vmul.f32 %v3052, %v3072
  %v3116 = vmul.f32 %v3053, %v3072
  %v3117 = vmul.f32 %v3054, %v3072
  %v3118 = vmul.f32 %v3055, %v3072
  %v3119 = vmul.f32 %v3056, %v3072
  %v3120 = vmul.f32 %v3057, %v3072
  %v3121 = vmul.f32 %v3058, %v3072
  %v3122 = vmul.f32 %v3059, %v3072
  %v3123 = vmul.f32 %v3060, %v3072
  %v3124 = vmul.f32 %v3061, %v3072
  %v3125 = vmul.f32 %v3062, %v3072
  %v3126 = vmul.f32 %v3063, %v3072
  %v3127 = vmul.f32 %v3064, %v3072
  %v3128 = vmul.f32 %v3065, %v3072
  %v3129 = vmul.f32 %v3066, %v3072
  %v3130 = vmul.f32 %v3067, %v3072
  %v3132 = vlaneseq
  %v3133 = vshrl.u32 %v3132, 7
  %v3134 = vsub.s32 0, %v3133
  %v3135 = vrot.slane %v255, %v3134
  %v3137 = vadd.f32 %v3074, %v3135
  %v3138 = vadd.f32 %v3075, %v3135
  %v3139 = vadd.f32 %v3076, %v3135
  %v3140 = vadd.f32 %v3077, %v3135
  %v3141 = vadd.f32 %v3078, %v3135
  %v3142 = vadd.f32 %v3079, %v3135
  %v3143 = vadd.f32 %v3080, %v3135
  %v3144 = vadd.f32 %v3081, %v3135
  %v3145 = vadd.f32 %v3082, %v3135
  %v3146 = vadd.f32 %v3083, %v3135
  %v3147 = vadd.f32 %v3084, %v3135
  %v3148 = vadd.f32 %v3085, %v3135
  %v3149 = vadd.f32 %v3086, %v3135
  %v3150 = vadd.f32 %v3087, %v3135
  %v3151 = vadd.f32 %v3088, %v3135
  %v3152 = vadd.f32 %v3089, %v3135
  %v3153 = vadd.f32 %v3090, %v3135
  %v3154 = vadd.f32 %v3091, %v3135
  %v3155 = vadd.f32 %v3092, %v3135
  %v3156 = vadd.f32 %v3093, %v3135
  %v3157 = vadd.f32 %v3094, %v3135
  %v3158 = vadd.f32 %v3095, %v3135
  %v3159 = vadd.f32 %v3096, %v3135
  %v3160 = vadd.f32 %v3097, %v3135
  %v3161 = vadd.f32 %v3098, %v3135
  %v3162 = vadd.f32 %v3099, %v3135
  %v3163 = vadd.f32 %v3100, %v3135
  %v3164 = vadd.f32 %v3101, %v3135
  %v3165 = vadd.f32 %v3102, %v3135
  %v3166 = vadd.f32 %v3103, %v3135
  %v3167 = vadd.f32 %v3104, %v3135
  %v3168 = vadd.f32 %v3105, %v3135
  %v3169 = vadd.f32 %v3106, %v3135
  %v3170 = vadd.f32 %v3107, %v3135
  %v3171 = vadd.f32 %v3108, %v3135
  %v3172 = vadd.f32 %v3109, %v3135
  %v3173 = vadd.f32 %v3110, %v3135
  %v3174 = vadd.f32 %v3111, %v3135
  %v3175 = vadd.f32 %v3112, %v3135
  %v3176 = vadd.f32 %v3113, %v3135
  %v3177 = vadd.f32 %v3114, %v3135
  %v3178 = vadd.f32 %v3115, %v3135
  %v3179 = vadd.f32 %v3116, %v3135
  %v3180 = vadd.f32 %v3117, %v3135
  %v3181 = vadd.f32 %v3118, %v3135
  %v3182 = vadd.f32 %v3119, %v3135
  %v3183 = vadd.f32 %v3120, %v3135
  %v3184 = vadd.f32 %v3121, %v3135
  %v3185 = vadd.f32 %v3122, %v3135
  %v3186 = vadd.f32 %v3123, %v3135
  %v3187 = vadd.f32 %v3124, %v3135
  %v3188 = vadd.f32 %v3125, %v3135
  %v3189 = vadd.f32 %v3126, %v3135
  %v3190 = vadd.f32 %v3127, %v3135
  %v3191 = vadd.f32 %v3128, %v3135
  %v3192 = vadd.f32 %v3129, %v3135
  %v3193 = vadd.f32 %v3130, %v3135
  %v3194 = vmax.f32 %v3137, 0.0
  %v3195 = vmax.f32 %v3138, 0.0
  %v3196 = vmax.f32 %v3139, 0.0
  %v3197 = vmax.f32 %v3140, 0.0
  %v3198 = vmax.f32 %v3141, 0.0
  %v3199 = vmax.f32 %v3142, 0.0
  %v3200 = vmax.f32 %v3143, 0.0
  %v3201 = vmax.f32 %v3144, 0.0
  %v3202 = vmax.f32 %v3145, 0.0
  %v3203 = vmax.f32 %v3146, 0.0
  %v3204 = vmax.f32 %v3147, 0.0
  %v3205 = vmax.f32 %v3148, 0.0
  %v3206 = vmax.f32 %v3149, 0.0
  %v3207 = vmax.f32 %v3150, 0.0
  %v3208 = vmax.f32 %v3151, 0.0
  %v3209 = vmax.f32 %v3152, 0.0
  %v3210 = vmax.f32 %v3153, 0.0
  %v3211 = vmax.f32 %v3154, 0.0
  %v3212 = vmax.f32 %v3155, 0.0
  %v3213 = vmax.f32 %v3156, 0.0
  %v3214 = vmax.f32 %v3157, 0.0
  %v3215 = vmax.f32 %v3158, 0.0
  %v3216 = vmax.f32 %v3159, 0.0
  %v3217 = vmax.f32 %v3160, 0.0
  %v3218 = vmax.f32 %v3161, 0.0
  %v3219 = vmax.f32 %v3162, 0.0
  %v3220 = vmax.f32 %v3163, 0.0
  %v3221 = vmax.f32 %v3164, 0.0
  %v3222 = vmax.f32 %v3165, 0.0
  %v3223 = vmax.f32 %v3166, 0.0
  %v3224 = vmax.f32 %v3167, 0.0
  %v3225 = vmax.f32 %v3168, 0.0
  %v3226 = vmax.f32 %v3169, 0.0
  %v3227 = vmax.f32 %v3170, 0.0
  %v3228 = vmax.f32 %v3171, 0.0
  %v3229 = vmax.f32 %v3172, 0.0
  %v3230 = vmax.f32 %v3173, 0.0
  %v3231 = vmax.f32 %v3174, 0.0
  %v3232 = vmax.f32 %v3175, 0.0
  %v3233 = vmax.f32 %v3176, 0.0
  %v3234 = vmax.f32 %v3177, 0.0
  %v3235 = vmax.f32 %v3178, 0.0
  %v3236 = vmax.f32 %v3179, 0.0
  %v3237 = vmax.f32 %v3180, 0.0
  %v3238 = vmax.f32 %v3181, 0.0
  %v3239 = vmax.f32 %v3182, 0.0
  %v3240 = vmax.f32 %v3183, 0.0
  %v3241 = vmax.f32 %v3184, 0.0
  %v3242 = vmax.f32 %v3185, 0.0
  %v3243 = vmax.f32 %v3186, 0.0
  %v3244 = vmax.f32 %v3187, 0.0
  %v3245 = vmax.f32 %v3188, 0.0
  %v3246 = vmax.f32 %v3189, 0.0
  %v3247 = vmax.f32 %v3190, 0.0
  %v3248 = vmax.f32 %v3191, 0.0
  %v3249 = vmax.f32 %v3192, 0.0
  %v3250 = vmax.f32 %v3193, 0.0
  %v3251 = vpack.c.bf16 %v3195, %v3194
  %v3252 = vpack.c.bf16 %v3197, %v3196
  %v3253 = vpack.c.bf16 %v3199, %v3198
  %v3254 = vpack.c.bf16 %v3201, %v3200
  %v3255 = vpack.c.bf16 %v3203, %v3202
  %v3256 = vpack.c.bf16 %v3205, %v3204
  %v3257 = vpack.c.bf16 %v3207, %v3206
  %v3258 = vpack.c.bf16 %v3209, %v3208
  %v3259 = vpack.c.bf16 %v3211, %v3210
  %v3260 = vpack.c.bf16 %v3213, %v3212
  %v3261 = vpack.c.bf16 %v3215, %v3214
  %v3262 = vpack.c.bf16 %v3217, %v3216
  %v3263 = vpack.c.bf16 %v3219, %v3218
  %v3264 = vpack.c.bf16 %v3221, %v3220
  %v3265 = vpack.c.bf16 %v3223, %v3222
  %v3266 = vpack.c.bf16 %v3225, %v3224
  %v3267 = vpack.c.bf16 %v3227, %v3226
  %v3268 = vpack.c.bf16 %v3229, %v3228
  %v3269 = vpack.c.bf16 %v3231, %v3230
  %v3270 = vpack.c.bf16 %v3233, %v3232
  %v3271 = vpack.c.bf16 %v3235, %v3234
  %v3272 = vpack.c.bf16 %v3237, %v3236
  %v3273 = vpack.c.bf16 %v3239, %v3238
  %v3274 = vpack.c.bf16 %v3241, %v3240
  %v3275 = vpack.c.bf16 %v3243, %v3242
  %v3276 = vpack.c.bf16 %v3245, %v3244
  %v3277 = vpack.c.bf16 %v3247, %v3246
  %v3278 = vpack.c.bf16 %v3249, %v3248
  %v3279 = vpack.c.bf16 %v3250, %v3250
  %v3309 = vunpack.c.l.b16 %v3251
  %v3310 = vunpack.c.h.b16 %v3251
  %v3311 = vunpack.c.l.b16 %v3252
  %v3312 = vunpack.c.h.b16 %v3252
  %v3313 = vunpack.c.l.b16 %v3253
  %v3314 = vunpack.c.h.b16 %v3253
  %v3315 = vunpack.c.l.b16 %v3254
  %v3316 = vunpack.c.h.b16 %v3254
  %v3317 = vunpack.c.l.b16 %v3255
  %v3318 = vunpack.c.h.b16 %v3255
  %v3319 = vunpack.c.l.b16 %v3256
  %v3320 = vunpack.c.h.b16 %v3256
  %v3321 = vunpack.c.l.b16 %v3257
  %v3322 = vunpack.c.h.b16 %v3257
  %v3323 = vunpack.c.l.b16 %v3258
  %v3324 = vunpack.c.h.b16 %v3258
  %v3325 = vunpack.c.l.b16 %v3259
  %v3326 = vunpack.c.h.b16 %v3259
  %v3327 = vunpack.c.l.b16 %v3260
  %v3328 = vunpack.c.h.b16 %v3260
  %v3329 = vunpack.c.l.b16 %v3261
  %v3330 = vunpack.c.h.b16 %v3261
  %v3331 = vunpack.c.l.b16 %v3262
  %v3332 = vunpack.c.h.b16 %v3262
  %v3333 = vunpack.c.l.b16 %v3263
  %v3334 = vunpack.c.h.b16 %v3263
  %v3335 = vunpack.c.l.b16 %v3264
  %v3336 = vunpack.c.h.b16 %v3264
  %v3337 = vunpack.c.l.b16 %v3265
  %v3338 = vunpack.c.h.b16 %v3265
  %v3339 = vunpack.c.l.b16 %v3266
  %v3340 = vunpack.c.h.b16 %v3266
  %v3341 = vunpack.c.l.b16 %v3267
  %v3342 = vunpack.c.h.b16 %v3267
  %v3343 = vunpack.c.l.b16 %v3268
  %v3344 = vunpack.c.h.b16 %v3268
  %v3345 = vunpack.c.l.b16 %v3269
  %v3346 = vunpack.c.h.b16 %v3269
  %v3347 = vunpack.c.l.b16 %v3270
  %v3348 = vunpack.c.h.b16 %v3270
  %v3349 = vunpack.c.l.b16 %v3271
  %v3350 = vunpack.c.h.b16 %v3271
  %v3351 = vunpack.c.l.b16 %v3272
  %v3352 = vunpack.c.h.b16 %v3272
  %v3353 = vunpack.c.l.b16 %v3273
  %v3354 = vunpack.c.h.b16 %v3273
  %v3355 = vunpack.c.l.b16 %v3274
  %v3356 = vunpack.c.h.b16 %v3274
  %v3357 = vunpack.c.l.b16 %v3275
  %v3358 = vunpack.c.h.b16 %v3275
  %v3359 = vunpack.c.l.b16 %v3276
  %v3360 = vunpack.c.h.b16 %v3276
  %v3361 = vunpack.c.l.b16 %v3277
  %v3362 = vunpack.c.h.b16 %v3277
  %v3363 = vunpack.c.l.b16 %v3278
  %v3364 = vunpack.c.h.b16 %v3278
  %v3365 = vunpack.c.l.b16 %v3279
  %v3366 = vpack.c.b16 %v3309, %v3309
  %v3367 = vpack.c.b16 %v3310, %v3310
  %v3368 = vpack.c.b16 %v3311, %v3311
  %v3369 = vpack.c.b16 %v3312, %v3312
  %v3370 = vpack.c.b16 %v3313, %v3313
  %v3371 = vpack.c.b16 %v3314, %v3314
  %v3372 = vpack.c.b16 %v3315, %v3315
  %v3373 = vpack.c.b16 %v3316, %v3316
  %v3374 = vpack.c.b16 %v3317, %v3317
  %v3375 = vpack.c.b16 %v3318, %v3318
  %v3376 = vpack.c.b16 %v3319, %v3319
  %v3377 = vpack.c.b16 %v3320, %v3320
  %v3378 = vpack.c.b16 %v3321, %v3321
  %v3379 = vpack.c.b16 %v3322, %v3322
  %v3380 = vpack.c.b16 %v3323, %v3323
  %v3381 = vpack.c.b16 %v3324, %v3324
  %v3382 = vpack.c.b16 %v3325, %v3325
  %v3383 = vpack.c.b16 %v3326, %v3326
  %v3384 = vpack.c.b16 %v3327, %v3327
  %v3385 = vpack.c.b16 %v3328, %v3328
  %v3386 = vpack.c.b16 %v3329, %v3329
  %v3387 = vpack.c.b16 %v3330, %v3330
  %v3388 = vpack.c.b16 %v3331, %v3331
  %v3389 = vpack.c.b16 %v3332, %v3332
  %v3390 = vpack.c.b16 %v3333, %v3333
  %v3391 = vpack.c.b16 %v3334, %v3334
  %v3392 = vpack.c.b16 %v3335, %v3335
  %v3393 = vpack.c.b16 %v3336, %v3336
  %v3394 = vpack.c.b16 %v3337, %v3337
  %v3395 = vpack.c.b16 %v3338, %v3338
  %v3396 = vpack.c.b16 %v3339, %v3339
  %v3397 = vpack.c.b16 %v3340, %v3340
  %v3398 = vpack.c.b16 %v3341, %v3341
  %v3399 = vpack.c.b16 %v3342, %v3342
  %v3400 = vpack.c.b16 %v3343, %v3343
  %v3401 = vpack.c.b16 %v3344, %v3344
  %v3402 = vpack.c.b16 %v3345, %v3345
  %v3403 = vpack.c.b16 %v3346, %v3346
  %v3404 = vpack.c.b16 %v3347, %v3347
  %v3405 = vpack.c.b16 %v3348, %v3348
  %v3406 = vpack.c.b16 %v3349, %v3349
  %v3407 = vpack.c.b16 %v3350, %v3350
  %v3408 = vpack.c.b16 %v3351, %v3351
  %v3409 = vpack.c.b16 %v3352, %v3352
  %v3410 = vpack.c.b16 %v3353, %v3353
  %v3411 = vpack.c.b16 %v3354, %v3354
  %v3412 = vpack.c.b16 %v3355, %v3355
  %v3413 = vpack.c.b16 %v3356, %v3356
  %v3414 = vpack.c.b16 %v3357, %v3357
  %v3415 = vpack.c.b16 %v3358, %v3358
  %v3416 = vpack.c.b16 %v3359, %v3359
  %v3417 = vpack.c.b16 %v3360, %v3360
  %v3418 = vpack.c.b16 %v3361, %v3361
  %v3419 = vpack.c.b16 %v3362, %v3362
  %v3420 = vpack.c.b16 %v3363, %v3363
  %v3421 = vpack.c.b16 %v3364, %v3364
  %v3422 = vpack.c.b16 %v3365, %v3365
  %vm3480 = vcmask 125952
  %3481 = vst.msk [vmem:[%s5] sm:$0xf] %vm3480, %v3366
  %3482 = vst.msk [vmem:[%s5 + $0x4] sm:$0xf] %vm3480, %v3367
  %3483 = vst.msk [vmem:[%s5 + $0x8] sm:$0xf] %vm3480, %v3368
  %3484 = vst.msk [vmem:[%s5 + $0xc] sm:$0xf] %vm3480, %v3369
  %3485 = vst.msk [vmem:[%s5 + $0x10] sm:$0xf] %vm3480, %v3370
  %3486 = vst.msk [vmem:[%s5 + $0x14] sm:$0xf] %vm3480, %v3371
  %3487 = vst.msk [vmem:[%s5 + $0x18] sm:$0xf] %vm3480, %v3372
  %3488 = vst.msk [vmem:[%s5 + $0x1c] sm:$0xf] %vm3480, %v3373
  %3489 = vst.msk [vmem:[%s5 + $0x20] sm:$0xf] %vm3480, %v3374
  %3490 = vst.msk [vmem:[%s5 + $0x24] sm:$0xf] %vm3480, %v3375
  %3491 = vst.msk [vmem:[%s5 + $0x28] sm:$0xf] %vm3480, %v3376
  %3492 = vst.msk [vmem:[%s5 + $0x2c] sm:$0xf] %vm3480, %v3377
  %3493 = vst.msk [vmem:[%s5 + $0x30] sm:$0xf] %vm3480, %v3378
  %3494 = vst.msk [vmem:[%s5 + $0x34] sm:$0xf] %vm3480, %v3379
  %3495 = vst.msk [vmem:[%s5 + $0x38] sm:$0xf] %vm3480, %v3380
  %3496 = vst.msk [vmem:[%s5 + $0x3c] sm:$0xf] %vm3480, %v3381
  %3497 = vst.msk [vmem:[%s5 + $0x40] sm:$0xf] %vm3480, %v3382
  %3498 = vst.msk [vmem:[%s5 + $0x44] sm:$0xf] %vm3480, %v3383
  %3499 = vst.msk [vmem:[%s5 + $0x48] sm:$0xf] %vm3480, %v3384
  %3500 = vst.msk [vmem:[%s5 + $0x4c] sm:$0xf] %vm3480, %v3385
  %3501 = vst.msk [vmem:[%s5 + $0x50] sm:$0xf] %vm3480, %v3386
  %3502 = vst.msk [vmem:[%s5 + $0x54] sm:$0xf] %vm3480, %v3387
  %3503 = vst.msk [vmem:[%s5 + $0x58] sm:$0xf] %vm3480, %v3388
  %3504 = vst.msk [vmem:[%s5 + $0x5c] sm:$0xf] %vm3480, %v3389
  %3505 = vst.msk [vmem:[%s5 + $0x60] sm:$0xf] %vm3480, %v3390
  %3506 = vst.msk [vmem:[%s5 + $0x64] sm:$0xf] %vm3480, %v3391
  %3507 = vst.msk [vmem:[%s5 + $0x68] sm:$0xf] %vm3480, %v3392
  %3508 = vst.msk [vmem:[%s5 + $0x6c] sm:$0xf] %vm3480, %v3393
  %3509 = vst.msk [vmem:[%s5 + $0x70] sm:$0xf] %vm3480, %v3394
  %3510 = vst.msk [vmem:[%s5 + $0x74] sm:$0xf] %vm3480, %v3395
  %3511 = vst.msk [vmem:[%s5 + $0x78] sm:$0xf] %vm3480, %v3396
  %3512 = vst.msk [vmem:[%s5 + $0x7c] sm:$0xf] %vm3480, %v3397
  %3513 = vst.msk [vmem:[%s5 + $0x80] sm:$0xf] %vm3480, %v3398
  %3514 = vst.msk [vmem:[%s5 + $0x84] sm:$0xf] %vm3480, %v3399
  %3515 = vst.msk [vmem:[%s5 + $0x88] sm:$0xf] %vm3480, %v3400
  %3516 = vst.msk [vmem:[%s5 + $0x8c] sm:$0xf] %vm3480, %v3401
  %3517 = vst.msk [vmem:[%s5 + $0x90] sm:$0xf] %vm3480, %v3402
  %3518 = vst.msk [vmem:[%s5 + $0x94] sm:$0xf] %vm3480, %v3403
  %3519 = vst.msk [vmem:[%s5 + $0x98] sm:$0xf] %vm3480, %v3404
  %3520 = vst.msk [vmem:[%s5 + $0x9c] sm:$0xf] %vm3480, %v3405
  %3521 = vst.msk [vmem:[%s5 + $0xa0] sm:$0xf] %vm3480, %v3406
  %3522 = vst.msk [vmem:[%s5 + $0xa4] sm:$0xf] %vm3480, %v3407
  %3523 = vst.msk [vmem:[%s5 + $0xa8] sm:$0xf] %vm3480, %v3408
  %3524 = vst.msk [vmem:[%s5 + $0xac] sm:$0xf] %vm3480, %v3409
  %3525 = vst.msk [vmem:[%s5 + $0xb0] sm:$0xf] %vm3480, %v3410
  %3526 = vst.msk [vmem:[%s5 + $0xb4] sm:$0xf] %vm3480, %v3411
  %3527 = vst.msk [vmem:[%s5 + $0xb8] sm:$0xf] %vm3480, %v3412
  %3528 = vst.msk [vmem:[%s5 + $0xbc] sm:$0xf] %vm3480, %v3413
  %3529 = vst.msk [vmem:[%s5 + $0xc0] sm:$0xf] %vm3480, %v3414
  %3530 = vst.msk [vmem:[%s5 + $0xc4] sm:$0xf] %vm3480, %v3415
  %3531 = vst.msk [vmem:[%s5 + $0xc8] sm:$0xf] %vm3480, %v3416
  %3532 = vst.msk [vmem:[%s5 + $0xcc] sm:$0xf] %vm3480, %v3417
  %3533 = vst.msk [vmem:[%s5 + $0xd0] sm:$0xf] %vm3480, %v3418
  %3534 = vst.msk [vmem:[%s5 + $0xd4] sm:$0xf] %vm3480, %v3419
  %3535 = vst.msk [vmem:[%s5 + $0xd8] sm:$0xf] %vm3480, %v3420
  %3536 = vst.msk [vmem:[%s5 + $0xdc] sm:$0xf] %vm3480, %v3421
  %3537 = vst.msk [vmem:[%s5 + $0xe0] sm:$0xf] %vm3480, %v3422
  // Predicated region
  $region22: #{net_forward.3} parent=0 // pred_check
    _
  $region23: #{net_forward.3} parent=0 // pred_check_branch
    %3539 = sbr.rel (0) target = $region25
  $region24: #{net_forward.3} parent=0 // pred_region
    _
  $region25: #{net_forward.3} parent=0 // pred_fallthru
    _
  // Predicated region
  $region26: #{net_forward.3} parent=0 // pred_check
    _
  $region27: #{net_forward.3} parent=0 // pred_check_branch
    %3541 = sbr.rel (0) target = $region29
  $region28: #{net_forward.3} parent=0 // pred_region
    _
  $region29: #{net_forward.3} parent=0 // pred_fallthru
    _

// kernel: net_forward.4
$region0: #{net_forward.4}
  #allocation0 [shape = 'u32[]', space=smem, size = 0x4, offset = 0x4, fixed_abs, tag = 'smem constant byte address 0x4 - core index']
  #allocation1 [shape = 'u32[144,128]{1,0:T(1,128)}', space=vmem, size = 0x12000, scoped, tag = 'internal scratch']
  %s0 = inlined_call_operand.vmem [shape: bf16[288,144], index: 0, kind: input, shape index: {}]
  %s1 = inlined_call_operand.vmem [shape: bf16[144,64], index: 1, kind: input, shape index: {}]
  %s2 = inlined_call_operand.vmem [shape: f32[1,64], index: 2, kind: input, shape index: {}]
  %s3 = inlined_call_operand.vmem [shape: f32[1,64], index: 3, kind: input, shape index: {}]
  %s4 = inlined_call_operand.vmem [shape: f32[1,64], index: 4, kind: input, shape index: {}]
  %s5 = inlined_call_operand.vmem [shape: bf16[72,64], index: 5, kind: output, shape index: {}]
  %s6 = sld [smem:[#allocation0]]
  $region30: #{net_forward.4} parent=0
    _
  %s8 = ssub.s32 1, %s6
  %s9 = scalar_select 0, %s8, %s6
  // Predicated region
  $region2: #{net_forward.4} parent=0 // pred_check
    _
  $region3: #{net_forward.4} parent=0 // pred_check_branch
    %11 = sbr.rel (0) target = $region5
  $region4: #{net_forward.4} parent=0 // pred_region
    _
  $region5: #{net_forward.4} parent=0 // pred_fallthru
    _
  // Predicated region
  $region6: #{net_forward.4} parent=0 // pred_check
    _
  $region7: #{net_forward.4} parent=0 // pred_check_branch
    %13 = sbr.rel (0) target = $region9
  $region8: #{net_forward.4} parent=0 // pred_region
    _
  $region9: #{net_forward.4} parent=0 // pred_fallthru
    _
  // Predicated region
  $region10: #{net_forward.4} parent=0 // pred_check
    _
  $region11: #{net_forward.4} parent=0 // pred_check_branch
    %15 = sbr.rel (0) target = $region13
  $region12: #{net_forward.4} parent=0 // pred_region
    _
  $region13: #{net_forward.4} parent=0 // pred_fallthru
    _
  // Predicated region
  $region14: #{net_forward.4} parent=0 // pred_check
    _
  $region15: #{net_forward.4} parent=0 // pred_check_branch
    %17 = sbr.rel (0) target = $region17
  $region16: #{net_forward.4} parent=0 // pred_region
    _
  $region17: #{net_forward.4} parent=0 // pred_fallthru
    _
  // Predicated region
  $region18: #{net_forward.4} parent=0 // pred_check
    _
  $region19: #{net_forward.4} parent=0 // pred_check_branch
    %19 = sbr.rel (0) target = $region21
  $region20: #{net_forward.4} parent=0 // pred_region
    _
  $region21: #{net_forward.4} parent=0 // pred_fallthru
    _
  %v21 = vld [vmem:[%s0] sm:$0xff]
  %v22 = vld [vmem:[%s0 + $0x8] sm:$0xff]
  %v23 = vld [vmem:[%s0 + $0x10] sm:$0xff]
  %v24 = vld [vmem:[%s0 + $0x18] sm:$0xff]
  %v25 = vld [vmem:[%s0 + $0x20] sm:$0xff]
  %v26 = vld [vmem:[%s0 + $0x28] sm:$0xff]
  %v27 = vld [vmem:[%s0 + $0x30] sm:$0xff]
  %v28 = vld [vmem:[%s0 + $0x38] sm:$0xff]
  %v29 = vld [vmem:[%s0 + $0x40] sm:$0xff]
  %v30 = vld [vmem:[%s0 + $0x48] sm:$0xff]
  %v31 = vld [vmem:[%s0 + $0x50] sm:$0xff]
  %v32 = vld [vmem:[%s0 + $0x58] sm:$0xff]
  %v33 = vld [vmem:[%s0 + $0x60] sm:$0xff]
  %v34 = vld [vmem:[%s0 + $0x68] sm:$0xff]
  %v35 = vld [vmem:[%s0 + $0x70] sm:$0xff]
  %v36 = vld [vmem:[%s0 + $0x78] sm:$0xff]
  %v37 = vld [vmem:[%s0 + $0x80] sm:$0xff]
  %v38 = vld [vmem:[%s0 + $0x88] sm:$0xff]
  %v39 = vld [vmem:[%s0 + $0x90] sm:$0xff]
  %v40 = vld [vmem:[%s0 + $0x98] sm:$0xff]
  %v41 = vld [vmem:[%s0 + $0xa0] sm:$0xff]
  %v42 = vld [vmem:[%s0 + $0xa8] sm:$0xff]
  %v43 = vld [vmem:[%s0 + $0xb0] sm:$0xff]
  %v44 = vld [vmem:[%s0 + $0xb8] sm:$0xff]
  %v45 = vld [vmem:[%s0 + $0xc0] sm:$0xff]
  %v46 = vld [vmem:[%s0 + $0xc8] sm:$0xff]
  %v47 = vld [vmem:[%s0 + $0xd0] sm:$0xff]
  %v48 = vld [vmem:[%s0 + $0xd8] sm:$0xff]
  %v49 = vld [vmem:[%s0 + $0xe0] sm:$0xff]
  %v50 = vld [vmem:[%s0 + $0xe8] sm:$0xff]
  %v51 = vld [vmem:[%s0 + $0xf0] sm:$0xff]
  %v52 = vld [vmem:[%s0 + $0xf8] sm:$0xff]
  %v53 = vld [vmem:[%s0 + $0x100] sm:$0xff]
  %v54 = vld [vmem:[%s0 + $0x108] sm:$0xff]
  %v55 = vld [vmem:[%s0 + $0x110] sm:$0xff]
  %v56 = vld [vmem:[%s0 + $0x118] sm:$0xff]
  %v57 = vld [vmem:[%s1] sm:$0xf]
  %v58 = vld [vmem:[%s1 + $0x4] sm:$0xf]
  %v59 = vld [vmem:[%s1 + $0x8] sm:$0xf]
  %v60 = vld [vmem:[%s1 + $0xc] sm:$0xf]
  %v61 = vld [vmem:[%s1 + $0x10] sm:$0xf]
  %v62 = vld [vmem:[%s1 + $0x14] sm:$0xf]
  %v63 = vld [vmem:[%s1 + $0x18] sm:$0xf]
  %v64 = vld [vmem:[%s1 + $0x1c] sm:$0xf]
  %v65 = vld [vmem:[%s1 + $0x20] sm:$0xf]
  %v66 = vld [vmem:[%s1 + $0x24] sm:$0xf]
  %v67 = vld [vmem:[%s1 + $0x28] sm:$0xf]
  %v68 = vld [vmem:[%s1 + $0x2c] sm:$0xf]
  %v69 = vld [vmem:[%s1 + $0x30] sm:$0xf]
  %v70 = vld [vmem:[%s1 + $0x34] sm:$0xf]
  %v71 = vld [vmem:[%s1 + $0x38] sm:$0xf]
  %v72 = vld [vmem:[%s1 + $0x3c] sm:$0xf]
  %v73 = vld [vmem:[%s1 + $0x40] sm:$0xf]
  %v74 = vld [vmem:[%s1 + $0x44] sm:$0xf]
  %v75 = vld [vmem:[%s2] sm:$0x1]
  %v76 = vld [vmem:[%s3] sm:$0x1]
  %v77 = vld [vmem:[%s4] sm:$0x1]
  %v114 = vunpack.c.l.b16 %v21
  %v115 = vunpack.c.h.b16 %v21
  %v116 = vunpack.c.l.b16 %v22
  %v117 = vunpack.c.h.b16 %v22
  %v118 = vunpack.c.l.b16 %v23
  %v119 = vunpack.c.h.b16 %v23
  %v120 = vunpack.c.l.b16 %v24
  %v121 = vunpack.c.h.b16 %v24
  %v122 = vunpack.c.l.b16 %v25
  %v123 = vunpack.c.h.b16 %v25
  %v124 = vunpack.c.l.b16 %v26
  %v125 = vunpack.c.h.b16 %v26
  %v126 = vunpack.c.l.b16 %v27
  %v127 = vunpack.c.h.b16 %v27
  %v128 = vunpack.c.l.b16 %v28
  %v129 = vunpack.c.h.b16 %v28
  %v130 = vunpack.c.l.b16 %v29
  %v131 = vunpack.c.h.b16 %v29
  %v132 = vunpack.c.l.b16 %v30
  %v133 = vunpack.c.h.b16 %v30
  %v134 = vunpack.c.l.b16 %v31
  %v135 = vunpack.c.h.b16 %v31
  %v136 = vunpack.c.l.b16 %v32
  %v137 = vunpack.c.h.b16 %v32
  %v138 = vunpack.c.l.b16 %v33
  %v139 = vunpack.c.h.b16 %v33
  %v140 = vunpack.c.l.b16 %v34
  %v141 = vunpack.c.h.b16 %v34
  %v142 = vunpack.c.l.b16 %v35
  %v143 = vunpack.c.h.b16 %v35
  %v144 = vunpack.c.l.b16 %v36
  %v145 = vunpack.c.h.b16 %v36
  %v146 = vunpack.c.l.b16 %v37
  %v147 = vunpack.c.h.b16 %v37
  %v148 = vunpack.c.l.b16 %v38
  %v149 = vunpack.c.h.b16 %v38
  %v150 = vunpack.c.l.b16 %v39
  %v151 = vunpack.c.h.b16 %v39
  %v152 = vunpack.c.l.b16 %v40
  %v153 = vunpack.c.h.b16 %v40
  %v154 = vunpack.c.l.b16 %v41
  %v155 = vunpack.c.h.b16 %v41
  %v156 = vunpack.c.l.b16 %v42
  %v157 = vunpack.c.h.b16 %v42
  %v158 = vunpack.c.l.b16 %v43
  %v159 = vunpack.c.h.b16 %v43
  %v160 = vunpack.c.l.b16 %v44
  %v161 = vunpack.c.h.b16 %v44
  %v162 = vunpack.c.l.b16 %v45
  %v163 = vunpack.c.h.b16 %v45
  %v164 = vunpack.c.l.b16 %v46
  %v165 = vunpack.c.h.b16 %v46
  %v166 = vunpack.c.l.b16 %v47
  %v167 = vunpack.c.h.b16 %v47
  %v168 = vunpack.c.l.b16 %v48
  %v169 = vunpack.c.h.b16 %v48
  %v170 = vunpack.c.l.b16 %v49
  %v171 = vunpack.c.h.b16 %v49
  %v172 = vunpack.c.l.b16 %v50
  %v173 = vunpack.c.h.b16 %v50
  %v174 = vunpack.c.l.b16 %v51
  %v175 = vunpack.c.h.b16 %v51
  %v176 = vunpack.c.l.b16 %v52
  %v177 = vunpack.c.h.b16 %v52
  %v178 = vunpack.c.l.b16 %v53
  %v179 = vunpack.c.h.b16 %v53
  %v180 = vunpack.c.l.b16 %v54
  %v181 = vunpack.c.h.b16 %v54
  %v182 = vunpack.c.l.b16 %v55
  %v183 = vunpack.c.h.b16 %v55
  %v184 = vunpack.c.l.b16 %v56
  %v185 = vunpack.c.h.b16 %v56
  %v186 = vpack.c.b16 %v116, %v114
  %v187 = vpack.c.b16 %v117, %v115
  %v188 = vpack.c.b16 %v120, %v118
  %v189 = vpack.c.b16 %v121, %v119
  %v190 = vpack.c.b16 %v124, %v122
  %v191 = vpack.c.b16 %v125, %v123
  %v192 = vpack.c.b16 %v128, %v126
  %v193 = vpack.c.b16 %v129, %v127
  %v194 = vpack.c.b16 %v132, %v130
  %v195 = vpack.c.b16 %v133, %v131
  %v196 = vpack.c.b16 %v136, %v134
  %v197 = vpack.c.b16 %v137, %v135
  %v198 = vpack.c.b16 %v140, %v138
  %v199 = vpack.c.b16 %v141, %v139
  %v200 = vpack.c.b16 %v144, %v142
  %v201 = vpack.c.b16 %v145, %v143
  %v202 = vpack.c.b16 %v148, %v146
  %v203 = vpack.c.b16 %v149, %v147
  %v204 = vpack.c.b16 %v152, %v150
  %v205 = vpack.c.b16 %v153, %v151
  %v206 = vpack.c.b16 %v156, %v154
  %v207 = vpack.c.b16 %v157, %v155
  %v208 = vpack.c.b16 %v160, %v158
  %v209 = vpack.c.b16 %v161, %v159
  %v210 = vpack.c.b16 %v164, %v162
  %v211 = vpack.c.b16 %v165, %v163
  %v212 = vpack.c.b16 %v168, %v166
  %v213 = vpack.c.b16 %v169, %v167
  %v214 = vpack.c.b16 %v172, %v170
  %v215 = vpack.c.b16 %v173, %v171
  %v216 = vpack.c.b16 %v176, %v174
  %v217 = vpack.c.b16 %v177, %v175
  %v218 = vpack.c.b16 %v180, %v178
  %v219 = vpack.c.b16 %v181, %v179
  %v220 = vpack.c.b16 %v184, %v182
  %v221 = vpack.c.b16 %v185, %v183
  %v258 = vunpack.c.l.b16 %v57
  %v259 = vunpack.c.l.b16 %v58
  %v260 = vunpack.c.l.b16 %v59
  %v261 = vunpack.c.l.b16 %v60
  %v262 = vunpack.c.l.b16 %v61
  %v263 = vunpack.c.l.b16 %v62
  %v264 = vunpack.c.l.b16 %v63
  %v265 = vunpack.c.l.b16 %v64
  %v266 = vunpack.c.l.b16 %v65
  %v267 = vunpack.c.l.b16 %v66
  %v268 = vunpack.c.l.b16 %v67
  %v269 = vunpack.c.l.b16 %v68
  %v270 = vunpack.c.l.b16 %v69
  %v271 = vunpack.c.l.b16 %v70
  %v272 = vunpack.c.l.b16 %v71
  %v273 = vunpack.c.l.b16 %v72
  %v274 = vunpack.c.l.b16 %v73
  %v275 = vunpack.c.l.b16 %v74
  %v276 = vpack.c.b16 %v259, %v258
  %v277 = vpack.c.b16 %v261, %v260
  %v278 = vpack.c.b16 %v263, %v262
  %v279 = vpack.c.b16 %v265, %v264
  %v280 = vpack.c.b16 %v267, %v266
  %v281 = vpack.c.b16 %v269, %v268
  %v282 = vpack.c.b16 %v271, %v270
  %v283 = vpack.c.b16 %v273, %v272
  %v284 = vpack.c.b16 %v275, %v274
  %vm294 = vcmask 130048
  %v296 = vsel %vm294, %v187, 0
  %v299 = vsel %vm294, %v189, 0
  %v302 = vsel %vm294, %v191, 0
  %v305 = vsel %vm294, %v193, 0
  %v308 = vsel %vm294, %v195, 0
  %v311 = vsel %vm294, %v197, 0
  %v314 = vsel %vm294, %v199, 0
  %v317 = vsel %vm294, %v201, 0
  %v320 = vsel %vm294, %v203, 0
  %v323 = vsel %vm294, %v205, 0
  %v326 = vsel %vm294, %v207, 0
  %v329 = vsel %vm294, %v209, 0
  %v332 = vsel %vm294, %v211, 0
  %v335 = vsel %vm294, %v213, 0
  %v338 = vsel %vm294, %v215, 0
  %v341 = vsel %vm294, %v217, 0
  %v344 = vsel %vm294, %v219, 0
  %v347 = vsel %vm294, %v221, 0
  %349 = vmatprep.subr.bf16.mxu0 0
  %350 = vmatpush1.bf16.msra.mxu0 %v276
  %351 = vmatprep.subr.bf16.mxu0 0
  %352 = vmatpush1.bf16.msra.mxu0 %v277
  %353 = vmatprep.subr.bf16.mxu0 0
  %354 = vmatpush1.bf16.msra.mxu0 %v278
  %355 = vmatprep.subr.bf16.mxu0 0
  %356 = vmatpush1.bf16.msra.mxu0 %v279
  %357 = vmatprep.subr.bf16.mxu0 0
  %358 = vmatpush1.bf16.msra.mxu0 %v280
  %359 = vmatprep.subr.bf16.mxu0 0
  %360 = vmatpush1.bf16.msra.mxu0 %v281
  %361 = vmatprep.subr.bf16.mxu0 0
  %362 = vmatpush1.bf16.msra.mxu0 %v282
  %363 = vmatprep.subr.bf16.mxu0 0
  %364 = vmatpush1.bf16.msra.mxu0 %v283
  %365 = vmatprep.subr.bf16.mxu0 0
  %366 = vmatpush1.bf16.msra.mxu0 %v284
  %367 = vmatprep.subr.bf16.mxu0 0
  %368 = vmatpush1.bf16.msra.mxu0 0
  %369 = vmatprep.subr.bf16.mxu0 0
  %370 = vmatpush1.bf16.msra.mxu0 0
  %371 = vmatprep.subr.bf16.mxu0 0
  %372 = vmatpush1.bf16.msra.mxu0 0
  %373 = vmatprep.subr.bf16.mxu0 0
  %374 = vmatpush1.bf16.msra.mxu0 0
  %375 = vmatprep.subr.bf16.mxu0 0
  %376 = vmatpush1.bf16.msra.mxu0 0
  %377 = vmatprep.subr.bf16.mxu0 0
  %378 = vmatpush1.bf16.msra.mxu0 0
  %379 = vmatprep.subr.bf16.mxu0 0
  %380 = vmatpush1.bf16.msra.mxu0 0
  %381 = vmatprep.mubr.bf16.mxu0 %v296
  %382 = vmatmul.mubr.bf16.gmra.mrb[0].mxu0 %v186
  %v383 = vpop.f32.mrb[0].mxu0
  %v384 = vadd.f32 0.0, %v383
  %v385 = vpop.f32.mrb[0].mxu0
  %v386 = vpop.f32.mrb[0].mxu0
  %v387 = vadd.f32 0.0, %v386
  %v388 = vpop.f32.mrb[0].mxu0
  %389 = vmatprep.mubr.bf16.mxu0 %v299
  %390 = vmatmul.mubr.bf16.gmra.mrb[0].mxu0 %v188
  %v391 = vpop.f32.mrb[0].mxu0
  %v392 = vadd.f32 0.0, %v391
  %v393 = vpop.f32.mrb[0].mxu0
  %v394 = vpop.f32.mrb[0].mxu0
  %v395 = vadd.f32 0.0, %v394
  %v396 = vpop.f32.mrb[0].mxu0
  %397 = vmatprep.mubr.bf16.mxu0 %v302
  %398 = vmatmul.mubr.bf16.gmra.mrb[0].mxu0 %v190
  %v399 = vpop.f32.mrb[0].mxu0
  %v400 = vadd.f32 0.0, %v399
  %v401 = vpop.f32.mrb[0].mxu0
  %v402 = vpop.f32.mrb[0].mxu0
  %v403 = vadd.f32 0.0, %v402
  %v404 = vpop.f32.mrb[0].mxu0
  %405 = vmatprep.mubr.bf16.mxu0 %v305
  %406 = vmatmul.mubr.bf16.gmra.mrb[0].mxu0 %v192
  %v407 = vpop.f32.mrb[0].mxu0
  %v408 = vadd.f32 0.0, %v407
  %v409 = vpop.f32.mrb[0].mxu0
  %v410 = vpop.f32.mrb[0].mxu0
  %v411 = vadd.f32 0.0, %v410
  %v412 = vpop.f32.mrb[0].mxu0
  %413 = vmatprep.mubr.bf16.mxu0 %v308
  %414 = vmatmul.mubr.bf16.gmra.mrb[0].mxu0 %v194
  %v415 = vpop.f32.mrb[0].mxu0
  %v416 = vadd.f32 0.0, %v415
  %v417 = vpop.f32.mrb[0].mxu0
  %v418 = vpop.f32.mrb[0].mxu0
  %v419 = vadd.f32 0.0, %v418
  %v420 = vpop.f32.mrb[0].mxu0
  %421 = vmatprep.mubr.bf16.mxu0 %v311
  %422 = vmatmul.mubr.bf16.gmra.mrb[0].mxu0 %v196
  %v423 = vpop.f32.mrb[0].mxu0
  %v424 = vadd.f32 0.0, %v423
  %v425 = vpop.f32.mrb[0].mxu0
  %v426 = vpop.f32.mrb[0].mxu0
  %v427 = vadd.f32 0.0, %v426
  %v428 = vpop.f32.mrb[0].mxu0
  %429 = vmatprep.mubr.bf16.mxu0 %v314
  %430 = vmatmul.mubr.bf16.gmra.mrb[0].mxu0 %v198
  %v431 = vpop.f32.mrb[0].mxu0
  %v432 = vadd.f32 0.0, %v431
  %v433 = vpop.f32.mrb[0].mxu0
  %v434 = vpop.f32.mrb[0].mxu0
  %v435 = vadd.f32 0.0, %v434
  %v436 = vpop.f32.mrb[0].mxu0
  %437 = vmatprep.mubr.bf16.mxu0 %v317
  %438 = vmatmul.mubr.bf16.gmra.mrb[0].mxu0 %v200
  %v439 = vpop.f32.mrb[0].mxu0
  %v440 = vadd.f32 0.0, %v439
  %v441 = vpop.f32.mrb[0].mxu0
  %v442 = vpop.f32.mrb[0].mxu0
  %v443 = vadd.f32 0.0, %v442
  %v444 = vpop.f32.mrb[0].mxu0
  %445 = vmatprep.mubr.bf16.mxu0 %v320
  %446 = vmatmul.mubr.bf16.gmra.mrb[0].mxu0 %v202
  %v447 = vpop.f32.mrb[0].mxu0
  %v448 = vadd.f32 0.0, %v447
  %v449 = vpop.f32.mrb[0].mxu0
  %v450 = vpop.f32.mrb[0].mxu0
  %v451 = vadd.f32 0.0, %v450
  %v452 = vpop.f32.mrb[0].mxu0
  %453 = vmatprep.mubr.bf16.mxu0 %v323
  %454 = vmatmul.mubr.bf16.gmra.mrb[0].mxu0 %v204
  %v455 = vpop.f32.mrb[0].mxu0
  %v456 = vadd.f32 0.0, %v455
  %v457 = vpop.f32.mrb[0].mxu0
  %v458 = vpop.f32.mrb[0].mxu0
  %v459 = vadd.f32 0.0, %v458
  %v460 = vpop.f32.mrb[0].mxu0
  %461 = vmatprep.mubr.bf16.mxu0 %v326
  %462 = vmatmul.mubr.bf16.gmra.mrb[0].mxu0 %v206
  %v463 = vpop.f32.mrb[0].mxu0
  %v464 = vadd.f32 0.0, %v463
  %v465 = vpop.f32.mrb[0].mxu0
  %v466 = vpop.f32.mrb[0].mxu0
  %v467 = vadd.f32 0.0, %v466
  %v468 = vpop.f32.mrb[0].mxu0
  %469 = vmatprep.mubr.bf16.mxu0 %v329
  %470 = vmatmul.mubr.bf16.gmra.mrb[0].mxu0 %v208
  %v471 = vpop.f32.mrb[0].mxu0
  %v472 = vadd.f32 0.0, %v471
  %v473 = vpop.f32.mrb[0].mxu0
  %v474 = vpop.f32.mrb[0].mxu0
  %v475 = vadd.f32 0.0, %v474
  %v476 = vpop.f32.mrb[0].mxu0
  %477 = vmatprep.mubr.bf16.mxu0 %v332
  %478 = vmatmul.mubr.bf16.gmra.mrb[0].mxu0 %v210
  %v479 = vpop.f32.mrb[0].mxu0
  %v480 = vadd.f32 0.0, %v479
  %v481 = vpop.f32.mrb[0].mxu0
  %v482 = vpop.f32.mrb[0].mxu0
  %v483 = vadd.f32 0.0, %v482
  %v484 = vpop.f32.mrb[0].mxu0
  %485 = vmatprep.mubr.bf16.mxu0 %v335
  %486 = vmatmul.mubr.bf16.gmra.mrb[0].mxu0 %v212
  %v487 = vpop.f32.mrb[0].mxu0
  %v488 = vadd.f32 0.0, %v487
  %v489 = vpop.f32.mrb[0].mxu0
  %v490 = vpop.f32.mrb[0].mxu0
  %v491 = vadd.f32 0.0, %v490
  %v492 = vpop.f32.mrb[0].mxu0
  %493 = vmatprep.mubr.bf16.mxu0 %v338
  %494 = vmatmul.mubr.bf16.gmra.mrb[0].mxu0 %v214
  %v495 = vpop.f32.mrb[0].mxu0
  %v496 = vadd.f32 0.0, %v495
  %v497 = vpop.f32.mrb[0].mxu0
  %v498 = vpop.f32.mrb[0].mxu0
  %v499 = vadd.f32 0.0, %v498
  %v500 = vpop.f32.mrb[0].mxu0
  %501 = vmatprep.mubr.bf16.mxu0 %v341
  %502 = vmatmul.mubr.bf16.gmra.mrb[0].mxu0 %v216
  %v503 = vpop.f32.mrb[0].mxu0
  %v504 = vadd.f32 0.0, %v503
  %v505 = vpop.f32.mrb[0].mxu0
  %v506 = vpop.f32.mrb[0].mxu0
  %v507 = vadd.f32 0.0, %v506
  %v508 = vpop.f32.mrb[0].mxu0
  %509 = vmatprep.mubr.bf16.mxu0 %v344
  %510 = vmatmul.mubr.bf16.gmra.mrb[0].mxu0 %v218
  %v511 = vpop.f32.mrb[0].mxu0
  %v512 = vadd.f32 0.0, %v511
  %v513 = vpop.f32.mrb[0].mxu0
  %v514 = vpop.f32.mrb[0].mxu0
  %v515 = vadd.f32 0.0, %v514
  %v516 = vpop.f32.mrb[0].mxu0
  %517 = vmatprep.mubr.bf16.mxu0 %v347
  %518 = vmatmul.mubr.bf16.gmra.mrb[0].mxu0 %v220
  %v519 = vpop.f32.mrb[0].mxu0
  %v520 = vadd.f32 0.0, %v519
  %v521 = vpop.f32.mrb[0].mxu0
  %v522 = vpop.f32.mrb[0].mxu0
  %v523 = vadd.f32 0.0, %v522
  %v524 = vpop.f32.mrb[0].mxu0
  %525 = vdwg.mxu0
  %v526 = vmax.f32 %v384, %v419
  %v527 = vmax.f32 %v387, %v424
  %v528 = vmax.f32 %v392, %v427
  %v529 = vmax.f32 %v395, %v432
  %v530 = vmax.f32 %v400, %v435
  %v531 = vmax.f32 %v403, %v440
  %v532 = vmax.f32 %v408, %v443
  %v533 = vmax.f32 %v411, %v448
  %v534 = vmax.f32 %v416, %v451
  %v535 = vmax.f32 %v456, %v491
  %v536 = vmax.f32 %v459, %v496
  %v537 = vmax.f32 %v464, %v499
  %v538 = vmax.f32 %v467, %v504
  %v539 = vmax.f32 %v472, %v507
  %v540 = vmax.f32 %v475, %v512
  %v541 = vmax.f32 %v480, %v515
  %v542 = vmax.f32 %v483, %v520
  %v543 = vmax.f32 %v488, %v523
  %v544 = vmax.f32 %v526, %v535
  %v545 = vmax.f32 %v527, %v536
  %v546 = vmax.f32 %v528, %v537
  %v547 = vmax.f32 %v529, %v538
  %v548 = vmax.f32 %v530, %v539
  %v549 = vmax.f32 %v531, %v540
  %v550 = vmax.f32 %v532, %v541
  %v551 = vmax.f32 %v533, %v542
  %v552 = vmax.f32 %v534, %v543
  %v554 = vlaneseq
  %v555 = vshrl.u32 %v554, 7
  %v556 = vsub.s32 0, %v555
  %v557 = vrot.slane %v75, %v556
  %v559 = vadd.f32 %v544, %v557
  %v560 = vadd.f32 %v545, %v557
  %v561 = vadd.f32 %v546, %v557
  %v562 = vadd.f32 %v547, %v557
  %v563 = vadd.f32 %v548, %v557
  %v564 = vadd.f32 %v549, %v557
  %v565 = vadd.f32 %v550, %v557
  %v566 = vadd.f32 %v551, %v557
  %v567 = vadd.f32 %v552, %v557
  %vm568 = vcmask 523264
  %v569 = vsel %vm568, %v559, 0.0
  %v570 = vsel %vm568, %v560, 0.0
  %v571 = vadd.f32 %v569, %v570
  %v572 = vsel %vm568, %v561, 0.0
  %v573 = vadd.f32 %v571, %v572
  %v574 = vsel %vm568, %v562, 0.0
  %v575 = vadd.f32 %v573, %v574
  %v576 = vsel %vm568, %v563, 0.0
  %v577 = vadd.f32 %v575, %v576
  %v578 = vsel %vm568, %v564, 0.0
  %v579 = vadd.f32 %v577, %v578
  %v580 = vsel %vm568, %v565, 0.0
  %v581 = vadd.f32 %v579, %v580
  %v582 = vsel %vm568, %v566, 0.0
  %v583 = vadd.f32 %v581, %v582
  %v584 = vsel %vm568, %v567, 0.0
  %v585 = vadd.f32 %v583, %v584
  %v586 = vrot.slane %v585, 4
  %v587 = vadd.f32 %v585, %v586
  %v588 = vrot.slane %v587, 2
  %v589 = vadd.f32 %v587, %v588
  %v590 = vrot.slane %v589, 1
  %v591 = vadd.f32 %v589, %v590
  %v592 = vmul.f32 %v559, %v559
  %v593 = vmul.f32 %v560, %v560
  %v594 = vmul.f32 %v561, %v561
  %v595 = vmul.f32 %v562, %v562
  %v596 = vmul.f32 %v563, %v563
  %v597 = vmul.f32 %v564, %v564
  %v598 = vmul.f32 %v565, %v565
  %v599 = vmul.f32 %v566, %v566
  %v600 = vmul.f32 %v567, %v567
  %v601 = vsel %vm568, %v592, 0.0
  %v602 = vsel %vm568, %v593, 0.0
  %v603 = vadd.f32 %v601, %v602
  %v604 = vsel %vm568, %v594, 0.0
  %v605 = vadd.f32 %v603, %v604
  %v606 = vsel %vm568, %v595, 0.0
  %v607 = vadd.f32 %v605, %v606
  %v608 = vsel %vm568, %v596, 0.0
  %v609 = vadd.f32 %v607, %v608
  %v610 = vsel %vm568, %v597, 0.0
  %v611 = vadd.f32 %v609, %v610
  %v612 = vsel %vm568, %v598, 0.0
  %v613 = vadd.f32 %v611, %v612
  %v614 = vsel %vm568, %v599, 0.0
  %v615 = vadd.f32 %v613, %v614
  %v616 = vsel %vm568, %v600, 0.0
  %v617 = vadd.f32 %v615, %v616
  %v618 = vrot.slane %v617, 4
  %v619 = vadd.f32 %v617, %v618
  %v620 = vrot.slane %v619, 2
  %v621 = vadd.f32 %v619, %v620
  %v622 = vrot.slane %v621, 1
  %v623 = vadd.f32 %v621, %v622
  %v624 = vmul.f32 %v591, 0.013888889
  %v625 = vmul.f32 %v623, 0.013888889
  %v626 = vmul.f32 %v624, %v624
  %v627 = vsub.f32 %v625, %v626
  %v628 = vsub.f32 %v559, %v624
  %v629 = vsub.f32 %v560, %v624
  %v630 = vsub.f32 %v561, %v624
  %v631 = vsub.f32 %v562, %v624
  %v632 = vsub.f32 %v563, %v624
  %v633 = vsub.f32 %v564, %v624
  %v634 = vsub.f32 %v565, %v624
  %v635 = vsub.f32 %v566, %v624
  %v636 = vsub.f32 %v567, %v624
  %v637 = vadd.f32 %v627, 1e-05
  %v638 = vrsqrt.pop %v637
  %v639 = vmul.f32 %v628, %v638
  %v640 = vmul.f32 %v629, %v638
  %v641 = vmul.f32 %v630, %v638
  %v642 = vmul.f32 %v631, %v638
  %v643 = vmul.f32 %v632, %v638
  %v644 = vmul.f32 %v633, %v638
  %v645 = vmul.f32 %v634, %v638
  %v646 = vmul.f32 %v635, %v638
  %v647 = vmul.f32 %v636, %v638
  %v649 = vlaneseq
  %v650 = vshrl.u32 %v649, 7
  %v651 = vsub.s32 0, %v650
  %v652 = vrot.slane %v76, %v651
  %v654 = vmul.f32 %v639, %v652
  %v655 = vmul.f32 %v640, %v652
  %v656 = vmul.f32 %v641, %v652
  %v657 = vmul.f32 %v642, %v652
  %v658 = vmul.f32 %v643, %v652
  %v659 = vmul.f32 %v644, %v652
  %v660 = vmul.f32 %v645, %v652
  %v661 = vmul.f32 %v646, %v652
  %v662 = vmul.f32 %v647, %v652
  %v664 = vlaneseq
  %v665 = vshrl.u32 %v664, 7
  %v666 = vsub.s32 0, %v665
  %v667 = vrot.slane %v77, %v666
  %v669 = vadd.f32 %v654, %v667
  %v670 = vadd.f32 %v655, %v667
  %v671 = vadd.f32 %v656, %v667
  %v672 = vadd.f32 %v657, %v667
  %v673 = vadd.f32 %v658, %v667
  %v674 = vadd.f32 %v659, %v667
  %v675 = vadd.f32 %v660, %v667
  %v676 = vadd.f32 %v661, %v667
  %v677 = vadd.f32 %v662, %v667
  %v678 = vmax.f32 %v669, 0.0
  %v679 = vmax.f32 %v670, 0.0
  %v680 = vmax.f32 %v671, 0.0
  %v681 = vmax.f32 %v672, 0.0
  %v682 = vmax.f32 %v673, 0.0
  %v683 = vmax.f32 %v674, 0.0
  %v684 = vmax.f32 %v675, 0.0
  %v685 = vmax.f32 %v676, 0.0
  %v686 = vmax.f32 %v677, 0.0
  %v687 = vpack.c.bf16 %v679, %v678
  %v688 = vpack.c.bf16 %v681, %v680
  %v689 = vpack.c.bf16 %v683, %v682
  %v690 = vpack.c.bf16 %v685, %v684
  %v691 = vpack.c.bf16 %v686, %v686
  %v697 = vunpack.c.l.b16 %v687
  %v698 = vunpack.c.h.b16 %v687
  %v699 = vunpack.c.l.b16 %v688
  %v700 = vunpack.c.h.b16 %v688
  %v701 = vunpack.c.l.b16 %v689
  %v702 = vunpack.c.h.b16 %v689
  %v703 = vunpack.c.l.b16 %v690
  %v704 = vunpack.c.h.b16 %v690
  %v705 = vunpack.c.l.b16 %v691
  %v706 = vpack.c.b16 %v697, %v697
  %v707 = vpack.c.b16 %v698, %v698
  %v708 = vpack.c.b16 %v699, %v699
  %v709 = vpack.c.b16 %v700, %v700
  %v710 = vpack.c.b16 %v701, %v701
  %v711 = vpack.c.b16 %v702, %v702
  %v712 = vpack.c.b16 %v703, %v703
  %v713 = vpack.c.b16 %v704, %v704
  %v714 = vpack.c.b16 %v705, %v705
  %vm724 = vcmask 519168
  %725 = vst.msk [vmem:[%s5] sm:$0xf] %vm724, %v706
  %726 = vst.msk [vmem:[%s5 + $0x4] sm:$0xf] %vm724, %v707
  %727 = vst.msk [vmem:[%s5 + $0x8] sm:$0xf] %vm724, %v708
  %728 = vst.msk [vmem:[%s5 + $0xc] sm:$0xf] %vm724, %v709
  %729 = vst.msk [vmem:[%s5 + $0x10] sm:$0xf] %vm724, %v710
  %730 = vst.msk [vmem:[%s5 + $0x14] sm:$0xf] %vm724, %v711
  %731 = vst.msk [vmem:[%s5 + $0x18] sm:$0xf] %vm724, %v712
  %732 = vst.msk [vmem:[%s5 + $0x1c] sm:$0xf] %vm724, %v713
  %733 = vst.msk [vmem:[%s5 + $0x20] sm:$0xf] %vm724, %v714
  // Predicated region
  $region22: #{net_forward.4} parent=0 // pred_check
    _
  $region23: #{net_forward.4} parent=0 // pred_check_branch
    %735 = sbr.rel (0) target = $region25
  $region24: #{net_forward.4} parent=0 // pred_region
    _
  $region25: #{net_forward.4} parent=0 // pred_fallthru
    _
  // Predicated region
  $region26: #{net_forward.4} parent=0 // pred_check
    _
  $region27: #{net_forward.4} parent=0 // pred_check_branch
    %737 = sbr.rel (0) target = $region29
  $region28: #{net_forward.4} parent=0 // pred_region
    _
  $region29: #{net_forward.4} parent=0 // pred_fallthru
    _

// kernel: net_forward.5
$region0: #{net_forward.5}
  #allocation0 [shape = 'u32[]', space=smem, size = 0x4, offset = 0x4, fixed_abs, tag = 'smem constant byte address 0x4 - core index']
  #allocation1 [shape = 'u32[144,128]{1,0:T(1,128)}', space=vmem, size = 0x12000, scoped, tag = 'internal scratch']
  %s0 = inlined_call_operand.vmem [shape: bf16[32,576], index: 0, kind: input, shape index: {}]
  %s1 = inlined_call_operand.vmem [shape: bf16[576,128], index: 1, kind: input, shape index: {}]
  %s2 = inlined_call_operand.vmem [shape: f32[1,128], index: 2, kind: input, shape index: {}]
  %s3 = inlined_call_operand.vmem [shape: f32[1,128], index: 3, kind: input, shape index: {}]
  %s4 = inlined_call_operand.vmem [shape: f32[1,128], index: 4, kind: input, shape index: {}]
  %s5 = inlined_call_operand.vmem [shape: f32[2,8], index: 5, kind: input, shape index: {}]
  %s6 = inlined_call_operand.vmem [shape: f32[128,2], index: 6, kind: input, shape index: {}]
  %s7 = inlined_call_operand.vmem [shape: f32[1,2], index: 7, kind: input, shape index: {}]
  %s8 = inlined_call_operand.hbm [shape: f32[2,2], index: 8, kind: output, shape index: {}]
  %s9 = sld [smem:[#allocation0]]
  $region42: #{net_forward.5} parent=0
    _
  %s11 = ssub.s32 1, %s9
  %s12 = scalar_select 0, %s11, %s9
  $region1: #{net_forward.5} parent=0
    #allocation2 [shape = 'u8[1024]{0}', space=vmem, size = 0x400, scoped, tag = 'output window, operand 0, single buffered']
    #allocation3 [shape = 's32[1]{0}', space=sflag, size = 0x4, scoped, tag = 'scoped memory for net_forward.5']
    %13 = vsyncpa [#allocation3], 0
    // Predicated region
    $region2: #{net_forward.5} parent=1 // pred_check
      _
    $region3: #{net_forward.5} parent=1 // pred_check_branch
      %15 = sbr.rel (0) target = $region5
    $region4: #{net_forward.5} parent=1 // pred_region
      _
    $region5: #{net_forward.5} parent=1 // pred_fallthru
      _
    // Predicated region
    $region6: #{net_forward.5} parent=1 // pred_check
      _
    $region7: #{net_forward.5} parent=1 // pred_check_branch
      %17 = sbr.rel (0) target = $region9
    $region8: #{net_forward.5} parent=1 // pred_region
      _
    $region9: #{net_forward.5} parent=1 // pred_fallthru
      _
    // Predicated region
    $region10: #{net_forward.5} parent=1 // pred_check
      _
    $region11: #{net_forward.5} parent=1 // pred_check_branch
      %19 = sbr.rel (0) target = $region13
    $region12: #{net_forward.5} parent=1 // pred_region
      _
    $region13: #{net_forward.5} parent=1 // pred_fallthru
      _
    // Predicated region
    $region14: #{net_forward.5} parent=1 // pred_check
      _
    $region15: #{net_forward.5} parent=1 // pred_check_branch
      %21 = sbr.rel (0) target = $region17
    $region16: #{net_forward.5} parent=1 // pred_region
      _
    $region17: #{net_forward.5} parent=1 // pred_fallthru
      _
    // Predicated region
    $region18: #{net_forward.5} parent=1 // pred_check
      _
    $region19: #{net_forward.5} parent=1 // pred_check_branch
      %23 = sbr.rel (0) target = $region21
    $region20: #{net_forward.5} parent=1 // pred_region
      _
    $region21: #{net_forward.5} parent=1 // pred_fallthru
      _
    // Predicated region
    $region22: #{net_forward.5} parent=1 // pred_check
      _
    $region23: #{net_forward.5} parent=1 // pred_check_branch
      %25 = sbr.rel (0) target = $region25
    $region24: #{net_forward.5} parent=1 // pred_region
      _
    $region25: #{net_forward.5} parent=1 // pred_fallthru
      _
    // Predicated region
    $region26: #{net_forward.5} parent=1 // pred_check
      _
    $region27: #{net_forward.5} parent=1 // pred_check_branch
      %27 = sbr.rel (0) target = $region29
    $region28: #{net_forward.5} parent=1 // pred_region
      _
    $region29: #{net_forward.5} parent=1 // pred_fallthru
      _
    // Predicated region
    $region30: #{net_forward.5} parent=1 // pred_check
      _
    $region31: #{net_forward.5} parent=1 // pred_check_branch
      %29 = sbr.rel (0) target = $region33
    $region32: #{net_forward.5} parent=1 // pred_region
      _
    $region33: #{net_forward.5} parent=1 // pred_fallthru
      _
    %v31 = vld [vmem:[%s0] sm:$0xff]
    %v32 = vld [vmem:[%s0 + $0x8] sm:$0xff]
    %v33 = vld [vmem:[%s0 + $0x10] sm:$0xf]
    %v34 = vld [vmem:[%s0 + $0x14] sm:$0xff]
    %v35 = vld [vmem:[%s0 + $0x1c] sm:$0xff]
    %v36 = vld [vmem:[%s0 + $0x24] sm:$0xf]
    %v37 = vld [vmem:[%s0 + $0x28] sm:$0xff]
    %v38 = vld [vmem:[%s0 + $0x30] sm:$0xff]
    %v39 = vld [vmem:[%s0 + $0x38] sm:$0xf]
    %v40 = vld [vmem:[%s0 + $0x3c] sm:$0xff]
    %v41 = vld [vmem:[%s0 + $0x44] sm:$0xff]
    %v42 = vld [vmem:[%s0 + $0x4c] sm:$0xf]
    %v43 = vld [vmem:[%s1] sm:$0xf]
    %v44 = vld [vmem:[%s1 + $0x4] sm:$0xf]
    %v45 = vld [vmem:[%s1 + $0x8] sm:$0xf]
    %v46 = vld [vmem:[%s1 + $0xc] sm:$0xf]
    %v47 = vld [vmem:[%s1 + $0x10] sm:$0xf]
    %v48 = vld [vmem:[%s1 + $0x14] sm:$0xf]
    %v49 = vld [vmem:[%s1 + $0x18] sm:$0xf]
    %v50 = vld [vmem:[%s1 + $0x1c] sm:$0xf]
    %v51 = vld [vmem:[%s1 + $0x20] sm:$0xf]
    %v52 = vld [vmem:[%s1 + $0x24] sm:$0xf]
    %v53 = vld [vmem:[%s1 + $0x28] sm:$0xf]
    %v54 = vld [vmem:[%s1 + $0x2c] sm:$0xf]
    %v55 = vld [vmem:[%s1 + $0x30] sm:$0xf]
    %v56 = vld [vmem:[%s1 + $0x34] sm:$0xf]
    %v57 = vld [vmem:[%s1 + $0x38] sm:$0xf]
    %v58 = vld [vmem:[%s1 + $0x3c] sm:$0xf]
    %v59 = vld [vmem:[%s1 + $0x40] sm:$0xf]
    %v60 = vld [vmem:[%s1 + $0x44] sm:$0xf]
    %v61 = vld [vmem:[%s1 + $0x48] sm:$0xf]
    %v62 = vld [vmem:[%s1 + $0x4c] sm:$0xf]
    %v63 = vld [vmem:[%s1 + $0x50] sm:$0xf]
    %v64 = vld [vmem:[%s1 + $0x54] sm:$0xf]
    %v65 = vld [vmem:[%s1 + $0x58] sm:$0xf]
    %v66 = vld [vmem:[%s1 + $0x5c] sm:$0xf]
    %v67 = vld [vmem:[%s1 + $0x60] sm:$0xf]
    %v68 = vld [vmem:[%s1 + $0x64] sm:$0xf]
    %v69 = vld [vmem:[%s1 + $0x68] sm:$0xf]
    %v70 = vld [vmem:[%s1 + $0x6c] sm:$0xf]
    %v71 = vld [vmem:[%s1 + $0x70] sm:$0xf]
    %v72 = vld [vmem:[%s1 + $0x74] sm:$0xf]
    %v73 = vld [vmem:[%s1 + $0x78] sm:$0xf]
    %v74 = vld [vmem:[%s1 + $0x7c] sm:$0xf]
    %v75 = vld [vmem:[%s1 + $0x80] sm:$0xf]
    %v76 = vld [vmem:[%s1 + $0x84] sm:$0xf]
    %v77 = vld [vmem:[%s1 + $0x88] sm:$0xf]
    %v78 = vld [vmem:[%s1 + $0x8c] sm:$0xf]
    %v79 = vld [vmem:[%s1 + $0x90] sm:$0xf]
    %v80 = vld [vmem:[%s1 + $0x94] sm:$0xf]
    %v81 = vld [vmem:[%s1 + $0x98] sm:$0xf]
    %v82 = vld [vmem:[%s1 + $0x9c] sm:$0xf]
    %v83 = vld [vmem:[%s1 + $0xa0] sm:$0xf]
    %v84 = vld [vmem:[%s1 + $0xa4] sm:$0xf]
    %v85 = vld [vmem:[%s1 + $0xa8] sm:$0xf]
    %v86 = vld [vmem:[%s1 + $0xac] sm:$0xf]
    %v87 = vld [vmem:[%s1 + $0xb0] sm:$0xf]
    %v88 = vld [vmem:[%s1 + $0xb4] sm:$0xf]
    %v89 = vld [vmem:[%s1 + $0xb8] sm:$0xf]
    %v90 = vld [vmem:[%s1 + $0xbc] sm:$0xf]
    %v91 = vld [vmem:[%s1 + $0xc0] sm:$0xf]
    %v92 = vld [vmem:[%s1 + $0xc4] sm:$0xf]
    %v93 = vld [vmem:[%s1 + $0xc8] sm:$0xf]
    %v94 = vld [vmem:[%s1 + $0xcc] sm:$0xf]
    %v95 = vld [vmem:[%s1 + $0xd0] sm:$0xf]
    %v96 = vld [vmem:[%s1 + $0xd4] sm:$0xf]
    %v97 = vld [vmem:[%s1 + $0xd8] sm:$0xf]
    %v98 = vld [vmem:[%s1 + $0xdc] sm:$0xf]
    %v99 = vld [vmem:[%s1 + $0xe0] sm:$0xf]
    %v100 = vld [vmem:[%s1 + $0xe4] sm:$0xf]
    %v101 = vld [vmem:[%s1 + $0xe8] sm:$0xf]
    %v102 = vld [vmem:[%s1 + $0xec] sm:$0xf]
    %v103 = vld [vmem:[%s1 + $0xf0] sm:$0xf]
    %v104 = vld [vmem:[%s1 + $0xf4] sm:$0xf]
    %v105 = vld [vmem:[%s1 + $0xf8] sm:$0xf]
    %v106 = vld [vmem:[%s1 + $0xfc] sm:$0xf]
    %v107 = vld [vmem:[%s1 + $0x100] sm:$0xf]
    %v108 = vld [vmem:[%s1 + $0x104] sm:$0xf]
    %v109 = vld [vmem:[%s1 + $0x108] sm:$0xf]
    %v110 = vld [vmem:[%s1 + $0x10c] sm:$0xf]
    %v111 = vld [vmem:[%s1 + $0x110] sm:$0xf]
    %v112 = vld [vmem:[%s1 + $0x114] sm:$0xf]
    %v113 = vld [vmem:[%s1 + $0x118] sm:$0xf]
    %v114 = vld [vmem:[%s1 + $0x11c] sm:$0xf]
    %v115 = vld [vmem:[%s2] sm:$0x1]
    %v116 = vld [vmem:[%s3] sm:$0x1]
    %v117 = vld [vmem:[%s4] sm:$0x1]
    %v130 = vunpack.c.l.b16 %v31
    %v131 = vunpack.c.h.b16 %v31
    %v132 = vunpack.c.l.b16 %v32
    %v133 = vunpack.c.h.b16 %v32
    %v134 = vunpack.c.l.b16 %v33
    %v135 = vunpack.c.l.b16 %v34
    %v136 = vunpack.c.h.b16 %v34
    %v137 = vunpack.c.l.b16 %v35
    %v138 = vunpack.c.h.b16 %v35
    %v139 = vunpack.c.l.b16 %v36
    %v140 = vunpack.c.l.b16 %v37
    %v141 = vunpack.c.h.b16 %v37
    %v142 = vunpack.c.l.b16 %v38
    %v143 = vunpack.c.h.b16 %v38
    %v144 = vunpack.c.l.b16 %v39
    %v145 = vunpack.c.l.b16 %v40
    %v146 = vunpack.c.h.b16 %v40
    %v147 = vunpack.c.l.b16 %v41
    %v148 = vunpack.c.h.b16 %v41
    %v149 = vunpack.c.l.b16 %v42
    %v150 = vpack.c.b16 %v135, %v130
    %v151 = vpack.c.b16 %v136, %v131
    %v152 = vpack.c.b16 %v137, %v132
    %v153 = vpack.c.b16 %v138, %v133
    %v154 = vpack.c.b16 %v139, %v134
    %v155 = vpack.c.b16 %v145, %v140
    %v156 = vpack.c.b16 %v146, %v141
    %v157 = vpack.c.b16 %v147, %v142
    %v158 = vpack.c.b16 %v148, %v143
    %v159 = vpack.c.b16 %v149, %v144
    %v240 = vunpack.c.l.b16 %v43
    %v241 = vunpack.c.l.b16 %v44
    %v242 = vunpack.c.l.b16 %v45
    %v243 = vunpack.c.l.b16 %v46
    %v244 = vunpack.c.l.b16 %v47
    %v245 = vunpack.c.l.b16 %v48
    %v246 = vunpack.c.l.b16 %v49
    %v247 = vunpack.c.l.b16 %v50
    %v248 = vunpack.c.l.b16 %v51
    %v249 = vunpack.c.l.b16 %v52
    %v250 = vunpack.c.l.b16 %v53
    %v251 = vunpack.c.l.b16 %v54
    %v252 = vunpack.c.l.b16 %v55
    %v253 = vunpack.c.l.b16 %v56
    %v254 = vunpack.c.l.b16 %v57
    %v255 = vunpack.c.l.b16 %v58
    %v256 = vunpack.c.l.b16 %v59
    %v257 = vunpack.c.l.b16 %v60
    %v258 = vunpack.c.l.b16 %v61
    %v259 = vunpack.c.l.b16 %v62
    %v260 = vunpack.c.l.b16 %v63
    %v261 = vunpack.c.l.b16 %v64
    %v262 = vunpack.c.l.b16 %v65
    %v263 = vunpack.c.l.b16 %v66
    %v264 = vunpack.c.l.b16 %v67
    %v265 = vunpack.c.l.b16 %v68
    %v266 = vunpack.c.l.b16 %v69
    %v267 = vunpack.c.l.b16 %v70
    %v268 = vunpack.c.l.b16 %v71
    %v269 = vunpack.c.l.b16 %v72
    %v270 = vunpack.c.l.b16 %v73
    %v271 = vunpack.c.l.b16 %v74
    %v272 = vunpack.c.l.b16 %v75
    %v273 = vunpack.c.l.b16 %v76
    %v274 = vunpack.c.l.b16 %v77
    %v275 = vunpack.c.l.b16 %v78
    %v276 = vunpack.c.l.b16 %v79
    %v277 = vunpack.c.l.b16 %v80
    %v278 = vunpack.c.l.b16 %v81
    %v279 = vunpack.c.l.b16 %v82
    %v280 = vunpack.c.l.b16 %v83
    %v281 = vunpack.c.l.b16 %v84
    %v282 = vunpack.c.l.b16 %v85
    %v283 = vunpack.c.l.b16 %v86
    %v284 = vunpack.c.l.b16 %v87
    %v285 = vunpack.c.l.b16 %v88
    %v286 = vunpack.c.l.b16 %v89
    %v287 = vunpack.c.l.b16 %v90
    %v288 = vunpack.c.l.b16 %v91
    %v289 = vunpack.c.l.b16 %v92
    %v290 = vunpack.c.l.b16 %v93
    %v291 = vunpack.c.l.b16 %v94
    %v292 = vunpack.c.l.b16 %v95
    %v293 = vunpack.c.l.b16 %v96
    %v294 = vunpack.c.l.b16 %v97
    %v295 = vunpack.c.l.b16 %v98
    %v296 = vunpack.c.l.b16 %v99
    %v297 = vunpack.c.l.b16 %v100
    %v298 = vunpack.c.l.b16 %v101
    %v299 = vunpack.c.l.b16 %v102
    %v300 = vunpack.c.l.b16 %v103
    %v301 = vunpack.c.l.b16 %v104
    %v302 = vunpack.c.l.b16 %v105
    %v303 = vunpack.c.l.b16 %v106
    %v304 = vunpack.c.l.b16 %v107
    %v305 = vunpack.c.l.b16 %v108
    %v306 = vunpack.c.l.b16 %v109
    %v307 = vunpack.c.l.b16 %v110
    %v308 = vunpack.c.l.b16 %v111
    %v309 = vunpack.c.l.b16 %v112
    %v310 = vunpack.c.l.b16 %v113
    %v311 = vunpack.c.l.b16 %v114
    %v312 = vpack.c.b16 %v241, %v240
    %v313 = vpack.c.b16 %v243, %v242
    %v314 = vpack.c.b16 %v245, %v244
    %v315 = vpack.c.b16 %v247, %v246
    %v316 = vpack.c.b16 %v249, %v248
    %v317 = vpack.c.b16 %v251, %v250
    %v318 = vpack.c.b16 %v253, %v252
    %v319 = vpack.c.b16 %v255, %v254
    %v320 = vpack.c.b16 %v257, %v256
    %v321 = vpack.c.b16 %v259, %v258
    %v322 = vpack.c.b16 %v261, %v260
    %v323 = vpack.c.b16 %v263, %v262
    %v324 = vpack.c.b16 %v265, %v264
    %v325 = vpack.c.b16 %v267, %v266
    %v326 = vpack.c.b16 %v269, %v268
    %v327 = vpack.c.b16 %v271, %v270
    %v328 = vpack.c.b16 %v273, %v272
    %v329 = vpack.c.b16 %v275, %v274
    %v330 = vpack.c.b16 %v277, %v276
    %v331 = vpack.c.b16 %v279, %v278
    %v332 = vpack.c.b16 %v281, %v280
    %v333 = vpack.c.b16 %v283, %v282
    %v334 = vpack.c.b16 %v285, %v284
    %v335 = vpack.c.b16 %v287, %v286
    %v336 = vpack.c.b16 %v289, %v288
    %v337 = vpack.c.b16 %v291, %v290
    %v338 = vpack.c.b16 %v293, %v292
    %v339 = vpack.c.b16 %v295, %v294
    %v340 = vpack.c.b16 %v297, %v296
    %v341 = vpack.c.b16 %v299, %v298
    %v342 = vpack.c.b16 %v301, %v300
    %v343 = vpack.c.b16 %v303, %v302
    %v344 = vpack.c.b16 %v305, %v304
    %v345 = vpack.c.b16 %v307, %v306
    %v346 = vpack.c.b16 %v309, %v308
    %v347 = vpack.c.b16 %v311, %v310
    %vm384 = vcmask 523264
    %v386 = vsel %vm384, %v154, 0
    %v389 = vsel %vm384, %v159, 0
    %391 = vmatprep.subr.bf16.mxu0 0
    %392 = vmatpush1.bf16.msra.mxu0 %v312
    %393 = vmatprep.subr.bf16.mxu0 0
    %394 = vmatpush1.bf16.msra.mxu0 %v313
    %395 = vmatprep.subr.bf16.mxu0 0
    %396 = vmatpush1.bf16.msra.mxu0 %v314
    %397 = vmatprep.subr.bf16.mxu0 0
    %398 = vmatpush1.bf16.msra.mxu0 %v315
    %399 = vmatprep.subr.bf16.mxu0 0
    %400 = vmatpush1.bf16.msra.mxu0 %v316
    %401 = vmatprep.subr.bf16.mxu0 0
    %402 = vmatpush1.bf16.msra.mxu0 %v317
    %403 = vmatprep.subr.bf16.mxu0 0
    %404 = vmatpush1.bf16.msra.mxu0 %v318
    %405 = vmatprep.subr.bf16.mxu0 0
    %406 = vmatpush1.bf16.msra.mxu0 %v319
    %407 = vmatprep.subr.bf16.mxu0 0
    %408 = vmatpush1.bf16.msra.mxu0 %v320
    %409 = vmatprep.subr.bf16.mxu0 0
    %410 = vmatpush1.bf16.msra.mxu0 %v321
    %411 = vmatprep.subr.bf16.mxu0 0
    %412 = vmatpush1.bf16.msra.mxu0 %v322
    %413 = vmatprep.subr.bf16.mxu0 0
    %414 = vmatpush1.bf16.msra.mxu0 %v323
    %415 = vmatprep.subr.bf16.mxu0 0
    %416 = vmatpush1.bf16.msra.mxu0 %v324
    %417 = vmatprep.subr.bf16.mxu0 0
    %418 = vmatpush1.bf16.msra.mxu0 %v325
    %419 = vmatprep.subr.bf16.mxu0 0
    %420 = vmatpush1.bf16.msra.mxu0 %v326
    %421 = vmatprep.subr.bf16.mxu0 0
    %422 = vmatpush1.bf16.msra.mxu0 %v327
    %423 = vmatprep.mubr.bf16.mxu0 %v151
    %424 = vmatmul.mubr.bf16.gmra.mrb[0].mxu0 %v150
    %v425 = vpop.f32.mrb[0].mxu0
    %v426 = vadd.f32 0.0, %v425
    %v427 = vpop.f32.mrb[0].mxu0
    %v428 = vpop.f32.mrb[0].mxu0
    %v429 = vadd.f32 0.0, %v428
    %v430 = vpop.f32.mrb[0].mxu0
    %431 = vmatprep.mubr.bf16.mxu0 %v156
    %432 = vmatmul.mubr.bf16.gmra.mrb[0].mxu0 %v155
    %v433 = vpop.f32.mrb[0].mxu0
    %v434 = vadd.f32 0.0, %v433
    %v435 = vpop.f32.mrb[0].mxu0
    %v436 = vpop.f32.mrb[0].mxu0
    %v437 = vadd.f32 0.0, %v436
    %v438 = vpop.f32.mrb[0].mxu0
    %439 = vdwg.mxu0
    %440 = vmatprep.subr.bf16.mxu0 0
    %441 = vmatpush1.bf16.msra.mxu0 %v328
    %442 = vmatprep.subr.bf16.mxu0 0
    %443 = vmatpush1.bf16.msra.mxu0 %v329
    %444 = vmatprep.subr.bf16.mxu0 0
    %445 = vmatpush1.bf16.msra.mxu0 %v330
    %446 = vmatprep.subr.bf16.mxu0 0
    %447 = vmatpush1.bf16.msra.mxu0 %v331
    %448 = vmatprep.subr.bf16.mxu0 0
    %449 = vmatpush1.bf16.msra.mxu0 %v332
    %450 = vmatprep.subr.bf16.mxu0 0
    %451 = vmatpush1.bf16.msra.mxu0 %v333
    %452 = vmatprep.subr.bf16.mxu0 0
    %453 = vmatpush1.bf16.msra.mxu0 %v334
    %454 = vmatprep.subr.bf16.mxu0 0
    %455 = vmatpush1.bf16.msra.mxu0 %v335
    %456 = vmatprep.subr.bf16.mxu0 0
    %457 = vmatpush1.bf16.msra.mxu0 %v336
    %458 = vmatprep.subr.bf16.mxu0 0
    %459 = vmatpush1.bf16.msra.mxu0 %v337
    %460 = vmatprep.subr.bf16.mxu0 0
    %461 = vmatpush1.bf16.msra.mxu0 %v338
    %462 = vmatprep.subr.bf16.mxu0 0
    %463 = vmatpush1.bf16.msra.mxu0 %v339
    %464 = vmatprep.subr.bf16.mxu0 0
    %465 = vmatpush1.bf16.msra.mxu0 %v340
    %466 = vmatprep.subr.bf16.mxu0 0
    %467 = vmatpush1.bf16.msra.mxu0 %v341
    %468 = vmatprep.subr.bf16.mxu0 0
    %469 = vmatpush1.bf16.msra.mxu0 %v342
    %470 = vmatprep.subr.bf16.mxu0 0
    %471 = vmatpush1.bf16.msra.mxu0 %v343
    %472 = vmatprep.mubr.bf16.mxu0 %v153
    %473 = vmatmul.mubr.bf16.gmra.mrb[0].mxu0 %v152
    %v474 = vpop.f32.mrb[0].mxu0
    %v475 = vadd.f32 %v426, %v474
    %v476 = vpop.f32.mrb[0].mxu0
    %v477 = vpop.f32.mrb[0].mxu0
    %v478 = vadd.f32 %v429, %v477
    %v479 = vpop.f32.mrb[0].mxu0
    %480 = vmatprep.mubr.bf16.mxu0 %v158
    %481 = vmatmul.mubr.bf16.gmra.mrb[0].mxu0 %v157
    %v482 = vpop.f32.mrb[0].mxu0
    %v483 = vadd.f32 %v434, %v482
    %v484 = vpop.f32.mrb[0].mxu0
    %v485 = vpop.f32.mrb[0].mxu0
    %v486 = vadd.f32 %v437, %v485
    %v487 = vpop.f32.mrb[0].mxu0
    %488 = vdwg.mxu0
    %489 = vmatprep.subr.bf16.mxu0 0
    %490 = vmatpush1.bf16.msra.mxu0 %v344
    %491 = vmatprep.subr.bf16.mxu0 0
    %492 = vmatpush1.bf16.msra.mxu0 %v345
    %493 = vmatprep.subr.bf16.mxu0 0
    %494 = vmatpush1.bf16.msra.mxu0 %v346
    %495 = vmatprep.subr.bf16.mxu0 0
    %496 = vmatpush1.bf16.msra.mxu0 %v347
    %497 = vmatprep.subr.bf16.mxu0 0
    %498 = vmatpush1.bf16.msra.mxu0 0
    %499 = vmatprep.subr.bf16.mxu0 0
    %500 = vmatpush1.bf16.msra.mxu0 0
    %501 = vmatprep.subr.bf16.mxu0 0
    %502 = vmatpush1.bf16.msra.mxu0 0
    %503 = vmatprep.subr.bf16.mxu0 0
    %504 = vmatpush1.bf16.msra.mxu0 0
    %505 = vmatprep.subr.bf16.mxu0 0
    %506 = vmatpush1.bf16.msra.mxu0 0
    %507 = vmatprep.subr.bf16.mxu0 0
    %508 = vmatpush1.bf16.msra.mxu0 0
    %509 = vmatprep.subr.bf16.mxu0 0
    %510 = vmatpush1.bf16.msra.mxu0 0
    %511 = vmatprep.subr.bf16.mxu0 0
    %512 = vmatpush1.bf16.msra.mxu0 0
    %513 = vmatprep.subr.bf16.mxu0 0
    %514 = vmatpush1.bf16.msra.mxu0 0
    %515 = vmatprep.subr.bf16.mxu0 0
    %516 = vmatpush1.bf16.msra.mxu0 0
    %517 = vmatprep.subr.bf16.mxu0 0
    %518 = vmatpush1.bf16.msra.mxu0 0
    %519 = vmatprep.subr.bf16.mxu0 0
    %520 = vmatpush1.bf16.msra.mxu0 0
    %521 = vmatprep.mubr.bf16.mxu0 0
    %522 = vmatmul.mubr.bf16.gmra.mrb[0].mxu0 %v386
    %v523 = vpop.f32.mrb[0].mxu0
    %v524 = vadd.f32 %v475, %v523
    %v525 = vpop.f32.mrb[0].mxu0
    %v526 = vpop.f32.mrb[0].mxu0
    %v527 = vadd.f32 %v478, %v526
    %v528 = vpop.f32.mrb[0].mxu0
    %529 = vmatprep.mubr.bf16.mxu0 0
    %530 = vmatmul.mubr.bf16.gmra.mrb[0].mxu0 %v389
    %v531 = vpop.f32.mrb[0].mxu0
    %v532 = vadd.f32 %v483, %v531
    %v533 = vpop.f32.mrb[0].mxu0
    %v534 = vpop.f32.mrb[0].mxu0
    %v535 = vadd.f32 %v486, %v534
    %v536 = vpop.f32.mrb[0].mxu0
    %537 = vdwg.mxu0
    %v538 = vmax.f32 %v524, %v527
    %v539 = vmax.f32 %v532, %v535
    %v540 = vmax.f32 %v538, %v539
    %v542 = vlaneseq
    %v543 = vshrl.u32 %v542, 7
    %v544 = vsub.s32 0, %v543
    %v545 = vrot.slane %v115, %v544
    %v547 = vadd.f32 %v540, %v545
    %v548 = vrot.slane %v547, 4
    %v549 = vadd.f32 %v547, %v548
    %v550 = vrot.slane %v549, 2
    %v551 = vadd.f32 %v549, %v550
    %v552 = vrot.slane %v551, 1
    %v553 = vadd.f32 %v551, %v552
    %v554 = vmul.f32 %v547, %v547
    %v555 = vrot.slane %v554, 4
    %v556 = vadd.f32 %v554, %v555
    %v557 = vrot.slane %v556, 2
    %v558 = vadd.f32 %v556, %v557
    %v559 = vrot.slane %v558, 1
    %v560 = vadd.f32 %v558, %v559
    %v561 = vmul.f32 %v553, 0.125
    %v562 = vmul.f32 %v560, 0.125
    %v563 = vmul.f32 %v561, %v561
    %v564 = vsub.f32 %v562, %v563
    %v565 = vsub.f32 %v547, %v561
    %v566 = vadd.f32 %v564, 1e-05
    %v567 = vrsqrt.pop %v566
    %v568 = vmul.f32 %v565, %v567
    %v570 = vlaneseq
    %v571 = vshrl.u32 %v570, 7
    %v572 = vsub.s32 0, %v571
    %v573 = vrot.slane %v116, %v572
    %v575 = vmul.f32 %v568, %v573
    %v577 = vlaneseq
    %v578 = vshrl.u32 %v577, 7
    %v579 = vsub.s32 0, %v578
    %v580 = vrot.slane %v117, %v579
    %v582 = vadd.f32 %v575, %v580
    %v583 = vmax.f32 %v582, 0.0
    %v584 = vld [vmem:[%s5] sm:$0x3]
    %vm585 = vcmask 64512
    %v587 = vsel %vm585, %v584, 0
    %589 = vmatprep.subr.mxu0 0.0
    %590 = vmatpush1.msra.mxu0 %v583
    %591 = vmatprep.subr.mxu0 0.0
    %592 = vmatpush1.msra.mxu0 0.0
    %593 = vmatprep.subr.mxu0 0.0
    %594 = vmatpush1.msra.mxu0 0.0
    %595 = vmatprep.subr.mxu0 0.0
    %596 = vmatpush1.msra.mxu0 0.0
    %597 = vmatprep.subr.mxu0 0.0
    %598 = vmatpush1.msra.mxu0 0.0
    %599 = vmatprep.subr.mxu0 0.0
    %600 = vmatpush1.msra.mxu0 0.0
    %601 = vmatprep.subr.mxu0 0.0
    %602 = vmatpush1.msra.mxu0 0.0
    %603 = vmatprep.subr.mxu0 0.0
    %604 = vmatpush1.msra.mxu0 0.0
    %605 = vmatprep.subr.mxu0 0.0
    %606 = vmatpush1.msra.mxu0 0.0
    %607 = vmatprep.subr.mxu0 0.0
    %608 = vmatpush1.msra.mxu0 0.0
    %609 = vmatprep.subr.mxu0 0.0
    %610 = vmatpush1.msra.mxu0 0.0
    %611 = vmatprep.subr.mxu0 0.0
    %612 = vmatpush1.msra.mxu0 0.0
    %613 = vmatprep.subr.mxu0 0.0
    %614 = vmatpush1.msra.mxu0 0.0
    %615 = vmatprep.subr.mxu0 0.0
    %616 = vmatpush1.msra.mxu0 0.0
    %617 = vmatprep.subr.mxu0 0.0
    %618 = vmatpush1.msra.mxu0 0.0
    %619 = vmatprep.subr.mxu0 0.0
    %620 = vmatpush1.msra.mxu0 0.0
    %621 = vmatprep.subr.mxu0 0.0
    %622 = vmatpush1.msra.mxu0 0.0
    %623 = vmatprep.subr.mxu0 0.0
    %624 = vmatpush1.msra.mxu0 0.0
    %625 = vmatprep.subr.mxu0 0.0
    %626 = vmatpush1.msra.mxu0 0.0
    %627 = vmatprep.subr.mxu0 0.0
    %628 = vmatpush1.msra.mxu0 0.0
    %629 = vmatprep.subr.mxu0 0.0
    %630 = vmatpush1.msra.mxu0 0.0
    %631 = vmatprep.subr.mxu0 0.0
    %632 = vmatpush1.msra.mxu0 0.0
    %633 = vmatprep.subr.mxu0 0.0
    %634 = vmatpush1.msra.mxu0 0.0
    %635 = vmatprep.subr.mxu0 0.0
    %636 = vmatpush1.msra.mxu0 0.0
    %637 = vmatprep.subr.mxu0 0.0
    %638 = vmatpush1.msra.mxu0 0.0
    %639 = vmatprep.subr.mxu0 0.0
    %640 = vmatpush1.msra.mxu0 0.0
    %641 = vmatprep.subr.mxu0 0.0
    %642 = vmatpush1.msra.mxu0 0.0
    %643 = vmatprep.subr.mxu0 0.0
    %644 = vmatpush1.msra.mxu0 0.0
    %645 = vmatprep.subr.mxu0 0.0
    %646 = vmatpush1.msra.mxu0 0.0
    %647 = vmatprep.subr.mxu0 0.0
    %648 = vmatpush1.msra.mxu0 0.0
    %649 = vmatprep.subr.mxu0 0.0
    %650 = vmatpush1.msra.mxu0 0.0
    %651 = vmatprep.subr.mxu0 0.0
    %652 = vmatpush1.msra.mxu0 0.0
    %653 = vmatprep.mubr.f32.mxu0 0.0
    %654 = vmatmul.mubr.f32.gmra.mrb[0].mxu0 %v587
    %v655 = vpop.f32.mrb[0].mxu0
    %v656 = vadd.f32 0.0, %v655
    %v657 = vpop.f32.mrb[0].mxu0
    %658 = vdwg.mxu0
    %v659 = vld [vmem:[%s6] sm:$0xff]
    %v660 = vld [vmem:[%s6 + $0x8] sm:$0xff]
    %v661 = vld [vmem:[%s6 + $0x10] sm:$0xff]
    %v662 = vld [vmem:[%s6 + $0x18] sm:$0xff]
    %v663 = vld [vmem:[%s6 + $0x20] sm:$0xff]
    %v664 = vld [vmem:[%s6 + $0x28] sm:$0xff]
    %v665 = vld [vmem:[%s6 + $0x30] sm:$0xff]
    %v666 = vld [vmem:[%s6 + $0x38] sm:$0xff]
    %v667 = vld [vmem:[%s6 + $0x40] sm:$0xff]
    %v668 = vld [vmem:[%s6 + $0x48] sm:$0xff]
    %v669 = vld [vmem:[%s6 + $0x50] sm:$0xff]
    %v670 = vld [vmem:[%s6 + $0x58] sm:$0xff]
    %v671 = vld [vmem:[%s6 + $0x60] sm:$0xff]
    %v672 = vld [vmem:[%s6 + $0x68] sm:$0xff]
    %v673 = vld [vmem:[%s6 + $0x70] sm:$0xff]
    %v674 = vld [vmem:[%s6 + $0x78] sm:$0xff]
    %v675 = vld [vmem:[%s7] sm:$0x1]
    %v677 = vlaneseq
    %v678 = vshrl.u32 %v677, 7
    %v679 = vsub.s32 0, %v678
    %v680 = vrot.slane %v675, %v679
    %682 = vmatprep.subr.mxu0 0.0
    %683 = vmatpush1.msra.mxu0 %v659
    %684 = vmatprep.subr.mxu0 0.0
    %685 = vmatpush1.msra.mxu0 %v660
    %686 = vmatprep.subr.mxu0 0.0
    %687 = vmatpush1.msra.mxu0 %v661
    %688 = vmatprep.subr.mxu0 0.0
    %689 = vmatpush1.msra.mxu0 %v662
    %690 = vmatprep.subr.mxu0 0.0
    %691 = vmatpush1.msra.mxu0 %v663
    %692 = vmatprep.subr.mxu0 0.0
    %693 = vmatpush1.msra.mxu0 %v664
    %694 = vmatprep.subr.mxu0 0.0
    %695 = vmatpush1.msra.mxu0 %v665
    %696 = vmatprep.subr.mxu0 0.0
    %697 = vmatpush1.msra.mxu0 %v666
    %698 = vmatprep.subr.mxu0 0.0
    %699 = vmatpush1.msra.mxu0 %v667
    %700 = vmatprep.subr.mxu0 0.0
    %701 = vmatpush1.msra.mxu0 %v668
    %702 = vmatprep.subr.mxu0 0.0
    %703 = vmatpush1.msra.mxu0 %v669
    %704 = vmatprep.subr.mxu0 0.0
    %705 = vmatpush1.msra.mxu0 %v670
    %706 = vmatprep.subr.mxu0 0.0
    %707 = vmatpush1.msra.mxu0 %v671
    %708 = vmatprep.subr.mxu0 0.0
    %709 = vmatpush1.msra.mxu0 %v672
    %710 = vmatprep.subr.mxu0 0.0
    %711 = vmatpush1.msra.mxu0 %v673
    %712 = vmatprep.subr.mxu0 0.0
    %713 = vmatpush1.msra.mxu0 %v674
    %714 = vmatprep.subr.mxu0 0.0
    %715 = vmatpush1.msra.mxu0 0.0
    %716 = vmatprep.subr.mxu0 0.0
    %717 = vmatpush1.msra.mxu0 0.0
    %718 = vmatprep.subr.mxu0 0.0
    %719 = vmatpush1.msra.mxu0 0.0
    %720 = vmatprep.subr.mxu0 0.0
    %721 = vmatpush1.msra.mxu0 0.0
    %722 = vmatprep.subr.mxu0 0.0
    %723 = vmatpush1.msra.mxu0 0.0
    %724 = vmatprep.subr.mxu0 0.0
    %725 = vmatpush1.msra.mxu0 0.0
    %726 = vmatprep.subr.mxu0 0.0
    %727 = vmatpush1.msra.mxu0 0.0
    %728 = vmatprep.subr.mxu0 0.0
    %729 = vmatpush1.msra.mxu0 0.0
    %730 = vmatprep.subr.mxu0 0.0
    %731 = vmatpush1.msra.mxu0 0.0
    %732 = vmatprep.subr.mxu0 0.0
    %733 = vmatpush1.msra.mxu0 0.0
    %734 = vmatprep.subr.mxu0 0.0
    %735 = vmatpush1.msra.mxu0 0.0
    %736 = vmatprep.subr.mxu0 0.0
    %737 = vmatpush1.msra.mxu0 0.0
    %738 = vmatprep.subr.mxu0 0.0
    %739 = vmatpush1.msra.mxu0 0.0
    %740 = vmatprep.subr.mxu0 0.0
    %741 = vmatpush1.msra.mxu0 0.0
    %742 = vmatprep.subr.mxu0 0.0
    %743 = vmatpush1.msra.mxu0 0.0
    %744 = vmatprep.subr.mxu0 0.0
    %745 = vmatpush1.msra.mxu0 0.0
    %746 = vmatprep.mubr.f32.mxu0 0.0
    %747 = vmatmul.mubr.f32.gmra.mrb[0].mxu0 %v656
    %v748 = vpop.f32.mrb[0].mxu0
    %v749 = vadd.f32 %v680, %v748
    %v750 = vpop.f32.mrb[0].mxu0
    %751 = vdwg.mxu0
    %vm752 = vcmask 9216
    %v753 = vsel %vm752, %v749, -inf
    %754 = vmax.xlane.f32.xlu0 %v753
    %v755 = vpop.xlane.xlu0 %754
    %v756 = vsub.f32 %v749, %v755
    %v757 = vmul.f32 %v756, 1.442695
    %v758 = vpow.pop %v757
    %v759 = vsel %vm752, %v758, 0.0
    %760 = vadd.xlane.f32.xlu0 %v759
    %v761 = vpop.xlane.xlu0 %760
    %v762 = vrcp.pop %v761
    %v763 = vmul.f32 %v758, %v762
    %764 = vst.msk [vmem:[#allocation2] sm:$0x3] %vm752, %v763
    // Predicated region
    $region34: #{net_forward.5} parent=1 // pred_check
      _
    $region35: #{net_forward.5} parent=1 // pred_check_branch
      %766 = sbr.rel (0) target = $region37
    $region36: #{net_forward.5} parent=1 // pred_region
      %s768 = ssub.s32 32, 32
      %769 = vsyncadd [#allocation3], %s768
      %s771 = sshll.u32 [#allocation2], 4
      %s772 = int_to_ptr.vmem [resolvable:$true] %s771
      %774 = dma.vmem_to_hbm [thread:$0]  %s772, 32, %s8, [#allocation3]
    $region37: #{net_forward.5} parent=1 // pred_fallthru
      _
    // Predicated region
    $region38: #{net_forward.5} parent=1 // pred_check
      _
    $region39: #{net_forward.5} parent=1 // pred_check_branch
      %776 = sbr.rel (0) target = $region41
    $region40: #{net_forward.5} parent=1 // pred_region
      %777 = dma.done [#allocation3], 32
    $region41: #{net_forward.5} parent=1 // pred_fallthru
      _
    %778 = vsyncpa [#allocation3], 1

</llo_original>
